<compile_context>
chip_gen: v5e
topology: v5e:2x2
jax: 0.10.0
libtpu: 0.0.40
codegen_flags: <defaults>
</compile_context>

<pallas_src>
import functools

import jax
import jax.numpy as jnp
from jax.experimental import pallas as pl
from jax.experimental.pallas import tpu as pltpu


# ----------------------------------------------------------------------------
# Fused ResBlock kernel (one batch element per grid step)
# ----------------------------------------------------------------------------
def _resblock_kernel(slope, x_ref, w1_ref, b1_ref, w2_ref, b2_ref, o_ref, pad_ref):
    """x_ref/o_ref: (1, H, W, C) NHWC tiles; w*_ref: (9, C, C) tap-major weights;
    b*_ref: (1, C) f32 biases; pad_ref: VMEM scratch (H+2, W+2, C)."""
    _, H, W, C = x_ref.shape
    x = x_ref[0]                                            # (H, W, C)

    def reflect_pad(a):
        # interior
        pad_ref[1:H + 1, 1:W + 1, :] = a
        # reflected rows (nn.ReflectionPad2d(1): edge row not repeated)
        pad_ref[0:1, 1:W + 1, :] = a[1:2, :, :]
        pad_ref[H + 1:H + 2, 1:W + 1, :] = a[H - 2:H - 1, :, :]
        # reflected columns (reads the freshly written rows -> correct corners)
        pad_ref[:, 0:1, :] = pad_ref[:, 2:3, :]
        pad_ref[:, W + 1:W + 2, :] = pad_ref[:, W - 1:W, :]

    def conv3x3(w_ref, b_ref):
        # On-chip im2col: 9 shifted views of the padded map, 9 accumulating
        # MXU matmuls against the per-tap (C, C) weight slices.  f32 accumulate.
        acc = None
        for t in range(9):
            di, dj = divmod(t, 3)
            tap = pad_ref[di:di + H, dj:dj + W, :].reshape(H * W, C)
            contrib = jnp.dot(tap, w_ref[t], preferred_element_type=jnp.float32)
            acc = contrib if acc is None else acc + contrib
        return acc + b_ref[...]                             # (H*W, C) f32

    # conv1 + leaky_relu(slope)
    reflect_pad(x)
    a1 = conv3x3(w1_ref, b1_ref)
    a1 = jnp.where(a1 >= 0, a1, slope * a1)

    # conv2 + residual + leaky_relu(slope); intermediate never leaves VMEM
    reflect_pad(a1.reshape(H, W, C).astype(pad_ref.dtype))
    a2 = conv3x3(w2_ref, b2_ref)
    a2 = a2 + x.astype(jnp.float32).reshape(H * W, C)
    a2 = jnp.where(a2 >= 0, a2, slope * a2)
    o_ref[0] = a2.reshape(H, W, C).astype(o_ref.dtype)


@functools.partial(jax.jit, static_argnames=("slope", "compute_dtype"))
def resblock_forward(x_nchw, w1, b1, w2, b2, slope=0.2, compute_dtype=jnp.float32):
    """ResBlock(channels, bn=False).forward.

    x_nchw: (N, C, H, W);  w1/w2: (C, C, 3, 3) effective (spectral-normalized)
    conv weights in PyTorch OIHW layout;  b1/b2: (C,).
    compute_dtype may be jnp.bfloat16 for higher MXU throughput (accumulation
    stays f32); default f32 preserves reference numerics.
    """
    N, C, H, W = x_nchw.shape
    assert H >= 2 and W >= 2, "reflection pad of 1 needs H, W >= 2"
    assert W % 8 == 0, "W must be a multiple of 8 (sublane-aligned in-kernel reshape)"

    x = jnp.transpose(x_nchw, (0, 2, 3, 1)).astype(compute_dtype)   # -> NHWC

    def prep_w(w):
        # OIHW -> (kh, kw, C_in, C_out) -> (9, C_in, C_out), tap-major.
        return jnp.transpose(w, (2, 3, 1, 0)).reshape(9, C, C).astype(compute_dtype)

    w1m, w2m = prep_w(w1), prep_w(w2)
    b1m = b1.reshape(1, C).astype(jnp.float32)
    b2m = b2.reshape(1, C).astype(jnp.float32)

    out = pl.pallas_call(
        functools.partial(_resblock_kernel, float(slope)),
        out_shape=jax.ShapeDtypeStruct((N, H, W, C), x_nchw.dtype),
        grid=(N,),
        in_specs=[
            pl.BlockSpec((1, H, W, C), lambda n: (n, 0, 0, 0)),
            pl.BlockSpec((9, C, C), lambda n: (0, 0, 0)),
            pl.BlockSpec((1, C), lambda n: (0, 0)),
            pl.BlockSpec((9, C, C), lambda n: (0, 0, 0)),
            pl.BlockSpec((1, C), lambda n: (0, 0)),
        ],
        out_specs=pl.BlockSpec((1, H, W, C), lambda n: (n, 0, 0, 0)),
        scratch_shapes=[pltpu.VMEM((H + 2, W + 2, C), compute_dtype)],
        compiler_params=pltpu.CompilerParams(
            dimension_semantics=("parallel",),
        ),
    )(x, w1m, b1m, w2m, b2m)

    return jnp.transpose(out, (0, 3, 1, 2))                         # -> NCHW


# ----------------------------------------------------------------------------
# Host-side helpers: spectral norm (effective weight) + plain-JAX reference
# ----------------------------------------------------------------------------
def spectral_normalize(w, key, n_iter=3):
    """Effective weight of nn.utils.spectral_norm: w / sigma (power iteration)."""
    out = w.shape[0]
    wm = w.reshape(out, -1)
    u = jax.random.normal(key, (out,), jnp.float32)
    u = u / (jnp.linalg.norm(u) + 1e-12)
    v = None
    for _ in range(n_iter):
        v = wm.T @ u
        v = v / (jnp.linalg.norm(v) + 1e-12)
        u = wm @ v
        u = u / (jnp.linalg.norm(u) + 1e-12)
    sigma = u @ (wm @ v)
    return w / sigma


def resblock_reference(x, w1, b1, w2, b2, slope=0.2):
    """Pure-JAX reference matching the PyTorch ResBlock (bn=False) forward."""
    def conv(h, w, b):
        hp = jnp.pad(h, ((0, 0), (0, 0), (1, 1), (1, 1)), mode="reflect")
        o = jax.lax.conv_general_dilated(
            hp, w, window_strides=(1, 1), padding="VALID",
            dimension_numbers=("NCHW", "OIHW", "NCHW"))
        return o + b.reshape(1, -1, 1, 1)

    out = jax.nn.leaky_relu(conv(x, w1, b1), slope)
    out = conv(out, w2, b2) + x
    return jax.nn.leaky_relu(out, slope)


# ----------------------------------------------------------------------------
if __name__ == "__main__":
    BATCH, CHANNELS, SIZE = 2, 64, 16   # small, lane-friendly channel count

    key = jax.random.PRNGKey(0)
    kw1, ku1, kb1, kw2, ku2, kb2, kx = jax.random.split(key, 7)

    w1 = spectral_normalize(
        jax.random.normal(kw1, (CHANNELS, CHANNELS, 3, 3), jnp.float32) * 0.1, ku1)
    b1 = jax.random.normal(kb1, (CHANNELS,), jnp.float32) * 0.05
    w2 = spectral_normalize(
        jax.random.normal(kw2, (CHANNELS, CHANNELS, 3, 3), jnp.float32) * 0.1, ku2)
    b2 = jax.random.normal(kb2, (CHANNELS,), jnp.float32) * 0.05

    x = jax.random.normal(kx, (BATCH, CHANNELS, SIZE, SIZE), jnp.float32)

    out = resblock_forward(x, w1, b1, w2, b2)
    out = jax.block_until_ready(out)

    assert out.shape == x.shape, out.shape
    assert bool(jnp.all(jnp.isfinite(out)))

    ref = resblock_reference(x, w1, b1, w2, b2)
    max_err = float(jnp.max(jnp.abs(out - ref)))
    assert max_err < 5e-2, f"max abs error vs reference: {max_err}"

    print("KERNEL_OK")
</pallas_src>

<mosaic_0001>
module attributes {stable_mosaic.version = 11 : i64} {
  func.func @_resblock_kernel(%arg0: i32, %arg1: memref<1x16x16x64xf32, #tpu.memory_space<vmem>>, %arg2: memref<9x64x64xf32, #tpu.memory_space<vmem>>, %arg3: memref<1x64xf32, #tpu.memory_space<vmem>>, %arg4: memref<9x64x64xf32, #tpu.memory_space<vmem>>, %arg5: memref<1x64xf32, #tpu.memory_space<vmem>>, %arg6: memref<1x16x16x64xf32, #tpu.memory_space<vmem>>, %arg7: memref<18x18x64xf32, #tpu.memory_space<vmem>>) attributes {dimension_semantics = [#tpu.dimension_semantics<parallel>], iteration_bounds = array<i64: 2>, scalar_prefetch = 0 : i64, scratch_operands = 1 : i64, tpu.core_type = #tpu.core_type<tc>, window_params = [{transform_indices = @transform_0, window_bounds = array<i64: 1, 16, 16, 64>}, {pipeline_mode = #tpu.pipeline_mode<synchronous>, transform_indices = @transform_1, window_bounds = array<i64: 9, 64, 64>}, {pipeline_mode = #tpu.pipeline_mode<synchronous>, transform_indices = @transform_2, window_bounds = array<i64: 1, 64>}, {pipeline_mode = #tpu.pipeline_mode<synchronous>, transform_indices = @transform_3, window_bounds = array<i64: 9, 64, 64>}, {pipeline_mode = #tpu.pipeline_mode<synchronous>, transform_indices = @transform_4, window_bounds = array<i64: 1, 64>}, {transform_indices = @transform_5, window_bounds = array<i64: 1, 16, 16, 64>}]} {
    %c0 = arith.constant 0 : index
    %c0_0 = arith.constant 0 : index
    %c0_1 = arith.constant 0 : index
    %c0_2 = arith.constant 0 : index
    %0 = vector.load %arg1[%c0, %c0_0, %c0_1, %c0_2] : memref<1x16x16x64xf32, #tpu.memory_space<vmem>>, vector<1x16x16x64xf32>
    %1 = vector.shape_cast %0 : vector<1x16x16x64xf32> to vector<16x16x64xf32>
    %c1 = arith.constant 1 : index
    %c1_3 = arith.constant 1 : index
    %c0_4 = arith.constant 0 : index
    %2 = vector.load %arg7[%c1, %c1_3, %c0_4] : memref<18x18x64xf32, #tpu.memory_space<vmem>>, vector<16x16x64xf32>
    tpu.vector_store %arg7[%c1, %c1_3, %c0_4], %1 {strides = array<i32>} : memref<18x18x64xf32, #tpu.memory_space<vmem>>, vector<16x16x64xf32>,
    %3 = vector.extract_strided_slice %1 {offsets = [1, 0, 0], sizes = [1, 16, 64], strides = [1, 1, 1]} : vector<16x16x64xf32> to vector<1x16x64xf32>
    %c0_5 = arith.constant 0 : index
    %c1_6 = arith.constant 1 : index
    %c0_7 = arith.constant 0 : index
    %4 = vector.load %arg7[%c0_5, %c1_6, %c0_7] : memref<18x18x64xf32, #tpu.memory_space<vmem>>, vector<1x16x64xf32>
    tpu.vector_store %arg7[%c0_5, %c1_6, %c0_7], %3 {strides = array<i32>} : memref<18x18x64xf32, #tpu.memory_space<vmem>>, vector<1x16x64xf32>,
    %5 = vector.extract_strided_slice %1 {offsets = [14, 0, 0], sizes = [1, 16, 64], strides = [1, 1, 1]} : vector<16x16x64xf32> to vector<1x16x64xf32>
    %c17 = arith.constant 17 : index
    %c1_8 = arith.constant 1 : index
    %c0_9 = arith.constant 0 : index
    %6 = vector.load %arg7[%c17, %c1_8, %c0_9] : memref<18x18x64xf32, #tpu.memory_space<vmem>>, vector<1x16x64xf32>
    tpu.vector_store %arg7[%c17, %c1_8, %c0_9], %5 {strides = array<i32>} : memref<18x18x64xf32, #tpu.memory_space<vmem>>, vector<1x16x64xf32>,
    %c0_10 = arith.constant 0 : index
    %c2 = arith.constant 2 : index
    %c0_11 = arith.constant 0 : index
    %7 = vector.load %arg7[%c0_10, %c2, %c0_11] : memref<18x18x64xf32, #tpu.memory_space<vmem>>, vector<18x1x64xf32>
    %c0_12 = arith.constant 0 : index
    %c0_13 = arith.constant 0 : index
    %c0_14 = arith.constant 0 : index
    %8 = vector.load %arg7[%c0_12, %c0_13, %c0_14] : memref<18x18x64xf32, #tpu.memory_space<vmem>>, vector<18x1x64xf32>
    tpu.vector_store %arg7[%c0_12, %c0_13, %c0_14], %7 {strides = array<i32>} : memref<18x18x64xf32, #tpu.memory_space<vmem>>, vector<18x1x64xf32>,
    %c0_15 = arith.constant 0 : index
    %c15 = arith.constant 15 : index
    %c0_16 = arith.constant 0 : index
    %9 = vector.load %arg7[%c0_15, %c15, %c0_16] : memref<18x18x64xf32, #tpu.memory_space<vmem>>, vector<18x1x64xf32>
    %c0_17 = arith.constant 0 : index
    %c17_18 = arith.constant 17 : index
    %c0_19 = arith.constant 0 : index
    %10 = vector.load %arg7[%c0_17, %c17_18, %c0_19] : memref<18x18x64xf32, #tpu.memory_space<vmem>>, vector<18x1x64xf32>
    tpu.vector_store %arg7[%c0_17, %c17_18, %c0_19], %9 {strides = array<i32>} : memref<18x18x64xf32, #tpu.memory_space<vmem>>, vector<18x1x64xf32>,
    %c0_20 = arith.constant 0 : index
    %c0_21 = arith.constant 0 : index
    %c0_22 = arith.constant 0 : index
    %11 = vector.load %arg7[%c0_20, %c0_21, %c0_22] : memref<18x18x64xf32, #tpu.memory_space<vmem>>, vector<16x16x64xf32>
    %12 = vector.shape_cast %11 : vector<16x16x64xf32> to vector<256x64xf32>
    %c0_23 = arith.constant 0 : index
    %c0_24 = arith.constant 0 : index
    %c0_25 = arith.constant 0 : index
    %13 = vector.load %arg2[%c0_23, %c0_24, %c0_25] : memref<9x64x64xf32, #tpu.memory_space<vmem>>, vector<1x64x64xf32>
    %14 = vector.shape_cast %13 : vector<1x64x64xf32> to vector<64x64xf32>
    %cst = arith.constant dense<0.000000e+00> : vector<256x64xf32>
    %15 = tpu.matmul %12, %14, %cst {dimension_numbers = #tpu.dot_dimension_numbers<[1], [0], [0], [1], [0, 0, 1, 1], [], []>} : vector<256x64xf32>, vector<64x64xf32>, vector<256x64xf32> -> vector<256x64xf32>
    %c0_26 = arith.constant 0 : index
    %c1_27 = arith.constant 1 : index
    %c0_28 = arith.constant 0 : index
    %16 = vector.load %arg7[%c0_26, %c1_27, %c0_28] : memref<18x18x64xf32, #tpu.memory_space<vmem>>, vector<16x16x64xf32>
    %17 = vector.shape_cast %16 : vector<16x16x64xf32> to vector<256x64xf32>
    %c1_29 = arith.constant 1 : index
    %c0_30 = arith.constant 0 : index
    %c0_31 = arith.constant 0 : index
    %18 = vector.load %arg2[%c1_29, %c0_30, %c0_31] : memref<9x64x64xf32, #tpu.memory_space<vmem>>, vector<1x64x64xf32>
    %19 = vector.shape_cast %18 : vector<1x64x64xf32> to vector<64x64xf32>
    %cst_32 = arith.constant dense<0.000000e+00> : vector<256x64xf32>
    %20 = tpu.matmul %17, %19, %cst_32 {dimension_numbers = #tpu.dot_dimension_numbers<[1], [0], [0], [1], [0, 0, 1, 1], [], []>} : vector<256x64xf32>, vector<64x64xf32>, vector<256x64xf32> -> vector<256x64xf32>
    %21 = arith.addf %15, %20 : vector<256x64xf32>
    %c0_33 = arith.constant 0 : index
    %c2_34 = arith.constant 2 : index
    %c0_35 = arith.constant 0 : index
    %22 = vector.load %arg7[%c0_33, %c2_34, %c0_35] : memref<18x18x64xf32, #tpu.memory_space<vmem>>, vector<16x16x64xf32>
    %23 = vector.shape_cast %22 : vector<16x16x64xf32> to vector<256x64xf32>
    %c2_36 = arith.constant 2 : index
    %c0_37 = arith.constant 0 : index
    %c0_38 = arith.constant 0 : index
    %24 = vector.load %arg2[%c2_36, %c0_37, %c0_38] : memref<9x64x64xf32, #tpu.memory_space<vmem>>, vector<1x64x64xf32>
    %25 = vector.shape_cast %24 : vector<1x64x64xf32> to vector<64x64xf32>
    %cst_39 = arith.constant dense<0.000000e+00> : vector<256x64xf32>
    %26 = tpu.matmul %23, %25, %cst_39 {dimension_numbers = #tpu.dot_dimension_numbers<[1], [0], [0], [1], [0, 0, 1, 1], [], []>} : vector<256x64xf32>, vector<64x64xf32>, vector<256x64xf32> -> vector<256x64xf32>
    %27 = arith.addf %21, %26 : vector<256x64xf32>
    %c1_40 = arith.constant 1 : index
    %c0_41 = arith.constant 0 : index
    %c0_42 = arith.constant 0 : index
    %28 = vector.load %arg7[%c1_40, %c0_41, %c0_42] : memref<18x18x64xf32, #tpu.memory_space<vmem>>, vector<16x16x64xf32>
    %29 = vector.shape_cast %28 : vector<16x16x64xf32> to vector<256x64xf32>
    %c3 = arith.constant 3 : index
    %c0_43 = arith.constant 0 : index
    %c0_44 = arith.constant 0 : index
    %30 = vector.load %arg2[%c3, %c0_43, %c0_44] : memref<9x64x64xf32, #tpu.memory_space<vmem>>, vector<1x64x64xf32>
    %31 = vector.shape_cast %30 : vector<1x64x64xf32> to vector<64x64xf32>
    %cst_45 = arith.constant dense<0.000000e+00> : vector<256x64xf32>
    %32 = tpu.matmul %29, %31, %cst_45 {dimension_numbers = #tpu.dot_dimension_numbers<[1], [0], [0], [1], [0, 0, 1, 1], [], []>} : vector<256x64xf32>, vector<64x64xf32>, vector<256x64xf32> -> vector<256x64xf32>
    %33 = arith.addf %27, %32 : vector<256x64xf32>
    %c1_46 = arith.constant 1 : index
    %c1_47 = arith.constant 1 : index
    %c0_48 = arith.constant 0 : index
    %34 = vector.load %arg7[%c1_46, %c1_47, %c0_48] : memref<18x18x64xf32, #tpu.memory_space<vmem>>, vector<16x16x64xf32>
    %35 = vector.shape_cast %34 : vector<16x16x64xf32> to vector<256x64xf32>
    %c4 = arith.constant 4 : index
    %c0_49 = arith.constant 0 : index
    %c0_50 = arith.constant 0 : index
    %36 = vector.load %arg2[%c4, %c0_49, %c0_50] : memref<9x64x64xf32, #tpu.memory_space<vmem>>, vector<1x64x64xf32>
    %37 = vector.shape_cast %36 : vector<1x64x64xf32> to vector<64x64xf32>
    %cst_51 = arith.constant dense<0.000000e+00> : vector<256x64xf32>
    %38 = tpu.matmul %35, %37, %cst_51 {dimension_numbers = #tpu.dot_dimension_numbers<[1], [0], [0], [1], [0, 0, 1, 1], [], []>} : vector<256x64xf32>, vector<64x64xf32>, vector<256x64xf32> -> vector<256x64xf32>
    %39 = arith.addf %33, %38 : vector<256x64xf32>
    %c1_52 = arith.constant 1 : index
    %c2_53 = arith.constant 2 : index
    %c0_54 = arith.constant 0 : index
    %40 = vector.load %arg7[%c1_52, %c2_53, %c0_54] : memref<18x18x64xf32, #tpu.memory_space<vmem>>, vector<16x16x64xf32>
    %41 = vector.shape_cast %40 : vector<16x16x64xf32> to vector<256x64xf32>
    %c5 = arith.constant 5 : index
    %c0_55 = arith.constant 0 : index
    %c0_56 = arith.constant 0 : index
    %42 = vector.load %arg2[%c5, %c0_55, %c0_56] : memref<9x64x64xf32, #tpu.memory_space<vmem>>, vector<1x64x64xf32>
    %43 = vector.shape_cast %42 : vector<1x64x64xf32> to vector<64x64xf32>
    %cst_57 = arith.constant dense<0.000000e+00> : vector<256x64xf32>
    %44 = tpu.matmul %41, %43, %cst_57 {dimension_numbers = #tpu.dot_dimension_numbers<[1], [0], [0], [1], [0, 0, 1, 1], [], []>} : vector<256x64xf32>, vector<64x64xf32>, vector<256x64xf32> -> vector<256x64xf32>
    %45 = arith.addf %39, %44 : vector<256x64xf32>
    %c2_58 = arith.constant 2 : index
    %c0_59 = arith.constant 0 : index
    %c0_60 = arith.constant 0 : index
    %46 = vector.load %arg7[%c2_58, %c0_59, %c0_60] : memref<18x18x64xf32, #tpu.memory_space<vmem>>, vector<16x16x64xf32>
    %47 = vector.shape_cast %46 : vector<16x16x64xf32> to vector<256x64xf32>
    %c6 = arith.constant 6 : index
    %c0_61 = arith.constant 0 : index
    %c0_62 = arith.constant 0 : index
    %48 = vector.load %arg2[%c6, %c0_61, %c0_62] : memref<9x64x64xf32, #tpu.memory_space<vmem>>, vector<1x64x64xf32>
    %49 = vector.shape_cast %48 : vector<1x64x64xf32> to vector<64x64xf32>
    %cst_63 = arith.constant dense<0.000000e+00> : vector<256x64xf32>
    %50 = tpu.matmul %47, %49, %cst_63 {dimension_numbers = #tpu.dot_dimension_numbers<[1], [0], [0], [1], [0, 0, 1, 1], [], []>} : vector<256x64xf32>, vector<64x64xf32>, vector<256x64xf32> -> vector<256x64xf32>
    %51 = arith.addf %45, %50 : vector<256x64xf32>
    %c2_64 = arith.constant 2 : index
    %c1_65 = arith.constant 1 : index
    %c0_66 = arith.constant 0 : index
    %52 = vector.load %arg7[%c2_64, %c1_65, %c0_66] : memref<18x18x64xf32, #tpu.memory_space<vmem>>, vector<16x16x64xf32>
    %53 = vector.shape_cast %52 : vector<16x16x64xf32> to vector<256x64xf32>
    %c7 = arith.constant 7 : index
    %c0_67 = arith.constant 0 : index
    %c0_68 = arith.constant 0 : index
    %54 = vector.load %arg2[%c7, %c0_67, %c0_68] : memref<9x64x64xf32, #tpu.memory_space<vmem>>, vector<1x64x64xf32>
    %55 = vector.shape_cast %54 : vector<1x64x64xf32> to vector<64x64xf32>
    %cst_69 = arith.constant dense<0.000000e+00> : vector<256x64xf32>
    %56 = tpu.matmul %53, %55, %cst_69 {dimension_numbers = #tpu.dot_dimension_numbers<[1], [0], [0], [1], [0, 0, 1, 1], [], []>} : vector<256x64xf32>, vector<64x64xf32>, vector<256x64xf32> -> vector<256x64xf32>
    %57 = arith.addf %51, %56 : vector<256x64xf32>
    %c2_70 = arith.constant 2 : index
    %c2_71 = arith.constant 2 : index
    %c0_72 = arith.constant 0 : index
    %58 = vector.load %arg7[%c2_70, %c2_71, %c0_72] : memref<18x18x64xf32, #tpu.memory_space<vmem>>, vector<16x16x64xf32>
    %59 = vector.shape_cast %58 : vector<16x16x64xf32> to vector<256x64xf32>
    %c8 = arith.constant 8 : index
    %c0_73 = arith.constant 0 : index
    %c0_74 = arith.constant 0 : index
    %60 = vector.load %arg2[%c8, %c0_73, %c0_74] : memref<9x64x64xf32, #tpu.memory_space<vmem>>, vector<1x64x64xf32>
    %61 = vector.shape_cast %60 : vector<1x64x64xf32> to vector<64x64xf32>
    %cst_75 = arith.constant dense<0.000000e+00> : vector<256x64xf32>
    %62 = tpu.matmul %59, %61, %cst_75 {dimension_numbers = #tpu.dot_dimension_numbers<[1], [0], [0], [1], [0, 0, 1, 1], [], []>} : vector<256x64xf32>, vector<64x64xf32>, vector<256x64xf32> -> vector<256x64xf32>
    %63 = arith.addf %57, %62 : vector<256x64xf32>
    %c0_76 = arith.constant 0 : index
    %c0_77 = arith.constant 0 : index
    %64 = vector.load %arg3[%c0_76, %c0_77] : memref<1x64xf32, #tpu.memory_space<vmem>>, vector<1x64xf32>
    %65 = vector.broadcast %64 : vector<1x64xf32> to vector<256x64xf32>
    %66 = arith.addf %63, %65 : vector<256x64xf32>
    %cst_78 = arith.constant 0.000000e+00 : f32
    %67 = vector.broadcast %cst_78 : f32 to vector<256x64xf32>
    %68 = arith.cmpf oge, %66, %67 : vector<256x64xf32>
    %cst_79 = arith.constant 2.000000e-01 : f32
    %69 = vector.broadcast %cst_79 : f32 to vector<256x64xf32>
    %70 = arith.mulf %69, %66 : vector<256x64xf32>
    %71 = arith.select %68, %66, %70 : vector<256x64xi1>, vector<256x64xf32>
    %72 = vector.shape_cast %71 : vector<256x64xf32> to vector<16x16x64xf32>
    %c1_80 = arith.constant 1 : index
    %c1_81 = arith.constant 1 : index
    %c0_82 = arith.constant 0 : index
    %73 = vector.load %arg7[%c1_80, %c1_81, %c0_82] : memref<18x18x64xf32, #tpu.memory_space<vmem>>, vector<16x16x64xf32>
    tpu.vector_store %arg7[%c1_80, %c1_81, %c0_82], %72 {strides = array<i32>} : memref<18x18x64xf32, #tpu.memory_space<vmem>>, vector<16x16x64xf32>,
    %74 = vector.extract_strided_slice %72 {offsets = [1, 0, 0], sizes = [1, 16, 64], strides = [1, 1, 1]} : vector<16x16x64xf32> to vector<1x16x64xf32>
    %c0_83 = arith.constant 0 : index
    %c1_84 = arith.constant 1 : index
    %c0_85 = arith.constant 0 : index
    %75 = vector.load %arg7[%c0_83, %c1_84, %c0_85] : memref<18x18x64xf32, #tpu.memory_space<vmem>>, vector<1x16x64xf32>
    tpu.vector_store %arg7[%c0_83, %c1_84, %c0_85], %74 {strides = array<i32>} : memref<18x18x64xf32, #tpu.memory_space<vmem>>, vector<1x16x64xf32>,
    %76 = vector.extract_strided_slice %72 {offsets = [14, 0, 0], sizes = [1, 16, 64], strides = [1, 1, 1]} : vector<16x16x64xf32> to vector<1x16x64xf32>
    %c17_86 = arith.constant 17 : index
    %c1_87 = arith.constant 1 : index
    %c0_88 = arith.constant 0 : index
    %77 = vector.load %arg7[%c17_86, %c1_87, %c0_88] : memref<18x18x64xf32, #tpu.memory_space<vmem>>, vector<1x16x64xf32>
    tpu.vector_store %arg7[%c17_86, %c1_87, %c0_88], %76 {strides = array<i32>} : memref<18x18x64xf32, #tpu.memory_space<vmem>>, vector<1x16x64xf32>,
    %c0_89 = arith.constant 0 : index
    %c2_90 = arith.constant 2 : index
    %c0_91 = arith.constant 0 : index
    %78 = vector.load %arg7[%c0_89, %c2_90, %c0_91] : memref<18x18x64xf32, #tpu.memory_space<vmem>>, vector<18x1x64xf32>
    %c0_92 = arith.constant 0 : index
    %c0_93 = arith.constant 0 : index
    %c0_94 = arith.constant 0 : index
    %79 = vector.load %arg7[%c0_92, %c0_93, %c0_94] : memref<18x18x64xf32, #tpu.memory_space<vmem>>, vector<18x1x64xf32>
    tpu.vector_store %arg7[%c0_92, %c0_93, %c0_94], %78 {strides = array<i32>} : memref<18x18x64xf32, #tpu.memory_space<vmem>>, vector<18x1x64xf32>,
    %c0_95 = arith.constant 0 : index
    %c15_96 = arith.constant 15 : index
    %c0_97 = arith.constant 0 : index
    %80 = vector.load %arg7[%c0_95, %c15_96, %c0_97] : memref<18x18x64xf32, #tpu.memory_space<vmem>>, vector<18x1x64xf32>
    %c0_98 = arith.constant 0 : index
    %c17_99 = arith.constant 17 : index
    %c0_100 = arith.constant 0 : index
    %81 = vector.load %arg7[%c0_98, %c17_99, %c0_100] : memref<18x18x64xf32, #tpu.memory_space<vmem>>, vector<18x1x64xf32>
    tpu.vector_store %arg7[%c0_98, %c17_99, %c0_100], %80 {strides = array<i32>} : memref<18x18x64xf32, #tpu.memory_space<vmem>>, vector<18x1x64xf32>,
    %c0_101 = arith.constant 0 : index
    %c0_102 = arith.constant 0 : index
    %c0_103 = arith.constant 0 : index
    %82 = vector.load %arg7[%c0_101, %c0_102, %c0_103] : memref<18x18x64xf32, #tpu.memory_space<vmem>>, vector<16x16x64xf32>
    %83 = vector.shape_cast %82 : vector<16x16x64xf32> to vector<256x64xf32>
    %c0_104 = arith.constant 0 : index
    %c0_105 = arith.constant 0 : index
    %c0_106 = arith.constant 0 : index
    %84 = vector.load %arg4[%c0_104, %c0_105, %c0_106] : memref<9x64x64xf32, #tpu.memory_space<vmem>>, vector<1x64x64xf32>
    %85 = vector.shape_cast %84 : vector<1x64x64xf32> to vector<64x64xf32>
    %cst_107 = arith.constant dense<0.000000e+00> : vector<256x64xf32>
    %86 = tpu.matmul %83, %85, %cst_107 {dimension_numbers = #tpu.dot_dimension_numbers<[1], [0], [0], [1], [0, 0, 1, 1], [], []>} : vector<256x64xf32>, vector<64x64xf32>, vector<256x64xf32> -> vector<256x64xf32>
    %c0_108 = arith.constant 0 : index
    %c1_109 = arith.constant 1 : index
    %c0_110 = arith.constant 0 : index
    %87 = vector.load %arg7[%c0_108, %c1_109, %c0_110] : memref<18x18x64xf32, #tpu.memory_space<vmem>>, vector<16x16x64xf32>
    %88 = vector.shape_cast %87 : vector<16x16x64xf32> to vector<256x64xf32>
    %c1_111 = arith.constant 1 : index
    %c0_112 = arith.constant 0 : index
    %c0_113 = arith.constant 0 : index
    %89 = vector.load %arg4[%c1_111, %c0_112, %c0_113] : memref<9x64x64xf32, #tpu.memory_space<vmem>>, vector<1x64x64xf32>
    %90 = vector.shape_cast %89 : vector<1x64x64xf32> to vector<64x64xf32>
    %cst_114 = arith.constant dense<0.000000e+00> : vector<256x64xf32>
    %91 = tpu.matmul %88, %90, %cst_114 {dimension_numbers = #tpu.dot_dimension_numbers<[1], [0], [0], [1], [0, 0, 1, 1], [], []>} : vector<256x64xf32>, vector<64x64xf32>, vector<256x64xf32> -> vector<256x64xf32>
    %92 = arith.addf %86, %91 : vector<256x64xf32>
    %c0_115 = arith.constant 0 : index
    %c2_116 = arith.constant 2 : index
    %c0_117 = arith.constant 0 : index
    %93 = vector.load %arg7[%c0_115, %c2_116, %c0_117] : memref<18x18x64xf32, #tpu.memory_space<vmem>>, vector<16x16x64xf32>
    %94 = vector.shape_cast %93 : vector<16x16x64xf32> to vector<256x64xf32>
    %c2_118 = arith.constant 2 : index
    %c0_119 = arith.constant 0 : index
    %c0_120 = arith.constant 0 : index
    %95 = vector.load %arg4[%c2_118, %c0_119, %c0_120] : memref<9x64x64xf32, #tpu.memory_space<vmem>>, vector<1x64x64xf32>
    %96 = vector.shape_cast %95 : vector<1x64x64xf32> to vector<64x64xf32>
    %cst_121 = arith.constant dense<0.000000e+00> : vector<256x64xf32>
    %97 = tpu.matmul %94, %96, %cst_121 {dimension_numbers = #tpu.dot_dimension_numbers<[1], [0], [0], [1], [0, 0, 1, 1], [], []>} : vector<256x64xf32>, vector<64x64xf32>, vector<256x64xf32> -> vector<256x64xf32>
    %98 = arith.addf %92, %97 : vector<256x64xf32>
    %c1_122 = arith.constant 1 : index
    %c0_123 = arith.constant 0 : index
    %c0_124 = arith.constant 0 : index
    %99 = vector.load %arg7[%c1_122, %c0_123, %c0_124] : memref<18x18x64xf32, #tpu.memory_space<vmem>>, vector<16x16x64xf32>
    %100 = vector.shape_cast %99 : vector<16x16x64xf32> to vector<256x64xf32>
    %c3_125 = arith.constant 3 : index
    %c0_126 = arith.constant 0 : index
    %c0_127 = arith.constant 0 : index
    %101 = vector.load %arg4[%c3_125, %c0_126, %c0_127] : memref<9x64x64xf32, #tpu.memory_space<vmem>>, vector<1x64x64xf32>
    %102 = vector.shape_cast %101 : vector<1x64x64xf32> to vector<64x64xf32>
    %cst_128 = arith.constant dense<0.000000e+00> : vector<256x64xf32>
    %103 = tpu.matmul %100, %102, %cst_128 {dimension_numbers = #tpu.dot_dimension_numbers<[1], [0], [0], [1], [0, 0, 1, 1], [], []>} : vector<256x64xf32>, vector<64x64xf32>, vector<256x64xf32> -> vector<256x64xf32>
    %104 = arith.addf %98, %103 : vector<256x64xf32>
    %c1_129 = arith.constant 1 : index
    %c1_130 = arith.constant 1 : index
    %c0_131 = arith.constant 0 : index
    %105 = vector.load %arg7[%c1_129, %c1_130, %c0_131] : memref<18x18x64xf32, #tpu.memory_space<vmem>>, vector<16x16x64xf32>
    %106 = vector.shape_cast %105 : vector<16x16x64xf32> to vector<256x64xf32>
    %c4_132 = arith.constant 4 : index
    %c0_133 = arith.constant 0 : index
    %c0_134 = arith.constant 0 : index
    %107 = vector.load %arg4[%c4_132, %c0_133, %c0_134] : memref<9x64x64xf32, #tpu.memory_space<vmem>>, vector<1x64x64xf32>
    %108 = vector.shape_cast %107 : vector<1x64x64xf32> to vector<64x64xf32>
    %cst_135 = arith.constant dense<0.000000e+00> : vector<256x64xf32>
    %109 = tpu.matmul %106, %108, %cst_135 {dimension_numbers = #tpu.dot_dimension_numbers<[1], [0], [0], [1], [0, 0, 1, 1], [], []>} : vector<256x64xf32>, vector<64x64xf32>, vector<256x64xf32> -> vector<256x64xf32>
    %110 = arith.addf %104, %109 : vector<256x64xf32>
    %c1_136 = arith.constant 1 : index
    %c2_137 = arith.constant 2 : index
    %c0_138 = arith.constant 0 : index
    %111 = vector.load %arg7[%c1_136, %c2_137, %c0_138] : memref<18x18x64xf32, #tpu.memory_space<vmem>>, vector<16x16x64xf32>
    %112 = vector.shape_cast %111 : vector<16x16x64xf32> to vector<256x64xf32>
    %c5_139 = arith.constant 5 : index
    %c0_140 = arith.constant 0 : index
    %c0_141 = arith.constant 0 : index
    %113 = vector.load %arg4[%c5_139, %c0_140, %c0_141] : memref<9x64x64xf32, #tpu.memory_space<vmem>>, vector<1x64x64xf32>
    %114 = vector.shape_cast %113 : vector<1x64x64xf32> to vector<64x64xf32>
    %cst_142 = arith.constant dense<0.000000e+00> : vector<256x64xf32>
    %115 = tpu.matmul %112, %114, %cst_142 {dimension_numbers = #tpu.dot_dimension_numbers<[1], [0], [0], [1], [0, 0, 1, 1], [], []>} : vector<256x64xf32>, vector<64x64xf32>, vector<256x64xf32> -> vector<256x64xf32>
    %116 = arith.addf %110, %115 : vector<256x64xf32>
    %c2_143 = arith.constant 2 : index
    %c0_144 = arith.constant 0 : index
    %c0_145 = arith.constant 0 : index
    %117 = vector.load %arg7[%c2_143, %c0_144, %c0_145] : memref<18x18x64xf32, #tpu.memory_space<vmem>>, vector<16x16x64xf32>
    %118 = vector.shape_cast %117 : vector<16x16x64xf32> to vector<256x64xf32>
    %c6_146 = arith.constant 6 : index
    %c0_147 = arith.constant 0 : index
    %c0_148 = arith.constant 0 : index
    %119 = vector.load %arg4[%c6_146, %c0_147, %c0_148] : memref<9x64x64xf32, #tpu.memory_space<vmem>>, vector<1x64x64xf32>
    %120 = vector.shape_cast %119 : vector<1x64x64xf32> to vector<64x64xf32>
    %cst_149 = arith.constant dense<0.000000e+00> : vector<256x64xf32>
    %121 = tpu.matmul %118, %120, %cst_149 {dimension_numbers = #tpu.dot_dimension_numbers<[1], [0], [0], [1], [0, 0, 1, 1], [], []>} : vector<256x64xf32>, vector<64x64xf32>, vector<256x64xf32> -> vector<256x64xf32>
    %122 = arith.addf %116, %121 : vector<256x64xf32>
    %c2_150 = arith.constant 2 : index
    %c1_151 = arith.constant 1 : index
    %c0_152 = arith.constant 0 : index
    %123 = vector.load %arg7[%c2_150, %c1_151, %c0_152] : memref<18x18x64xf32, #tpu.memory_space<vmem>>, vector<16x16x64xf32>
    %124 = vector.shape_cast %123 : vector<16x16x64xf32> to vector<256x64xf32>
    %c7_153 = arith.constant 7 : index
    %c0_154 = arith.constant 0 : index
    %c0_155 = arith.constant 0 : index
    %125 = vector.load %arg4[%c7_153, %c0_154, %c0_155] : memref<9x64x64xf32, #tpu.memory_space<vmem>>, vector<1x64x64xf32>
    %126 = vector.shape_cast %125 : vector<1x64x64xf32> to vector<64x64xf32>
    %cst_156 = arith.constant dense<0.000000e+00> : vector<256x64xf32>
    %127 = tpu.matmul %124, %126, %cst_156 {dimension_numbers = #tpu.dot_dimension_numbers<[1], [0], [0], [1], [0, 0, 1, 1], [], []>} : vector<256x64xf32>, vector<64x64xf32>, vector<256x64xf32> -> vector<256x64xf32>
    %128 = arith.addf %122, %127 : vector<256x64xf32>
    %c2_157 = arith.constant 2 : index
    %c2_158 = arith.constant 2 : index
    %c0_159 = arith.constant 0 : index
    %129 = vector.load %arg7[%c2_157, %c2_158, %c0_159] : memref<18x18x64xf32, #tpu.memory_space<vmem>>, vector<16x16x64xf32>
    %130 = vector.shape_cast %129 : vector<16x16x64xf32> to vector<256x64xf32>
    %c8_160 = arith.constant 8 : index
    %c0_161 = arith.constant 0 : index
    %c0_162 = arith.constant 0 : index
    %131 = vector.load %arg4[%c8_160, %c0_161, %c0_162] : memref<9x64x64xf32, #tpu.memory_space<vmem>>, vector<1x64x64xf32>
    %132 = vector.shape_cast %131 : vector<1x64x64xf32> to vector<64x64xf32>
    %cst_163 = arith.constant dense<0.000000e+00> : vector<256x64xf32>
    %133 = tpu.matmul %130, %132, %cst_163 {dimension_numbers = #tpu.dot_dimension_numbers<[1], [0], [0], [1], [0, 0, 1, 1], [], []>} : vector<256x64xf32>, vector<64x64xf32>, vector<256x64xf32> -> vector<256x64xf32>
    %134 = arith.addf %128, %133 : vector<256x64xf32>
    %c0_164 = arith.constant 0 : index
    %c0_165 = arith.constant 0 : index
    %135 = vector.load %arg5[%c0_164, %c0_165] : memref<1x64xf32, #tpu.memory_space<vmem>>, vector<1x64xf32>
    %136 = vector.broadcast %135 : vector<1x64xf32> to vector<256x64xf32>
    %137 = arith.addf %134, %136 : vector<256x64xf32>
    %138 = vector.shape_cast %1 : vector<16x16x64xf32> to vector<256x64xf32>
    %139 = arith.addf %137, %138 : vector<256x64xf32>
    %cst_166 = arith.constant 0.000000e+00 : f32
    %140 = vector.broadcast %cst_166 : f32 to vector<256x64xf32>
    %141 = arith.cmpf oge, %139, %140 : vector<256x64xf32>
    %cst_167 = arith.constant 2.000000e-01 : f32
    %142 = vector.broadcast %cst_167 : f32 to vector<256x64xf32>
    %143 = arith.mulf %142, %139 : vector<256x64xf32>
    %144 = arith.select %141, %139, %143 : vector<256x64xi1>, vector<256x64xf32>
    %145 = vector.shape_cast %144 : vector<256x64xf32> to vector<16x16x64xf32>
    %c0_168 = arith.constant 0 : index
    %c0_169 = arith.constant 0 : index
    %c0_170 = arith.constant 0 : index
    %c0_171 = arith.constant 0 : index
    %146 = vector.load %arg6[%c0_168, %c0_169, %c0_170, %c0_171] : memref<1x16x16x64xf32, #tpu.memory_space<vmem>>, vector<1x16x16x64xf32>
    %147 = vector.shape_cast %146 : vector<1x16x16x64xf32> to vector<16x16x64xf32>
    %148 = vector.shape_cast %145 : vector<16x16x64xf32> to vector<1x16x16x64xf32>
    tpu.vector_store %arg6[%c0_168, %c0_169, %c0_170, %c0_171], %148 {strides = array<i32>} : memref<1x16x16x64xf32, #tpu.memory_space<vmem>>, vector<1x16x16x64xf32>,
    return
  }
  func.func @transform_0(%arg0: i32) -> (i32, i32, i32, i32) {
    %c0_i32 = arith.constant 0 : i32
    %c0_i32_0 = arith.constant 0 : i32
    %c0_i32_1 = arith.constant 0 : i32
    %c0_i32_2 = arith.constant 0 : i32
    return %arg0, %c0_i32, %c0_i32_0, %c0_i32_1 : i32, i32, i32, i32
  }
  func.func @transform_1(%arg0: i32) -> (i32, i32, i32) {
    %c0_i32 = arith.constant 0 : i32
    %c0_i32_0 = arith.constant 0 : i32
    %c0_i32_1 = arith.constant 0 : i32
    %c0_i32_2 = arith.constant 0 : i32
    return %c0_i32, %c0_i32_0, %c0_i32_1 : i32, i32, i32
  }
  func.func @transform_2(%arg0: i32) -> (i32, i32) {
    %c0_i32 = arith.constant 0 : i32
    %c0_i32_0 = arith.constant 0 : i32
    %c0_i32_1 = arith.constant 0 : i32
    return %c0_i32, %c0_i32_0 : i32, i32
  }
  func.func @transform_3(%arg0: i32) -> (i32, i32, i32) {
    %c0_i32 = arith.constant 0 : i32
    %c0_i32_0 = arith.constant 0 : i32
    %c0_i32_1 = arith.constant 0 : i32
    %c0_i32_2 = arith.constant 0 : i32
    return %c0_i32, %c0_i32_0, %c0_i32_1 : i32, i32, i32
  }
  func.func @transform_4(%arg0: i32) -> (i32, i32) {
    %c0_i32 = arith.constant 0 : i32
    %c0_i32_0 = arith.constant 0 : i32
    %c0_i32_1 = arith.constant 0 : i32
    return %c0_i32, %c0_i32_0 : i32, i32
  }
  func.func @transform_5(%arg0: i32) -> (i32, i32, i32, i32) {
    %c0_i32 = arith.constant 0 : i32
    %c0_i32_0 = arith.constant 0 : i32
    %c0_i32_1 = arith.constant 0 : i32
    %c0_i32_2 = arith.constant 0 : i32
    return %arg0, %c0_i32, %c0_i32_0, %c0_i32_1 : i32, i32, i32, i32
  }
}

</mosaic_0001>

<llo_original>
// kernel: resblock_forward.1
$region0: #{resblock_forward.1}
  #allocation0 [shape = 'u32[]', space=smem, size = 0x4, offset = 0x4, fixed_abs, tag = 'smem constant byte address 0x4 - core index']
  #allocation1 [shape = 'u32[72,128]{1,0:T(1,128)}', space=vmem, size = 0x9000, scoped, tag = 'internal scratch']
  #allocation2 [shape = 'f32[18,18,64]{2,1,0:T(8,128)}', space=vmem, size = 0x36000, scoped, tag = 'scratch operand']
  %s0 = inlined_call_operand.vmem [shape: f32[2,16,16,64], index: 0, kind: input, shape index: {}]
  %s1 = inlined_call_operand.vmem [shape: f32[9,64,64], index: 1, kind: input, shape index: {}]
  %s2 = inlined_call_operand.vmem [shape: f32[1,64], index: 2, kind: input, shape index: {}]
  %s3 = inlined_call_operand.vmem [shape: f32[9,64,64], index: 3, kind: input, shape index: {}]
  %s4 = inlined_call_operand.vmem [shape: f32[1,64], index: 4, kind: input, shape index: {}]
  %s5 = inlined_call_operand.hbm [shape: f32[2,16,16,64], index: 5, kind: output, shape index: {}]
  %s6 = sld [smem:[#allocation0]]
  $region53: #{resblock_forward.1} parent=0
    _
  %s8 = ssub.s32 1, %s6
  %s9 = scalar_select 0, %s8, %s6
  $region1: #{resblock_forward.1} parent=0
    #allocation3 [shape = 'u8[262144]{0}', space=vmem, size = 0x40000, scoped, tag = 'output window, operand 0']
    #allocation4 [shape = 's32[2]{0}', space=sflag, size = 0x8, scoped, tag = 'scoped memory for resblock_forward.1']
    %10 = vsyncpa [#allocation4], 0
    %s11 = scalar_lea.sflag [#allocation4], 1
    %12 = vsyncpa %s11, 0
    loop: start=0, step=1, limit=4
    $region2: #{resblock_forward.1} parent=1 // loop_pre_header
      _
    $region3: #{resblock_forward.1} parent=1 // loop_header
      %s14 = sphi 0, %s18
      %p15 = scmp.ge.s32.totalorder %s14, 4
      %s24 = sphi 0, %s26
      %s27 = sphi 0, %s24
      %s28 = sphi 0, %s27
      %s44 = sphi 0, %s28
      %s48 = sphi 0, %s48
      %s50 = sphi 0, %s48
      %s51 = sphi 0, %s50
      %s65 = sphi 0, %s51
      %s69 = sphi 0, %s69
      %s71 = sphi 0, %s69
      %s72 = sphi 0, %s71
      %s86 = sphi 0, %s72
      %s90 = sphi 0, %s90
      %s92 = sphi 0, %s90
      %s93 = sphi 0, %s92
      %s107 = sphi 0, %s93
      %s111 = sphi 0, %s111
      %s113 = sphi 0, %s111
      %s114 = sphi 0, %s113
      %s128 = sphi 0, %s114
      %s134 = sphi 0, %s136
      %s137 = sphi 0, %s134
      %s138 = sphi 0, %s137
      %s154 = sphi 0, %s138
    $region4: #{resblock_forward.1} parent=1 // loop_header_branch
      %17 = sbr.rel (%p15) target = $region8
    $region5: #{resblock_forward.1} parent=1 // loop_body
      %s19 = ssub.s32 %s14, 1
      %s20 = ssub.s32 %s14, 2
      %s21 = sadd.s32 %s14, 1
      %s22 = ssub.s32 %s14, %s21
      %p23 = scmp.eq.s32.totalorder %s22, 0
      %s25 = sadd.s32 %s24, 1
      %s26 = scalar_select %p23, %s24, %s25
      %p29 = pneg %p23
      %p30 = scmp.eq.s32.totalorder %s14, 1
      %p31 = por %p29, %p30
      %p32 = scmp.ne.s32.totalorder %s24, %s27
      %p33 = scmp.eq.s32.totalorder %s14, 0
      %p34 = por %p32, %p33
      %p35 = scmp.ne.s32.totalorder %s24, %s27
      %p36 = scmp.eq.s32.totalorder %s19, 1
      %p37 = por %p35, %p36
      %p38 = scmp.ne.s32.totalorder %s27, %s28
      %p39 = scmp.eq.s32.totalorder %s19, 0
      %p40 = por %p38, %p39
      %p41 = scmp.ne.s32.totalorder %s27, %s28
      %p42 = scmp.eq.s32.totalorder %s20, 1
      %p43 = por %p41, %p42
      %p45 = scmp.ne.s32.totalorder %s28, %s44
      %p46 = scmp.eq.s32.totalorder %s20, 0
      %p47 = por %p45, %p46
      %s49 = sadd.s32 %s48, 1
      %p52 = scmp.eq.s32.totalorder %s14, 1
      %p53 = scmp.ne.s32.totalorder %s48, %s50
      %p54 = scmp.eq.s32.totalorder %s14, 0
      %p55 = por %p53, %p54
      %p56 = scmp.ne.s32.totalorder %s48, %s50
      %p57 = scmp.eq.s32.totalorder %s19, 1
      %p58 = por %p56, %p57
      %p59 = scmp.ne.s32.totalorder %s50, %s51
      %p60 = scmp.eq.s32.totalorder %s19, 0
      %p61 = por %p59, %p60
      %p62 = scmp.ne.s32.totalorder %s50, %s51
      %p63 = scmp.eq.s32.totalorder %s20, 1
      %p64 = por %p62, %p63
      %p66 = scmp.ne.s32.totalorder %s51, %s65
      %p67 = scmp.eq.s32.totalorder %s20, 0
      %p68 = por %p66, %p67
      %s70 = sadd.s32 %s69, 1
      %p73 = scmp.eq.s32.totalorder %s14, 1
      %p74 = scmp.ne.s32.totalorder %s69, %s71
      %p75 = scmp.eq.s32.totalorder %s14, 0
      %p76 = por %p74, %p75
      %p77 = scmp.ne.s32.totalorder %s69, %s71
      %p78 = scmp.eq.s32.totalorder %s19, 1
      %p79 = por %p77, %p78
      %p80 = scmp.ne.s32.totalorder %s71, %s72
      %p81 = scmp.eq.s32.totalorder %s19, 0
      %p82 = por %p80, %p81
      %p83 = scmp.ne.s32.totalorder %s71, %s72
      %p84 = scmp.eq.s32.totalorder %s20, 1
      %p85 = por %p83, %p84
      %p87 = scmp.ne.s32.totalorder %s72, %s86
      %p88 = scmp.eq.s32.totalorder %s20, 0
      %p89 = por %p87, %p88
      %s91 = sadd.s32 %s90, 1
      %p94 = scmp.eq.s32.totalorder %s14, 1
      %p95 = scmp.ne.s32.totalorder %s90, %s92
      %p96 = scmp.eq.s32.totalorder %s14, 0
      %p97 = por %p95, %p96
      %p98 = scmp.ne.s32.totalorder %s90, %s92
      %p99 = scmp.eq.s32.totalorder %s19, 1
      %p100 = por %p98, %p99
      %p101 = scmp.ne.s32.totalorder %s92, %s93
      %p102 = scmp.eq.s32.totalorder %s19, 0
      %p103 = por %p101, %p102
      %p104 = scmp.ne.s32.totalorder %s92, %s93
      %p105 = scmp.eq.s32.totalorder %s20, 1
      %p106 = por %p104, %p105
      %p108 = scmp.ne.s32.totalorder %s93, %s107
      %p109 = scmp.eq.s32.totalorder %s20, 0
      %p110 = por %p108, %p109
      %s112 = sadd.s32 %s111, 1
      %p115 = scmp.eq.s32.totalorder %s14, 1
      %p116 = scmp.ne.s32.totalorder %s111, %s113
      %p117 = scmp.eq.s32.totalorder %s14, 0
      %p118 = por %p116, %p117
      %p119 = scmp.ne.s32.totalorder %s111, %s113
      %p120 = scmp.eq.s32.totalorder %s19, 1
      %p121 = por %p119, %p120
      %p122 = scmp.ne.s32.totalorder %s113, %s114
      %p123 = scmp.eq.s32.totalorder %s19, 0
      %p124 = por %p122, %p123
      %p125 = scmp.ne.s32.totalorder %s113, %s114
      %p126 = scmp.eq.s32.totalorder %s20, 1
      %p127 = por %p125, %p126
      %p129 = scmp.ne.s32.totalorder %s114, %s128
      %p130 = scmp.eq.s32.totalorder %s20, 0
      %p131 = por %p129, %p130
      %s132 = ssub.s32 %s14, %s21
      %p133 = scmp.eq.s32.totalorder %s132, 0
      %s135 = sadd.s32 %s134, 1
      %s136 = scalar_select %p133, %s134, %s135
      %p139 = pneg %p133
      %p140 = scmp.eq.s32.totalorder %s14, 1
      %p141 = por %p139, %p140
      %p142 = scmp.ne.s32.totalorder %s134, %s137
      %p143 = scmp.eq.s32.totalorder %s14, 0
      %p144 = por %p142, %p143
      %p145 = scmp.ne.s32.totalorder %s134, %s137
      %p146 = scmp.eq.s32.totalorder %s19, 1
      %p147 = por %p145, %p146
      %p148 = scmp.ne.s32.totalorder %s137, %s138
      %p149 = scmp.eq.s32.totalorder %s19, 0
      %p150 = por %p148, %p149
      %p151 = scmp.ne.s32.totalorder %s137, %s138
      %p152 = scmp.eq.s32.totalorder %s20, 1
      %p153 = por %p151, %p152
      %p155 = scmp.ne.s32.totalorder %s138, %s154
      %p156 = scmp.eq.s32.totalorder %s20, 0
      %p157 = por %p155, %p156
      %p158 = scmp.le.s32.totalorder 1, %s14
      %p159 = scmp.lt.s32.totalorder %s14, 3
      %p160 = pnand %p158, %p159
      %p161 = pneg %p160
      // Predicated region
      $region9: #{resblock_forward.1} parent=5 // pred_check
        _
      $region10: #{resblock_forward.1} parent=5 // pred_check_branch
        %163 = sbr.rel (%p160) target = $region12
      $region11: #{resblock_forward.1} parent=5 // pred_region
        %s164 = ssub.s32 %s14, 1
        // Predicated region
        $region13: #{resblock_forward.1} parent=11 // pred_check
          %p165 = pneg %p61
        $region14: #{resblock_forward.1} parent=11 // pred_check_branch
          %167 = sbr.rel (%p165) target = $region16
        $region15: #{resblock_forward.1} parent=11 // pred_region
          _
        $region16: #{resblock_forward.1} parent=11 // pred_fallthru
          _
        // Predicated region
        $region17: #{resblock_forward.1} parent=11 // pred_check
          %p168 = pneg %p82
        $region18: #{resblock_forward.1} parent=11 // pred_check_branch
          %170 = sbr.rel (%p168) target = $region20
        $region19: #{resblock_forward.1} parent=11 // pred_region
          _
        $region20: #{resblock_forward.1} parent=11 // pred_fallthru
          _
        // Predicated region
        $region21: #{resblock_forward.1} parent=11 // pred_check
          %p171 = pneg %p103
        $region22: #{resblock_forward.1} parent=11 // pred_check_branch
          %173 = sbr.rel (%p171) target = $region24
        $region23: #{resblock_forward.1} parent=11 // pred_region
          _
        $region24: #{resblock_forward.1} parent=11 // pred_fallthru
          _
        // Predicated region
        $region25: #{resblock_forward.1} parent=11 // pred_check
          %p174 = pneg %p124
        $region26: #{resblock_forward.1} parent=11 // pred_check_branch
          %176 = sbr.rel (%p174) target = $region28
        $region27: #{resblock_forward.1} parent=11 // pred_region
          _
        $region28: #{resblock_forward.1} parent=11 // pred_fallthru
          _
      $region12: #{resblock_forward.1} parent=5 // pred_fallthru
        _
      %p177 = scmp.lt.s32.totalorder %s14, 2
      // Predicated region
      $region29: #{resblock_forward.1} parent=5 // pred_check
        %p178 = pneg %p177
      $region30: #{resblock_forward.1} parent=5 // pred_check_branch
        %180 = sbr.rel (%p178) target = $region32
      $region31: #{resblock_forward.1} parent=5 // pred_region
        // Predicated region
        $region33: #{resblock_forward.1} parent=31 // pred_check
          %p181 = pneg %p34
        $region34: #{resblock_forward.1} parent=31 // pred_check_branch
          %183 = sbr.rel (%p181) target = $region36
        $region35: #{resblock_forward.1} parent=31 // pred_region
          %p184 = scmp.lt.s32.totalorder %s14, 1
          %s185 = scalar_select %p184, %s14, 1
          %s186 = smul.addr %s185, 32
          %s187 = smul.addr %s186, 8
          %s188 = scalar_lea.vmem %s0, %s187
        $region36: #{resblock_forward.1} parent=31 // pred_fallthru
          _
      $region32: #{resblock_forward.1} parent=5 // pred_fallthru
        _
      %p189 = scmp.le.s32.totalorder 1, %s14
      %p190 = scmp.lt.s32.totalorder %s14, 3
      %p191 = pnand %p189, %p190
      %p192 = pneg %p191
      // Predicated region
      $region37: #{resblock_forward.1} parent=5 // pred_check
        _
      $region38: #{resblock_forward.1} parent=5 // pred_check_branch
        %194 = sbr.rel (%p191) target = $region40
      $region39: #{resblock_forward.1} parent=5 // pred_region
        %s195 = ssub.s32 %s14, 1
        %p196 = scmp.lt.s32.totalorder %s19, 1
        %s197 = scalar_select %p196, %s19, 1
        %s198 = smul.addr %s197, 32
        %s199 = smul.addr %s198, 8
        %s200 = scalar_lea.vmem %s0, %s199
        %p201 = pneg %p40
        %p202 = pneg %p37
        %p203 = pneg %p61
        %p204 = pneg %p58
        %p205 = pneg %p82
        %p206 = pneg %p79
        %p207 = pneg %p103
        %p208 = pneg %p100
        %p209 = pneg %p124
        %p210 = pneg %p121
        %p211 = pneg %p150
        %p212 = pneg %p147
        %s213 = sand.u32 %s137, 1
        %s214 = scalar_lea.sflag [#allocation4], %s213
        %s215 = sand.u32 %s137, 1
        %s216 = smul.addr %s215, 256
        %s217 = scalar_lea.vmem [#allocation3], %s216
        %p218 = scmp.lt.s32.totalorder %s19, 1
        %s219 = scalar_select %p218, %s19, 1
        %s220 = smul.addr %s219, 32
        %s221 = smul.addr %s220, 8
        %s222 = scalar_lea.vmem %s0, %s221
        %v223 = vld [vmem:[%s222] sm:$0xff]
        %v224 = vld [vmem:[%s222 + $0x8] sm:$0xff]
        %v225 = vld [vmem:[%s222 + $0x10] sm:$0xff]
        %v226 = vld [vmem:[%s222 + $0x18] sm:$0xff]
        %v227 = vld [vmem:[%s222 + $0x20] sm:$0xff]
        %v228 = vld [vmem:[%s222 + $0x28] sm:$0xff]
        %v229 = vld [vmem:[%s222 + $0x30] sm:$0xff]
        %v230 = vld [vmem:[%s222 + $0x38] sm:$0xff]
        %v231 = vld [vmem:[%s222 + $0x40] sm:$0xff]
        %v232 = vld [vmem:[%s222 + $0x48] sm:$0xff]
        %v233 = vld [vmem:[%s222 + $0x50] sm:$0xff]
        %v234 = vld [vmem:[%s222 + $0x58] sm:$0xff]
        %v235 = vld [vmem:[%s222 + $0x60] sm:$0xff]
        %v236 = vld [vmem:[%s222 + $0x68] sm:$0xff]
        %v237 = vld [vmem:[%s222 + $0x70] sm:$0xff]
        %v238 = vld [vmem:[%s222 + $0x78] sm:$0xff]
        %v239 = vld [vmem:[%s222 + $0x80] sm:$0xff]
        %v240 = vld [vmem:[%s222 + $0x88] sm:$0xff]
        %v241 = vld [vmem:[%s222 + $0x90] sm:$0xff]
        %v242 = vld [vmem:[%s222 + $0x98] sm:$0xff]
        %v243 = vld [vmem:[%s222 + $0xa0] sm:$0xff]
        %v244 = vld [vmem:[%s222 + $0xa8] sm:$0xff]
        %v245 = vld [vmem:[%s222 + $0xb0] sm:$0xff]
        %v246 = vld [vmem:[%s222 + $0xb8] sm:$0xff]
        %v247 = vld [vmem:[%s222 + $0xc0] sm:$0xff]
        %v248 = vld [vmem:[%s222 + $0xc8] sm:$0xff]
        %v249 = vld [vmem:[%s222 + $0xd0] sm:$0xff]
        %v250 = vld [vmem:[%s222 + $0xd8] sm:$0xff]
        %v251 = vld [vmem:[%s222 + $0xe0] sm:$0xff]
        %v252 = vld [vmem:[%s222 + $0xe8] sm:$0xff]
        %v253 = vld [vmem:[%s222 + $0xf0] sm:$0xff]
        %v254 = vld [vmem:[%s222 + $0xf8] sm:$0xff]
        %s255 = scalar_lea.vmem [#allocation2], 24
        %vm256 = vcmask 523264
        %257 = vst.msk [vmem:[%s255 + $0x1] sm:$0xff] %vm256, %v223
        %258 = vst.msk [vmem:[%s255 + $0x9] sm:$0xff] %vm256, %v224
        %259 = vst.msk [vmem:[%s255 + $0x19] sm:$0xff] %vm256, %v225
        %260 = vst.msk [vmem:[%s255 + $0x21] sm:$0xff] %vm256, %v226
        %261 = vst.msk [vmem:[%s255 + $0x31] sm:$0xff] %vm256, %v227
        %262 = vst.msk [vmem:[%s255 + $0x39] sm:$0xff] %vm256, %v228
        %263 = vst.msk [vmem:[%s255 + $0x49] sm:$0xff] %vm256, %v229
        %264 = vst.msk [vmem:[%s255 + $0x51] sm:$0xff] %vm256, %v230
        %265 = vst.msk [vmem:[%s255 + $0x61] sm:$0xff] %vm256, %v231
        %266 = vst.msk [vmem:[%s255 + $0x69] sm:$0xff] %vm256, %v232
        %267 = vst.msk [vmem:[%s255 + $0x79] sm:$0xff] %vm256, %v233
        %268 = vst.msk [vmem:[%s255 + $0x81] sm:$0xff] %vm256, %v234
        %269 = vst.msk [vmem:[%s255 + $0x91] sm:$0xff] %vm256, %v235
        %270 = vst.msk [vmem:[%s255 + $0x99] sm:$0xff] %vm256, %v236
        %271 = vst.msk [vmem:[%s255 + $0xa9] sm:$0xff] %vm256, %v237
        %272 = vst.msk [vmem:[%s255 + $0xb1] sm:$0xff] %vm256, %v238
        %273 = vst.msk [vmem:[%s255 + $0xc1] sm:$0xff] %vm256, %v239
        %274 = vst.msk [vmem:[%s255 + $0xc9] sm:$0xff] %vm256, %v240
        %275 = vst.msk [vmem:[%s255 + $0xd9] sm:$0xff] %vm256, %v241
        %276 = vst.msk [vmem:[%s255 + $0xe1] sm:$0xff] %vm256, %v242
        %277 = vst.msk [vmem:[%s255 + $0xf1] sm:$0xff] %vm256, %v243
        %278 = vst.msk [vmem:[%s255 + $0xf9] sm:$0xff] %vm256, %v244
        %279 = vst.msk [vmem:[%s255 + $0x109] sm:$0xff] %vm256, %v245
        %280 = vst.msk [vmem:[%s255 + $0x111] sm:$0xff] %vm256, %v246
        %281 = vst.msk [vmem:[%s255 + $0x121] sm:$0xff] %vm256, %v247
        %282 = vst.msk [vmem:[%s255 + $0x129] sm:$0xff] %vm256, %v248
        %283 = vst.msk [vmem:[%s255 + $0x139] sm:$0xff] %vm256, %v249
        %284 = vst.msk [vmem:[%s255 + $0x141] sm:$0xff] %vm256, %v250
        %285 = vst.msk [vmem:[%s255 + $0x151] sm:$0xff] %vm256, %v251
        %286 = vst.msk [vmem:[%s255 + $0x159] sm:$0xff] %vm256, %v252
        %287 = vst.msk [vmem:[%s255 + $0x169] sm:$0xff] %vm256, %v253
        %288 = vst.msk [vmem:[%s255 + $0x171] sm:$0xff] %vm256, %v254
        %289 = vst.msk [vmem:[#allocation2 + $0x1] sm:$0xff] %vm256, %v225
        %290 = vst.msk [vmem:[#allocation2 + $0x9] sm:$0xff] %vm256, %v226
        %s291 = scalar_lea.vmem [#allocation2], 408
        %292 = vst.msk [vmem:[%s291 + $0x1] sm:$0xff] %vm256, %v251
        %293 = vst.msk [vmem:[%s291 + $0x9] sm:$0xff] %vm256, %v252
        %v294 = vld [vmem:[#allocation2 + $0x2] sm:$0x1]
        %v295 = vld [vmem:[#allocation2 + $0x1a] sm:$0x1]
        %v296 = vld [vmem:[#allocation2 + $0x32] sm:$0x1]
        %v297 = vld [vmem:[#allocation2 + $0x4a] sm:$0x1]
        %v298 = vld [vmem:[#allocation2 + $0x62] sm:$0x1]
        %v299 = vld [vmem:[#allocation2 + $0x7a] sm:$0x1]
        %v300 = vld [vmem:[#allocation2 + $0x92] sm:$0x1]
        %v301 = vld [vmem:[#allocation2 + $0xaa] sm:$0x1]
        %v302 = vld [vmem:[#allocation2 + $0xc2] sm:$0x1]
        %v303 = vld [vmem:[#allocation2 + $0xda] sm:$0x1]
        %v304 = vld [vmem:[#allocation2 + $0xf2] sm:$0x1]
        %v305 = vld [vmem:[#allocation2 + $0x10a] sm:$0x1]
        %v306 = vld [vmem:[#allocation2 + $0x122] sm:$0x1]
        %v307 = vld [vmem:[#allocation2 + $0x13a] sm:$0x1]
        %v308 = vld [vmem:[#allocation2 + $0x152] sm:$0x1]
        %v309 = vld [vmem:[#allocation2 + $0x16a] sm:$0x1]
        %v310 = vld [vmem:[#allocation2 + $0x182] sm:$0x1]
        %v311 = vld [vmem:[#allocation2 + $0x19a] sm:$0x1]
        %vm312 = vcmask 516096
        %313 = vst.msk [vmem:[#allocation2] sm:$0x1] %vm312, %v294
        %314 = vst.msk [vmem:[#allocation2 + $0x18] sm:$0x1] %vm312, %v295
        %315 = vst.msk [vmem:[#allocation2 + $0x30] sm:$0x1] %vm312, %v296
        %316 = vst.msk [vmem:[#allocation2 + $0x48] sm:$0x1] %vm312, %v297
        %317 = vst.msk [vmem:[#allocation2 + $0x60] sm:$0x1] %vm312, %v298
        %318 = vst.msk [vmem:[#allocation2 + $0x78] sm:$0x1] %vm312, %v299
        %319 = vst.msk [vmem:[#allocation2 + $0x90] sm:$0x1] %vm312, %v300
        %320 = vst.msk [vmem:[#allocation2 + $0xa8] sm:$0x1] %vm312, %v301
        %321 = vst.msk [vmem:[#allocation2 + $0xc0] sm:$0x1] %vm312, %v302
        %322 = vst.msk [vmem:[#allocation2 + $0xd8] sm:$0x1] %vm312, %v303
        %323 = vst.msk [vmem:[#allocation2 + $0xf0] sm:$0x1] %vm312, %v304
        %324 = vst.msk [vmem:[#allocation2 + $0x108] sm:$0x1] %vm312, %v305
        %325 = vst.msk [vmem:[#allocation2 + $0x120] sm:$0x1] %vm312, %v306
        %326 = vst.msk [vmem:[#allocation2 + $0x138] sm:$0x1] %vm312, %v307
        %327 = vst.msk [vmem:[#allocation2 + $0x150] sm:$0x1] %vm312, %v308
        %328 = vst.msk [vmem:[#allocation2 + $0x168] sm:$0x1] %vm312, %v309
        %329 = vst.msk [vmem:[#allocation2 + $0x180] sm:$0x1] %vm312, %v310
        %330 = vst.msk [vmem:[#allocation2 + $0x198] sm:$0x1] %vm312, %v311
        %v331 = vld [vmem:[#allocation2 + $0xf] sm:$0x1]
        %v332 = vld [vmem:[#allocation2 + $0x27] sm:$0x1]
        %v333 = vld [vmem:[#allocation2 + $0x3f] sm:$0x1]
        %v334 = vld [vmem:[#allocation2 + $0x57] sm:$0x1]
        %v335 = vld [vmem:[#allocation2 + $0x6f] sm:$0x1]
        %v336 = vld [vmem:[#allocation2 + $0x87] sm:$0x1]
        %v337 = vld [vmem:[#allocation2 + $0x9f] sm:$0x1]
        %v338 = vld [vmem:[#allocation2 + $0xb7] sm:$0x1]
        %v339 = vld [vmem:[#allocation2 + $0xcf] sm:$0x1]
        %v340 = vld [vmem:[#allocation2 + $0xe7] sm:$0x1]
        %v341 = vld [vmem:[#allocation2 + $0xff] sm:$0x1]
        %v342 = vld [vmem:[#allocation2 + $0x117] sm:$0x1]
        %v343 = vld [vmem:[#allocation2 + $0x12f] sm:$0x1]
        %v344 = vld [vmem:[#allocation2 + $0x147] sm:$0x1]
        %v345 = vld [vmem:[#allocation2 + $0x15f] sm:$0x1]
        %v346 = vld [vmem:[#allocation2 + $0x177] sm:$0x1]
        %v347 = vld [vmem:[#allocation2 + $0x18f] sm:$0x1]
        %v348 = vld [vmem:[#allocation2 + $0x1a7] sm:$0x1]
        %349 = vst.msk [vmem:[#allocation2 + $0x11] sm:$0x1] %vm312, %v331
        %350 = vst.msk [vmem:[#allocation2 + $0x29] sm:$0x1] %vm312, %v332
        %351 = vst.msk [vmem:[#allocation2 + $0x41] sm:$0x1] %vm312, %v333
        %352 = vst.msk [vmem:[#allocation2 + $0x59] sm:$0x1] %vm312, %v334
        %353 = vst.msk [vmem:[#allocation2 + $0x71] sm:$0x1] %vm312, %v335
        %354 = vst.msk [vmem:[#allocation2 + $0x89] sm:$0x1] %vm312, %v336
        %355 = vst.msk [vmem:[#allocation2 + $0xa1] sm:$0x1] %vm312, %v337
        %356 = vst.msk [vmem:[#allocation2 + $0xb9] sm:$0x1] %vm312, %v338
        %357 = vst.msk [vmem:[#allocation2 + $0xd1] sm:$0x1] %vm312, %v339
        %358 = vst.msk [vmem:[#allocation2 + $0xe9] sm:$0x1] %vm312, %v340
        %359 = vst.msk [vmem:[#allocation2 + $0x101] sm:$0x1] %vm312, %v341
        %360 = vst.msk [vmem:[#allocation2 + $0x119] sm:$0x1] %vm312, %v342
        %361 = vst.msk [vmem:[#allocation2 + $0x131] sm:$0x1] %vm312, %v343
        %362 = vst.msk [vmem:[#allocation2 + $0x149] sm:$0x1] %vm312, %v344
        %363 = vst.msk [vmem:[#allocation2 + $0x161] sm:$0x1] %vm312, %v345
        %364 = vst.msk [vmem:[#allocation2 + $0x179] sm:$0x1] %vm312, %v346
        %365 = vst.msk [vmem:[#allocation2 + $0x191] sm:$0x1] %vm312, %v347
        %366 = vst.msk [vmem:[#allocation2 + $0x1a9] sm:$0x1] %vm312, %v348
        %v367 = vld [vmem:[#allocation2] sm:$0xff]
        %v368 = vld [vmem:[#allocation2 + $0x8] sm:$0xff]
        %v369 = vld [vmem:[#allocation2 + $0x18] sm:$0xff]
        %v370 = vld [vmem:[#allocation2 + $0x20] sm:$0xff]
        %v371 = vld [vmem:[#allocation2 + $0x30] sm:$0xff]
        %v372 = vld [vmem:[#allocation2 + $0x38] sm:$0xff]
        %v373 = vld [vmem:[#allocation2 + $0x48] sm:$0xff]
        %v374 = vld [vmem:[#allocation2 + $0x50] sm:$0xff]
        %v375 = vld [vmem:[#allocation2 + $0x60] sm:$0xff]
        %v376 = vld [vmem:[#allocation2 + $0x68] sm:$0xff]
        %v377 = vld [vmem:[#allocation2 + $0x78] sm:$0xff]
        %v378 = vld [vmem:[#allocation2 + $0x80] sm:$0xff]
        %v379 = vld [vmem:[#allocation2 + $0x90] sm:$0xff]
        %v380 = vld [vmem:[#allocation2 + $0x98] sm:$0xff]
        %v381 = vld [vmem:[#allocation2 + $0xa8] sm:$0xff]
        %v382 = vld [vmem:[#allocation2 + $0xb0] sm:$0xff]
        %v383 = vld [vmem:[#allocation2 + $0xc0] sm:$0xff]
        %v384 = vld [vmem:[#allocation2 + $0xc8] sm:$0xff]
        %v385 = vld [vmem:[#allocation2 + $0xd8] sm:$0xff]
        %v386 = vld [vmem:[#allocation2 + $0xe0] sm:$0xff]
        %v387 = vld [vmem:[#allocation2 + $0xf0] sm:$0xff]
        %v388 = vld [vmem:[#allocation2 + $0xf8] sm:$0xff]
        %v389 = vld [vmem:[#allocation2 + $0x108] sm:$0xff]
        %v390 = vld [vmem:[#allocation2 + $0x110] sm:$0xff]
        %v391 = vld [vmem:[#allocation2 + $0x120] sm:$0xff]
        %v392 = vld [vmem:[#allocation2 + $0x128] sm:$0xff]
        %v393 = vld [vmem:[#allocation2 + $0x138] sm:$0xff]
        %v394 = vld [vmem:[#allocation2 + $0x140] sm:$0xff]
        %v395 = vld [vmem:[#allocation2 + $0x150] sm:$0xff]
        %v396 = vld [vmem:[#allocation2 + $0x158] sm:$0xff]
        %v397 = vld [vmem:[#allocation2 + $0x168] sm:$0xff]
        %v398 = vld [vmem:[#allocation2 + $0x170] sm:$0xff]
        %v399 = vld [vmem:[%s1] sm:$0xff]
        %v400 = vld [vmem:[%s1 + $0x8] sm:$0xff]
        %v401 = vld [vmem:[%s1 + $0x10] sm:$0xff]
        %v402 = vld [vmem:[%s1 + $0x18] sm:$0xff]
        %v403 = vld [vmem:[%s1 + $0x20] sm:$0xff]
        %v404 = vld [vmem:[%s1 + $0x28] sm:$0xff]
        %v405 = vld [vmem:[%s1 + $0x30] sm:$0xff]
        %v406 = vld [vmem:[%s1 + $0x38] sm:$0xff]
        %v407 = vld [vmem:[#allocation2 + $0x1] sm:$0xff]
        %v408 = vld [vmem:[#allocation2 + $0x9] sm:$0xff]
        %v409 = vld [vmem:[#allocation2 + $0x19] sm:$0xff]
        %v410 = vld [vmem:[#allocation2 + $0x21] sm:$0xff]
        %v411 = vld [vmem:[#allocation2 + $0x31] sm:$0xff]
        %v412 = vld [vmem:[#allocation2 + $0x39] sm:$0xff]
        %v413 = vld [vmem:[#allocation2 + $0x49] sm:$0xff]
        %v414 = vld [vmem:[#allocation2 + $0x51] sm:$0xff]
        %v415 = vld [vmem:[#allocation2 + $0x61] sm:$0xff]
        %v416 = vld [vmem:[#allocation2 + $0x69] sm:$0xff]
        %v417 = vld [vmem:[#allocation2 + $0x79] sm:$0xff]
        %v418 = vld [vmem:[#allocation2 + $0x81] sm:$0xff]
        %v419 = vld [vmem:[#allocation2 + $0x91] sm:$0xff]
        %v420 = vld [vmem:[#allocation2 + $0x99] sm:$0xff]
        %v421 = vld [vmem:[#allocation2 + $0xa9] sm:$0xff]
        %v422 = vld [vmem:[#allocation2 + $0xb1] sm:$0xff]
        %v423 = vld [vmem:[#allocation2 + $0xc1] sm:$0xff]
        %v424 = vld [vmem:[#allocation2 + $0xc9] sm:$0xff]
        %v425 = vld [vmem:[#allocation2 + $0xd9] sm:$0xff]
        %v426 = vld [vmem:[#allocation2 + $0xe1] sm:$0xff]
        %v427 = vld [vmem:[#allocation2 + $0xf1] sm:$0xff]
        %v428 = vld [vmem:[#allocation2 + $0xf9] sm:$0xff]
        %v429 = vld [vmem:[#allocation2 + $0x109] sm:$0xff]
        %v430 = vld [vmem:[#allocation2 + $0x111] sm:$0xff]
        %v431 = vld [vmem:[#allocation2 + $0x121] sm:$0xff]
        %v432 = vld [vmem:[#allocation2 + $0x129] sm:$0xff]
        %v433 = vld [vmem:[#allocation2 + $0x139] sm:$0xff]
        %v434 = vld [vmem:[#allocation2 + $0x141] sm:$0xff]
        %v435 = vld [vmem:[#allocation2 + $0x151] sm:$0xff]
        %v436 = vld [vmem:[#allocation2 + $0x159] sm:$0xff]
        %v437 = vld [vmem:[#allocation2 + $0x169] sm:$0xff]
        %v438 = vld [vmem:[#allocation2 + $0x171] sm:$0xff]
        %s439 = scalar_lea.vmem %s1, 64
        %v440 = vld [vmem:[%s439] sm:$0xff]
        %v441 = vld [vmem:[%s439 + $0x8] sm:$0xff]
        %v442 = vld [vmem:[%s439 + $0x10] sm:$0xff]
        %v443 = vld [vmem:[%s439 + $0x18] sm:$0xff]
        %v444 = vld [vmem:[%s439 + $0x20] sm:$0xff]
        %v445 = vld [vmem:[%s439 + $0x28] sm:$0xff]
        %v446 = vld [vmem:[%s439 + $0x30] sm:$0xff]
        %v447 = vld [vmem:[%s439 + $0x38] sm:$0xff]
        %v449 = vsel %vm256, %v407, 0
        %v452 = vsel %vm256, %v408, 0
        %v455 = vsel %vm256, %v409, 0
        %v458 = vsel %vm256, %v410, 0
        %v461 = vsel %vm256, %v411, 0
        %v464 = vsel %vm256, %v412, 0
        %v467 = vsel %vm256, %v413, 0
        %v470 = vsel %vm256, %v414, 0
        %v473 = vsel %vm256, %v415, 0
        %v476 = vsel %vm256, %v416, 0
        %v479 = vsel %vm256, %v417, 0
        %v482 = vsel %vm256, %v418, 0
        %v485 = vsel %vm256, %v419, 0
        %v488 = vsel %vm256, %v420, 0
        %v491 = vsel %vm256, %v421, 0
        %v494 = vsel %vm256, %v422, 0
        %v497 = vsel %vm256, %v423, 0
        %v500 = vsel %vm256, %v424, 0
        %v503 = vsel %vm256, %v425, 0
        %v506 = vsel %vm256, %v426, 0
        %v509 = vsel %vm256, %v427, 0
        %v512 = vsel %vm256, %v428, 0
        %v515 = vsel %vm256, %v429, 0
        %v518 = vsel %vm256, %v430, 0
        %v521 = vsel %vm256, %v431, 0
        %v524 = vsel %vm256, %v432, 0
        %v527 = vsel %vm256, %v433, 0
        %v530 = vsel %vm256, %v434, 0
        %v533 = vsel %vm256, %v435, 0
        %v536 = vsel %vm256, %v436, 0
        %v539 = vsel %vm256, %v437, 0
        %v542 = vsel %vm256, %v438, 0
        %544 = vmatpush.msra.mxu0 0.0
        %545 = vmatpush.msra.mxu0 0.0
        %546 = vmatpush.msra.mxu0 0.0
        %547 = vmatpush.msra.mxu0 0.0
        %548 = vmatpush.msra.mxu0 0.0
        %549 = vmatpush.msra.mxu0 0.0
        %550 = vmatpush.msra.mxu0 0.0
        %551 = vmatpush.msra.mxu0 0.0
        %552 = vmatpush.msra.mxu0 %v447
        %553 = vmatpush.msra.mxu0 %v446
        %554 = vmatpush.msra.mxu0 %v445
        %555 = vmatpush.msra.mxu0 %v444
        %556 = vmatpush.msra.mxu0 %v443
        %557 = vmatpush.msra.mxu0 %v442
        %558 = vmatpush.msra.mxu0 %v441
        %559 = vmatpush.msra.mxu0 %v440
        %560 = vmatmul.f32.gmra.mxu0 %v449
        %v561 = vpop.f32.mrf.mxu0
        %v562 = vadd.f32 0.0, %v561
        %563 = vmatmul.f32.gmra.mxu0 %v452
        %v564 = vpop.f32.mrf.mxu0
        %v565 = vadd.f32 0.0, %v564
        %566 = vmatmul.f32.gmra.mxu0 %v455
        %v567 = vpop.f32.mrf.mxu0
        %v568 = vadd.f32 0.0, %v567
        %569 = vmatmul.f32.gmra.mxu0 %v458
        %v570 = vpop.f32.mrf.mxu0
        %v571 = vadd.f32 0.0, %v570
        %572 = vmatmul.f32.gmra.mxu0 %v461
        %v573 = vpop.f32.mrf.mxu0
        %v574 = vadd.f32 0.0, %v573
        %575 = vmatmul.f32.gmra.mxu0 %v464
        %v576 = vpop.f32.mrf.mxu0
        %v577 = vadd.f32 0.0, %v576
        %578 = vmatmul.f32.gmra.mxu0 %v467
        %v579 = vpop.f32.mrf.mxu0
        %v580 = vadd.f32 0.0, %v579
        %581 = vmatmul.f32.gmra.mxu0 %v470
        %v582 = vpop.f32.mrf.mxu0
        %v583 = vadd.f32 0.0, %v582
        %584 = vmatmul.f32.gmra.mxu0 %v473
        %v585 = vpop.f32.mrf.mxu0
        %v586 = vadd.f32 0.0, %v585
        %587 = vmatmul.f32.gmra.mxu0 %v476
        %v588 = vpop.f32.mrf.mxu0
        %v589 = vadd.f32 0.0, %v588
        %590 = vmatmul.f32.gmra.mxu0 %v479
        %v591 = vpop.f32.mrf.mxu0
        %v592 = vadd.f32 0.0, %v591
        %593 = vmatmul.f32.gmra.mxu0 %v482
        %v594 = vpop.f32.mrf.mxu0
        %v595 = vadd.f32 0.0, %v594
        %596 = vmatmul.f32.gmra.mxu0 %v485
        %v597 = vpop.f32.mrf.mxu0
        %v598 = vadd.f32 0.0, %v597
        %599 = vmatmul.f32.gmra.mxu0 %v488
        %v600 = vpop.f32.mrf.mxu0
        %v601 = vadd.f32 0.0, %v600
        %602 = vmatmul.f32.gmra.mxu0 %v491
        %v603 = vpop.f32.mrf.mxu0
        %v604 = vadd.f32 0.0, %v603
        %605 = vmatmul.f32.gmra.mxu0 %v494
        %v606 = vpop.f32.mrf.mxu0
        %v607 = vadd.f32 0.0, %v606
        %608 = vmatmul.f32.gmra.mxu0 %v497
        %v609 = vpop.f32.mrf.mxu0
        %v610 = vadd.f32 0.0, %v609
        %611 = vmatmul.f32.gmra.mxu0 %v500
        %v612 = vpop.f32.mrf.mxu0
        %v613 = vadd.f32 0.0, %v612
        %614 = vmatmul.f32.gmra.mxu0 %v503
        %v615 = vpop.f32.mrf.mxu0
        %v616 = vadd.f32 0.0, %v615
        %617 = vmatmul.f32.gmra.mxu0 %v506
        %v618 = vpop.f32.mrf.mxu0
        %v619 = vadd.f32 0.0, %v618
        %620 = vmatmul.f32.gmra.mxu0 %v509
        %v621 = vpop.f32.mrf.mxu0
        %v622 = vadd.f32 0.0, %v621
        %623 = vmatmul.f32.gmra.mxu0 %v512
        %v624 = vpop.f32.mrf.mxu0
        %v625 = vadd.f32 0.0, %v624
        %626 = vmatmul.f32.gmra.mxu0 %v515
        %v627 = vpop.f32.mrf.mxu0
        %v628 = vadd.f32 0.0, %v627
        %629 = vmatmul.f32.gmra.mxu0 %v518
        %v630 = vpop.f32.mrf.mxu0
        %v631 = vadd.f32 0.0, %v630
        %632 = vmatmul.f32.gmra.mxu0 %v521
        %v633 = vpop.f32.mrf.mxu0
        %v634 = vadd.f32 0.0, %v633
        %635 = vmatmul.f32.gmra.mxu0 %v524
        %v636 = vpop.f32.mrf.mxu0
        %v637 = vadd.f32 0.0, %v636
        %638 = vmatmul.f32.gmra.mxu0 %v527
        %v639 = vpop.f32.mrf.mxu0
        %v640 = vadd.f32 0.0, %v639
        %641 = vmatmul.f32.gmra.mxu0 %v530
        %v642 = vpop.f32.mrf.mxu0
        %v643 = vadd.f32 0.0, %v642
        %644 = vmatmul.f32.gmra.mxu0 %v533
        %v645 = vpop.f32.mrf.mxu0
        %v646 = vadd.f32 0.0, %v645
        %647 = vmatmul.f32.gmra.mxu0 %v536
        %v648 = vpop.f32.mrf.mxu0
        %v649 = vadd.f32 0.0, %v648
        %650 = vmatmul.f32.gmra.mxu0 %v539
        %v651 = vpop.f32.mrf.mxu0
        %v652 = vadd.f32 0.0, %v651
        %653 = vmatmul.f32.gmra.mxu0 %v542
        %v654 = vpop.f32.mrf.mxu0
        %v655 = vadd.f32 0.0, %v654
        %656 = vdwg.mxu0
        %v658 = vsel %vm256, %v367, 0
        %v661 = vsel %vm256, %v368, 0
        %v664 = vsel %vm256, %v369, 0
        %v667 = vsel %vm256, %v370, 0
        %v670 = vsel %vm256, %v371, 0
        %v673 = vsel %vm256, %v372, 0
        %v676 = vsel %vm256, %v373, 0
        %v679 = vsel %vm256, %v374, 0
        %v682 = vsel %vm256, %v375, 0
        %v685 = vsel %vm256, %v376, 0
        %v688 = vsel %vm256, %v377, 0
        %v691 = vsel %vm256, %v378, 0
        %v694 = vsel %vm256, %v379, 0
        %v697 = vsel %vm256, %v380, 0
        %v700 = vsel %vm256, %v381, 0
        %v703 = vsel %vm256, %v382, 0
        %v706 = vsel %vm256, %v383, 0
        %v709 = vsel %vm256, %v384, 0
        %v712 = vsel %vm256, %v385, 0
        %v715 = vsel %vm256, %v386, 0
        %v718 = vsel %vm256, %v387, 0
        %v721 = vsel %vm256, %v388, 0
        %v724 = vsel %vm256, %v389, 0
        %v727 = vsel %vm256, %v390, 0
        %v730 = vsel %vm256, %v391, 0
        %v733 = vsel %vm256, %v392, 0
        %v736 = vsel %vm256, %v393, 0
        %v739 = vsel %vm256, %v394, 0
        %v742 = vsel %vm256, %v395, 0
        %v745 = vsel %vm256, %v396, 0
        %v748 = vsel %vm256, %v397, 0
        %v751 = vsel %vm256, %v398, 0
        %753 = vmatpush.msra.mxu0 0.0
        %754 = vmatpush.msra.mxu0 0.0
        %755 = vmatpush.msra.mxu0 0.0
        %756 = vmatpush.msra.mxu0 0.0
        %757 = vmatpush.msra.mxu0 0.0
        %758 = vmatpush.msra.mxu0 0.0
        %759 = vmatpush.msra.mxu0 0.0
        %760 = vmatpush.msra.mxu0 0.0
        %761 = vmatpush.msra.mxu0 %v406
        %762 = vmatpush.msra.mxu0 %v405
        %763 = vmatpush.msra.mxu0 %v404
        %764 = vmatpush.msra.mxu0 %v403
        %765 = vmatpush.msra.mxu0 %v402
        %766 = vmatpush.msra.mxu0 %v401
        %767 = vmatpush.msra.mxu0 %v400
        %768 = vmatpush.msra.mxu0 %v399
        %769 = vmatmul.f32.gmra.mxu0 %v658
        %v770 = vpop.f32.mrf.mxu0
        %v771 = vadd.f32 %v562, %v770
        %772 = vmatmul.f32.gmra.mxu0 %v661
        %v773 = vpop.f32.mrf.mxu0
        %v774 = vadd.f32 %v565, %v773
        %775 = vmatmul.f32.gmra.mxu0 %v664
        %v776 = vpop.f32.mrf.mxu0
        %v777 = vadd.f32 %v568, %v776
        %778 = vmatmul.f32.gmra.mxu0 %v667
        %v779 = vpop.f32.mrf.mxu0
        %v780 = vadd.f32 %v571, %v779
        %781 = vmatmul.f32.gmra.mxu0 %v670
        %v782 = vpop.f32.mrf.mxu0
        %v783 = vadd.f32 %v574, %v782
        %784 = vmatmul.f32.gmra.mxu0 %v673
        %v785 = vpop.f32.mrf.mxu0
        %v786 = vadd.f32 %v577, %v785
        %787 = vmatmul.f32.gmra.mxu0 %v676
        %v788 = vpop.f32.mrf.mxu0
        %v789 = vadd.f32 %v580, %v788
        %790 = vmatmul.f32.gmra.mxu0 %v679
        %v791 = vpop.f32.mrf.mxu0
        %v792 = vadd.f32 %v583, %v791
        %793 = vmatmul.f32.gmra.mxu0 %v682
        %v794 = vpop.f32.mrf.mxu0
        %v795 = vadd.f32 %v586, %v794
        %796 = vmatmul.f32.gmra.mxu0 %v685
        %v797 = vpop.f32.mrf.mxu0
        %v798 = vadd.f32 %v589, %v797
        %799 = vmatmul.f32.gmra.mxu0 %v688
        %v800 = vpop.f32.mrf.mxu0
        %v801 = vadd.f32 %v592, %v800
        %802 = vmatmul.f32.gmra.mxu0 %v691
        %v803 = vpop.f32.mrf.mxu0
        %v804 = vadd.f32 %v595, %v803
        %805 = vmatmul.f32.gmra.mxu0 %v694
        %v806 = vpop.f32.mrf.mxu0
        %v807 = vadd.f32 %v598, %v806
        %808 = vmatmul.f32.gmra.mxu0 %v697
        %v809 = vpop.f32.mrf.mxu0
        %v810 = vadd.f32 %v601, %v809
        %811 = vmatmul.f32.gmra.mxu0 %v700
        %v812 = vpop.f32.mrf.mxu0
        %v813 = vadd.f32 %v604, %v812
        %814 = vmatmul.f32.gmra.mxu0 %v703
        %v815 = vpop.f32.mrf.mxu0
        %v816 = vadd.f32 %v607, %v815
        %817 = vmatmul.f32.gmra.mxu0 %v706
        %v818 = vpop.f32.mrf.mxu0
        %v819 = vadd.f32 %v610, %v818
        %820 = vmatmul.f32.gmra.mxu0 %v709
        %v821 = vpop.f32.mrf.mxu0
        %v822 = vadd.f32 %v613, %v821
        %823 = vmatmul.f32.gmra.mxu0 %v712
        %v824 = vpop.f32.mrf.mxu0
        %v825 = vadd.f32 %v616, %v824
        %826 = vmatmul.f32.gmra.mxu0 %v715
        %v827 = vpop.f32.mrf.mxu0
        %v828 = vadd.f32 %v619, %v827
        %829 = vmatmul.f32.gmra.mxu0 %v718
        %v830 = vpop.f32.mrf.mxu0
        %v831 = vadd.f32 %v622, %v830
        %832 = vmatmul.f32.gmra.mxu0 %v721
        %v833 = vpop.f32.mrf.mxu0
        %v834 = vadd.f32 %v625, %v833
        %835 = vmatmul.f32.gmra.mxu0 %v724
        %v836 = vpop.f32.mrf.mxu0
        %v837 = vadd.f32 %v628, %v836
        %838 = vmatmul.f32.gmra.mxu0 %v727
        %v839 = vpop.f32.mrf.mxu0
        %v840 = vadd.f32 %v631, %v839
        %841 = vmatmul.f32.gmra.mxu0 %v730
        %v842 = vpop.f32.mrf.mxu0
        %v843 = vadd.f32 %v634, %v842
        %844 = vmatmul.f32.gmra.mxu0 %v733
        %v845 = vpop.f32.mrf.mxu0
        %v846 = vadd.f32 %v637, %v845
        %847 = vmatmul.f32.gmra.mxu0 %v736
        %v848 = vpop.f32.mrf.mxu0
        %v849 = vadd.f32 %v640, %v848
        %850 = vmatmul.f32.gmra.mxu0 %v739
        %v851 = vpop.f32.mrf.mxu0
        %v852 = vadd.f32 %v643, %v851
        %853 = vmatmul.f32.gmra.mxu0 %v742
        %v854 = vpop.f32.mrf.mxu0
        %v855 = vadd.f32 %v646, %v854
        %856 = vmatmul.f32.gmra.mxu0 %v745
        %v857 = vpop.f32.mrf.mxu0
        %v858 = vadd.f32 %v649, %v857
        %859 = vmatmul.f32.gmra.mxu0 %v748
        %v860 = vpop.f32.mrf.mxu0
        %v861 = vadd.f32 %v652, %v860
        %862 = vmatmul.f32.gmra.mxu0 %v751
        %v863 = vpop.f32.mrf.mxu0
        %v864 = vadd.f32 %v655, %v863
        %865 = vdwg.mxu0
        %v866 = vld [vmem:[#allocation2 + $0x2] sm:$0xff]
        %v867 = vld [vmem:[#allocation2 + $0xa] sm:$0xff]
        %v868 = vld [vmem:[#allocation2 + $0x1a] sm:$0xff]
        %v869 = vld [vmem:[#allocation2 + $0x22] sm:$0xff]
        %v870 = vld [vmem:[#allocation2 + $0x32] sm:$0xff]
        %v871 = vld [vmem:[#allocation2 + $0x3a] sm:$0xff]
        %v872 = vld [vmem:[#allocation2 + $0x4a] sm:$0xff]
        %v873 = vld [vmem:[#allocation2 + $0x52] sm:$0xff]
        %v874 = vld [vmem:[#allocation2 + $0x62] sm:$0xff]
        %v875 = vld [vmem:[#allocation2 + $0x6a] sm:$0xff]
        %v876 = vld [vmem:[#allocation2 + $0x7a] sm:$0xff]
        %v877 = vld [vmem:[#allocation2 + $0x82] sm:$0xff]
        %v878 = vld [vmem:[#allocation2 + $0x92] sm:$0xff]
        %v879 = vld [vmem:[#allocation2 + $0x9a] sm:$0xff]
        %v880 = vld [vmem:[#allocation2 + $0xaa] sm:$0xff]
        %v881 = vld [vmem:[#allocation2 + $0xb2] sm:$0xff]
        %v882 = vld [vmem:[#allocation2 + $0xc2] sm:$0xff]
        %v883 = vld [vmem:[#allocation2 + $0xca] sm:$0xff]
        %v884 = vld [vmem:[#allocation2 + $0xda] sm:$0xff]
        %v885 = vld [vmem:[#allocation2 + $0xe2] sm:$0xff]
        %v886 = vld [vmem:[#allocation2 + $0xf2] sm:$0xff]
        %v887 = vld [vmem:[#allocation2 + $0xfa] sm:$0xff]
        %v888 = vld [vmem:[#allocation2 + $0x10a] sm:$0xff]
        %v889 = vld [vmem:[#allocation2 + $0x112] sm:$0xff]
        %v890 = vld [vmem:[#allocation2 + $0x122] sm:$0xff]
        %v891 = vld [vmem:[#allocation2 + $0x12a] sm:$0xff]
        %v892 = vld [vmem:[#allocation2 + $0x13a] sm:$0xff]
        %v893 = vld [vmem:[#allocation2 + $0x142] sm:$0xff]
        %v894 = vld [vmem:[#allocation2 + $0x152] sm:$0xff]
        %v895 = vld [vmem:[#allocation2 + $0x15a] sm:$0xff]
        %v896 = vld [vmem:[#allocation2 + $0x16a] sm:$0xff]
        %v897 = vld [vmem:[#allocation2 + $0x172] sm:$0xff]
        %s898 = scalar_lea.vmem %s1, 128
        %v899 = vld [vmem:[%s898] sm:$0xff]
        %v900 = vld [vmem:[%s898 + $0x8] sm:$0xff]
        %v901 = vld [vmem:[%s898 + $0x10] sm:$0xff]
        %v902 = vld [vmem:[%s898 + $0x18] sm:$0xff]
        %v903 = vld [vmem:[%s898 + $0x20] sm:$0xff]
        %v904 = vld [vmem:[%s898 + $0x28] sm:$0xff]
        %v905 = vld [vmem:[%s898 + $0x30] sm:$0xff]
        %v906 = vld [vmem:[%s898 + $0x38] sm:$0xff]
        %v908 = vsel %vm256, %v866, 0
        %v911 = vsel %vm256, %v867, 0
        %v914 = vsel %vm256, %v868, 0
        %v917 = vsel %vm256, %v869, 0
        %v920 = vsel %vm256, %v870, 0
        %v923 = vsel %vm256, %v871, 0
        %v926 = vsel %vm256, %v872, 0
        %v929 = vsel %vm256, %v873, 0
        %v932 = vsel %vm256, %v874, 0
        %v935 = vsel %vm256, %v875, 0
        %v938 = vsel %vm256, %v876, 0
        %v941 = vsel %vm256, %v877, 0
        %v944 = vsel %vm256, %v878, 0
        %v947 = vsel %vm256, %v879, 0
        %v950 = vsel %vm256, %v880, 0
        %v953 = vsel %vm256, %v881, 0
        %v956 = vsel %vm256, %v882, 0
        %v959 = vsel %vm256, %v883, 0
        %v962 = vsel %vm256, %v884, 0
        %v965 = vsel %vm256, %v885, 0
        %v968 = vsel %vm256, %v886, 0
        %v971 = vsel %vm256, %v887, 0
        %v974 = vsel %vm256, %v888, 0
        %v977 = vsel %vm256, %v889, 0
        %v980 = vsel %vm256, %v890, 0
        %v983 = vsel %vm256, %v891, 0
        %v986 = vsel %vm256, %v892, 0
        %v989 = vsel %vm256, %v893, 0
        %v992 = vsel %vm256, %v894, 0
        %v995 = vsel %vm256, %v895, 0
        %v998 = vsel %vm256, %v896, 0
        %v1001 = vsel %vm256, %v897, 0
        %1003 = vmatpush.msra.mxu0 0.0
        %1004 = vmatpush.msra.mxu0 0.0
        %1005 = vmatpush.msra.mxu0 0.0
        %1006 = vmatpush.msra.mxu0 0.0
        %1007 = vmatpush.msra.mxu0 0.0
        %1008 = vmatpush.msra.mxu0 0.0
        %1009 = vmatpush.msra.mxu0 0.0
        %1010 = vmatpush.msra.mxu0 0.0
        %1011 = vmatpush.msra.mxu0 %v906
        %1012 = vmatpush.msra.mxu0 %v905
        %1013 = vmatpush.msra.mxu0 %v904
        %1014 = vmatpush.msra.mxu0 %v903
        %1015 = vmatpush.msra.mxu0 %v902
        %1016 = vmatpush.msra.mxu0 %v901
        %1017 = vmatpush.msra.mxu0 %v900
        %1018 = vmatpush.msra.mxu0 %v899
        %1019 = vmatmul.f32.gmra.mxu0 %v908
        %v1020 = vpop.f32.mrf.mxu0
        %v1021 = vadd.f32 0.0, %v1020
        %1022 = vmatmul.f32.gmra.mxu0 %v911
        %v1023 = vpop.f32.mrf.mxu0
        %v1024 = vadd.f32 0.0, %v1023
        %1025 = vmatmul.f32.gmra.mxu0 %v914
        %v1026 = vpop.f32.mrf.mxu0
        %v1027 = vadd.f32 0.0, %v1026
        %1028 = vmatmul.f32.gmra.mxu0 %v917
        %v1029 = vpop.f32.mrf.mxu0
        %v1030 = vadd.f32 0.0, %v1029
        %1031 = vmatmul.f32.gmra.mxu0 %v920
        %v1032 = vpop.f32.mrf.mxu0
        %v1033 = vadd.f32 0.0, %v1032
        %1034 = vmatmul.f32.gmra.mxu0 %v923
        %v1035 = vpop.f32.mrf.mxu0
        %v1036 = vadd.f32 0.0, %v1035
        %1037 = vmatmul.f32.gmra.mxu0 %v926
        %v1038 = vpop.f32.mrf.mxu0
        %v1039 = vadd.f32 0.0, %v1038
        %1040 = vmatmul.f32.gmra.mxu0 %v929
        %v1041 = vpop.f32.mrf.mxu0
        %v1042 = vadd.f32 0.0, %v1041
        %1043 = vmatmul.f32.gmra.mxu0 %v932
        %v1044 = vpop.f32.mrf.mxu0
        %v1045 = vadd.f32 0.0, %v1044
        %1046 = vmatmul.f32.gmra.mxu0 %v935
        %v1047 = vpop.f32.mrf.mxu0
        %v1048 = vadd.f32 0.0, %v1047
        %1049 = vmatmul.f32.gmra.mxu0 %v938
        %v1050 = vpop.f32.mrf.mxu0
        %v1051 = vadd.f32 0.0, %v1050
        %1052 = vmatmul.f32.gmra.mxu0 %v941
        %v1053 = vpop.f32.mrf.mxu0
        %v1054 = vadd.f32 0.0, %v1053
        %1055 = vmatmul.f32.gmra.mxu0 %v944
        %v1056 = vpop.f32.mrf.mxu0
        %v1057 = vadd.f32 0.0, %v1056
        %1058 = vmatmul.f32.gmra.mxu0 %v947
        %v1059 = vpop.f32.mrf.mxu0
        %v1060 = vadd.f32 0.0, %v1059
        %1061 = vmatmul.f32.gmra.mxu0 %v950
        %v1062 = vpop.f32.mrf.mxu0
        %v1063 = vadd.f32 0.0, %v1062
        %1064 = vmatmul.f32.gmra.mxu0 %v953
        %v1065 = vpop.f32.mrf.mxu0
        %v1066 = vadd.f32 0.0, %v1065
        %1067 = vmatmul.f32.gmra.mxu0 %v956
        %v1068 = vpop.f32.mrf.mxu0
        %v1069 = vadd.f32 0.0, %v1068
        %1070 = vmatmul.f32.gmra.mxu0 %v959
        %v1071 = vpop.f32.mrf.mxu0
        %v1072 = vadd.f32 0.0, %v1071
        %1073 = vmatmul.f32.gmra.mxu0 %v962
        %v1074 = vpop.f32.mrf.mxu0
        %v1075 = vadd.f32 0.0, %v1074
        %1076 = vmatmul.f32.gmra.mxu0 %v965
        %v1077 = vpop.f32.mrf.mxu0
        %v1078 = vadd.f32 0.0, %v1077
        %1079 = vmatmul.f32.gmra.mxu0 %v968
        %v1080 = vpop.f32.mrf.mxu0
        %v1081 = vadd.f32 0.0, %v1080
        %1082 = vmatmul.f32.gmra.mxu0 %v971
        %v1083 = vpop.f32.mrf.mxu0
        %v1084 = vadd.f32 0.0, %v1083
        %1085 = vmatmul.f32.gmra.mxu0 %v974
        %v1086 = vpop.f32.mrf.mxu0
        %v1087 = vadd.f32 0.0, %v1086
        %1088 = vmatmul.f32.gmra.mxu0 %v977
        %v1089 = vpop.f32.mrf.mxu0
        %v1090 = vadd.f32 0.0, %v1089
        %1091 = vmatmul.f32.gmra.mxu0 %v980
        %v1092 = vpop.f32.mrf.mxu0
        %v1093 = vadd.f32 0.0, %v1092
        %1094 = vmatmul.f32.gmra.mxu0 %v983
        %v1095 = vpop.f32.mrf.mxu0
        %v1096 = vadd.f32 0.0, %v1095
        %1097 = vmatmul.f32.gmra.mxu0 %v986
        %v1098 = vpop.f32.mrf.mxu0
        %v1099 = vadd.f32 0.0, %v1098
        %1100 = vmatmul.f32.gmra.mxu0 %v989
        %v1101 = vpop.f32.mrf.mxu0
        %v1102 = vadd.f32 0.0, %v1101
        %1103 = vmatmul.f32.gmra.mxu0 %v992
        %v1104 = vpop.f32.mrf.mxu0
        %v1105 = vadd.f32 0.0, %v1104
        %1106 = vmatmul.f32.gmra.mxu0 %v995
        %v1107 = vpop.f32.mrf.mxu0
        %v1108 = vadd.f32 0.0, %v1107
        %1109 = vmatmul.f32.gmra.mxu0 %v998
        %v1110 = vpop.f32.mrf.mxu0
        %v1111 = vadd.f32 0.0, %v1110
        %1112 = vmatmul.f32.gmra.mxu0 %v1001
        %v1113 = vpop.f32.mrf.mxu0
        %v1114 = vadd.f32 0.0, %v1113
        %1115 = vdwg.mxu0
        %v1116 = vadd.f32 %v771, %v1021
        %v1117 = vadd.f32 %v774, %v1024
        %v1118 = vadd.f32 %v777, %v1027
        %v1119 = vadd.f32 %v780, %v1030
        %v1120 = vadd.f32 %v783, %v1033
        %v1121 = vadd.f32 %v786, %v1036
        %v1122 = vadd.f32 %v789, %v1039
        %v1123 = vadd.f32 %v792, %v1042
        %v1124 = vadd.f32 %v795, %v1045
        %v1125 = vadd.f32 %v798, %v1048
        %v1126 = vadd.f32 %v801, %v1051
        %v1127 = vadd.f32 %v804, %v1054
        %v1128 = vadd.f32 %v807, %v1057
        %v1129 = vadd.f32 %v810, %v1060
        %v1130 = vadd.f32 %v813, %v1063
        %v1131 = vadd.f32 %v816, %v1066
        %v1132 = vadd.f32 %v819, %v1069
        %v1133 = vadd.f32 %v822, %v1072
        %v1134 = vadd.f32 %v825, %v1075
        %v1135 = vadd.f32 %v828, %v1078
        %v1136 = vadd.f32 %v831, %v1081
        %v1137 = vadd.f32 %v834, %v1084
        %v1138 = vadd.f32 %v837, %v1087
        %v1139 = vadd.f32 %v840, %v1090
        %v1140 = vadd.f32 %v843, %v1093
        %v1141 = vadd.f32 %v846, %v1096
        %v1142 = vadd.f32 %v849, %v1099
        %v1143 = vadd.f32 %v852, %v1102
        %v1144 = vadd.f32 %v855, %v1105
        %v1145 = vadd.f32 %v858, %v1108
        %v1146 = vadd.f32 %v861, %v1111
        %v1147 = vadd.f32 %v864, %v1114
        %v1148 = vld [vmem:[%s255] sm:$0xff]
        %v1149 = vld [vmem:[%s255 + $0x8] sm:$0xff]
        %v1150 = vld [vmem:[%s255 + $0x18] sm:$0xff]
        %v1151 = vld [vmem:[%s255 + $0x20] sm:$0xff]
        %v1152 = vld [vmem:[%s255 + $0x30] sm:$0xff]
        %v1153 = vld [vmem:[%s255 + $0x38] sm:$0xff]
        %v1154 = vld [vmem:[%s255 + $0x48] sm:$0xff]
        %v1155 = vld [vmem:[%s255 + $0x50] sm:$0xff]
        %v1156 = vld [vmem:[%s255 + $0x60] sm:$0xff]
        %v1157 = vld [vmem:[%s255 + $0x68] sm:$0xff]
        %v1158 = vld [vmem:[%s255 + $0x78] sm:$0xff]
        %v1159 = vld [vmem:[%s255 + $0x80] sm:$0xff]
        %v1160 = vld [vmem:[%s255 + $0x90] sm:$0xff]
        %v1161 = vld [vmem:[%s255 + $0x98] sm:$0xff]
        %v1162 = vld [vmem:[%s255 + $0xa8] sm:$0xff]
        %v1163 = vld [vmem:[%s255 + $0xb0] sm:$0xff]
        %v1164 = vld [vmem:[%s255 + $0xc0] sm:$0xff]
        %v1165 = vld [vmem:[%s255 + $0xc8] sm:$0xff]
        %v1166 = vld [vmem:[%s255 + $0xd8] sm:$0xff]
        %v1167 = vld [vmem:[%s255 + $0xe0] sm:$0xff]
        %v1168 = vld [vmem:[%s255 + $0xf0] sm:$0xff]
        %v1169 = vld [vmem:[%s255 + $0xf8] sm:$0xff]
        %v1170 = vld [vmem:[%s255 + $0x108] sm:$0xff]
        %v1171 = vld [vmem:[%s255 + $0x110] sm:$0xff]
        %v1172 = vld [vmem:[%s255 + $0x120] sm:$0xff]
        %v1173 = vld [vmem:[%s255 + $0x128] sm:$0xff]
        %v1174 = vld [vmem:[%s255 + $0x138] sm:$0xff]
        %v1175 = vld [vmem:[%s255 + $0x140] sm:$0xff]
        %v1176 = vld [vmem:[%s255 + $0x150] sm:$0xff]
        %v1177 = vld [vmem:[%s255 + $0x158] sm:$0xff]
        %v1178 = vld [vmem:[%s255 + $0x168] sm:$0xff]
        %v1179 = vld [vmem:[%s255 + $0x170] sm:$0xff]
        %s1180 = scalar_lea.vmem %s1, 192
        %v1181 = vld [vmem:[%s1180] sm:$0xff]
        %v1182 = vld [vmem:[%s1180 + $0x8] sm:$0xff]
        %v1183 = vld [vmem:[%s1180 + $0x10] sm:$0xff]
        %v1184 = vld [vmem:[%s1180 + $0x18] sm:$0xff]
        %v1185 = vld [vmem:[%s1180 + $0x20] sm:$0xff]
        %v1186 = vld [vmem:[%s1180 + $0x28] sm:$0xff]
        %v1187 = vld [vmem:[%s1180 + $0x30] sm:$0xff]
        %v1188 = vld [vmem:[%s1180 + $0x38] sm:$0xff]
        %v1190 = vsel %vm256, %v1148, 0
        %v1193 = vsel %vm256, %v1149, 0
        %v1196 = vsel %vm256, %v1150, 0
        %v1199 = vsel %vm256, %v1151, 0
        %v1202 = vsel %vm256, %v1152, 0
        %v1205 = vsel %vm256, %v1153, 0
        %v1208 = vsel %vm256, %v1154, 0
        %v1211 = vsel %vm256, %v1155, 0
        %v1214 = vsel %vm256, %v1156, 0
        %v1217 = vsel %vm256, %v1157, 0
        %v1220 = vsel %vm256, %v1158, 0
        %v1223 = vsel %vm256, %v1159, 0
        %v1226 = vsel %vm256, %v1160, 0
        %v1229 = vsel %vm256, %v1161, 0
        %v1232 = vsel %vm256, %v1162, 0
        %v1235 = vsel %vm256, %v1163, 0
        %v1238 = vsel %vm256, %v1164, 0
        %v1241 = vsel %vm256, %v1165, 0
        %v1244 = vsel %vm256, %v1166, 0
        %v1247 = vsel %vm256, %v1167, 0
        %v1250 = vsel %vm256, %v1168, 0
        %v1253 = vsel %vm256, %v1169, 0
        %v1256 = vsel %vm256, %v1170, 0
        %v1259 = vsel %vm256, %v1171, 0
        %v1262 = vsel %vm256, %v1172, 0
        %v1265 = vsel %vm256, %v1173, 0
        %v1268 = vsel %vm256, %v1174, 0
        %v1271 = vsel %vm256, %v1175, 0
        %v1274 = vsel %vm256, %v1176, 0
        %v1277 = vsel %vm256, %v1177, 0
        %v1280 = vsel %vm256, %v1178, 0
        %v1283 = vsel %vm256, %v1179, 0
        %1285 = vmatpush.msra.mxu0 0.0
        %1286 = vmatpush.msra.mxu0 0.0
        %1287 = vmatpush.msra.mxu0 0.0
        %1288 = vmatpush.msra.mxu0 0.0
        %1289 = vmatpush.msra.mxu0 0.0
        %1290 = vmatpush.msra.mxu0 0.0
        %1291 = vmatpush.msra.mxu0 0.0
        %1292 = vmatpush.msra.mxu0 0.0
        %1293 = vmatpush.msra.mxu0 %v1188
        %1294 = vmatpush.msra.mxu0 %v1187
        %1295 = vmatpush.msra.mxu0 %v1186
        %1296 = vmatpush.msra.mxu0 %v1185
        %1297 = vmatpush.msra.mxu0 %v1184
        %1298 = vmatpush.msra.mxu0 %v1183
        %1299 = vmatpush.msra.mxu0 %v1182
        %1300 = vmatpush.msra.mxu0 %v1181
        %1301 = vmatmul.f32.gmra.mxu0 %v1190
        %v1302 = vpop.f32.mrf.mxu0
        %v1303 = vadd.f32 0.0, %v1302
        %1304 = vmatmul.f32.gmra.mxu0 %v1193
        %v1305 = vpop.f32.mrf.mxu0
        %v1306 = vadd.f32 0.0, %v1305
        %1307 = vmatmul.f32.gmra.mxu0 %v1196
        %v1308 = vpop.f32.mrf.mxu0
        %v1309 = vadd.f32 0.0, %v1308
        %1310 = vmatmul.f32.gmra.mxu0 %v1199
        %v1311 = vpop.f32.mrf.mxu0
        %v1312 = vadd.f32 0.0, %v1311
        %1313 = vmatmul.f32.gmra.mxu0 %v1202
        %v1314 = vpop.f32.mrf.mxu0
        %v1315 = vadd.f32 0.0, %v1314
        %1316 = vmatmul.f32.gmra.mxu0 %v1205
        %v1317 = vpop.f32.mrf.mxu0
        %v1318 = vadd.f32 0.0, %v1317
        %1319 = vmatmul.f32.gmra.mxu0 %v1208
        %v1320 = vpop.f32.mrf.mxu0
        %v1321 = vadd.f32 0.0, %v1320
        %1322 = vmatmul.f32.gmra.mxu0 %v1211
        %v1323 = vpop.f32.mrf.mxu0
        %v1324 = vadd.f32 0.0, %v1323
        %1325 = vmatmul.f32.gmra.mxu0 %v1214
        %v1326 = vpop.f32.mrf.mxu0
        %v1327 = vadd.f32 0.0, %v1326
        %1328 = vmatmul.f32.gmra.mxu0 %v1217
        %v1329 = vpop.f32.mrf.mxu0
        %v1330 = vadd.f32 0.0, %v1329
        %1331 = vmatmul.f32.gmra.mxu0 %v1220
        %v1332 = vpop.f32.mrf.mxu0
        %v1333 = vadd.f32 0.0, %v1332
        %1334 = vmatmul.f32.gmra.mxu0 %v1223
        %v1335 = vpop.f32.mrf.mxu0
        %v1336 = vadd.f32 0.0, %v1335
        %1337 = vmatmul.f32.gmra.mxu0 %v1226
        %v1338 = vpop.f32.mrf.mxu0
        %v1339 = vadd.f32 0.0, %v1338
        %1340 = vmatmul.f32.gmra.mxu0 %v1229
        %v1341 = vpop.f32.mrf.mxu0
        %v1342 = vadd.f32 0.0, %v1341
        %1343 = vmatmul.f32.gmra.mxu0 %v1232
        %v1344 = vpop.f32.mrf.mxu0
        %v1345 = vadd.f32 0.0, %v1344
        %1346 = vmatmul.f32.gmra.mxu0 %v1235
        %v1347 = vpop.f32.mrf.mxu0
        %v1348 = vadd.f32 0.0, %v1347
        %1349 = vmatmul.f32.gmra.mxu0 %v1238
        %v1350 = vpop.f32.mrf.mxu0
        %v1351 = vadd.f32 0.0, %v1350
        %1352 = vmatmul.f32.gmra.mxu0 %v1241
        %v1353 = vpop.f32.mrf.mxu0
        %v1354 = vadd.f32 0.0, %v1353
        %1355 = vmatmul.f32.gmra.mxu0 %v1244
        %v1356 = vpop.f32.mrf.mxu0
        %v1357 = vadd.f32 0.0, %v1356
        %1358 = vmatmul.f32.gmra.mxu0 %v1247
        %v1359 = vpop.f32.mrf.mxu0
        %v1360 = vadd.f32 0.0, %v1359
        %1361 = vmatmul.f32.gmra.mxu0 %v1250
        %v1362 = vpop.f32.mrf.mxu0
        %v1363 = vadd.f32 0.0, %v1362
        %1364 = vmatmul.f32.gmra.mxu0 %v1253
        %v1365 = vpop.f32.mrf.mxu0
        %v1366 = vadd.f32 0.0, %v1365
        %1367 = vmatmul.f32.gmra.mxu0 %v1256
        %v1368 = vpop.f32.mrf.mxu0
        %v1369 = vadd.f32 0.0, %v1368
        %1370 = vmatmul.f32.gmra.mxu0 %v1259
        %v1371 = vpop.f32.mrf.mxu0
        %v1372 = vadd.f32 0.0, %v1371
        %1373 = vmatmul.f32.gmra.mxu0 %v1262
        %v1374 = vpop.f32.mrf.mxu0
        %v1375 = vadd.f32 0.0, %v1374
        %1376 = vmatmul.f32.gmra.mxu0 %v1265
        %v1377 = vpop.f32.mrf.mxu0
        %v1378 = vadd.f32 0.0, %v1377
        %1379 = vmatmul.f32.gmra.mxu0 %v1268
        %v1380 = vpop.f32.mrf.mxu0
        %v1381 = vadd.f32 0.0, %v1380
        %1382 = vmatmul.f32.gmra.mxu0 %v1271
        %v1383 = vpop.f32.mrf.mxu0
        %v1384 = vadd.f32 0.0, %v1383
        %1385 = vmatmul.f32.gmra.mxu0 %v1274
        %v1386 = vpop.f32.mrf.mxu0
        %v1387 = vadd.f32 0.0, %v1386
        %1388 = vmatmul.f32.gmra.mxu0 %v1277
        %v1389 = vpop.f32.mrf.mxu0
        %v1390 = vadd.f32 0.0, %v1389
        %1391 = vmatmul.f32.gmra.mxu0 %v1280
        %v1392 = vpop.f32.mrf.mxu0
        %v1393 = vadd.f32 0.0, %v1392
        %1394 = vmatmul.f32.gmra.mxu0 %v1283
        %v1395 = vpop.f32.mrf.mxu0
        %v1396 = vadd.f32 0.0, %v1395
        %1397 = vdwg.mxu0
        %v1398 = vadd.f32 %v1116, %v1303
        %v1399 = vadd.f32 %v1117, %v1306
        %v1400 = vadd.f32 %v1118, %v1309
        %v1401 = vadd.f32 %v1119, %v1312
        %v1402 = vadd.f32 %v1120, %v1315
        %v1403 = vadd.f32 %v1121, %v1318
        %v1404 = vadd.f32 %v1122, %v1321
        %v1405 = vadd.f32 %v1123, %v1324
        %v1406 = vadd.f32 %v1124, %v1327
        %v1407 = vadd.f32 %v1125, %v1330
        %v1408 = vadd.f32 %v1126, %v1333
        %v1409 = vadd.f32 %v1127, %v1336
        %v1410 = vadd.f32 %v1128, %v1339
        %v1411 = vadd.f32 %v1129, %v1342
        %v1412 = vadd.f32 %v1130, %v1345
        %v1413 = vadd.f32 %v1131, %v1348
        %v1414 = vadd.f32 %v1132, %v1351
        %v1415 = vadd.f32 %v1133, %v1354
        %v1416 = vadd.f32 %v1134, %v1357
        %v1417 = vadd.f32 %v1135, %v1360
        %v1418 = vadd.f32 %v1136, %v1363
        %v1419 = vadd.f32 %v1137, %v1366
        %v1420 = vadd.f32 %v1138, %v1369
        %v1421 = vadd.f32 %v1139, %v1372
        %v1422 = vadd.f32 %v1140, %v1375
        %v1423 = vadd.f32 %v1141, %v1378
        %v1424 = vadd.f32 %v1142, %v1381
        %v1425 = vadd.f32 %v1143, %v1384
        %v1426 = vadd.f32 %v1144, %v1387
        %v1427 = vadd.f32 %v1145, %v1390
        %v1428 = vadd.f32 %v1146, %v1393
        %v1429 = vadd.f32 %v1147, %v1396
        %v1430 = vld [vmem:[%s255 + $0x1] sm:$0xff]
        %v1431 = vld [vmem:[%s255 + $0x9] sm:$0xff]
        %v1432 = vld [vmem:[%s255 + $0x19] sm:$0xff]
        %v1433 = vld [vmem:[%s255 + $0x21] sm:$0xff]
        %v1434 = vld [vmem:[%s255 + $0x31] sm:$0xff]
        %v1435 = vld [vmem:[%s255 + $0x39] sm:$0xff]
        %v1436 = vld [vmem:[%s255 + $0x49] sm:$0xff]
        %v1437 = vld [vmem:[%s255 + $0x51] sm:$0xff]
        %v1438 = vld [vmem:[%s255 + $0x61] sm:$0xff]
        %v1439 = vld [vmem:[%s255 + $0x69] sm:$0xff]
        %v1440 = vld [vmem:[%s255 + $0x79] sm:$0xff]
        %v1441 = vld [vmem:[%s255 + $0x81] sm:$0xff]
        %v1442 = vld [vmem:[%s255 + $0x91] sm:$0xff]
        %v1443 = vld [vmem:[%s255 + $0x99] sm:$0xff]
        %v1444 = vld [vmem:[%s255 + $0xa9] sm:$0xff]
        %v1445 = vld [vmem:[%s255 + $0xb1] sm:$0xff]
        %v1446 = vld [vmem:[%s255 + $0xc1] sm:$0xff]
        %v1447 = vld [vmem:[%s255 + $0xc9] sm:$0xff]
        %v1448 = vld [vmem:[%s255 + $0xd9] sm:$0xff]
        %v1449 = vld [vmem:[%s255 + $0xe1] sm:$0xff]
        %v1450 = vld [vmem:[%s255 + $0xf1] sm:$0xff]
        %v1451 = vld [vmem:[%s255 + $0xf9] sm:$0xff]
        %v1452 = vld [vmem:[%s255 + $0x109] sm:$0xff]
        %v1453 = vld [vmem:[%s255 + $0x111] sm:$0xff]
        %v1454 = vld [vmem:[%s255 + $0x121] sm:$0xff]
        %v1455 = vld [vmem:[%s255 + $0x129] sm:$0xff]
        %v1456 = vld [vmem:[%s255 + $0x139] sm:$0xff]
        %v1457 = vld [vmem:[%s255 + $0x141] sm:$0xff]
        %v1458 = vld [vmem:[%s255 + $0x151] sm:$0xff]
        %v1459 = vld [vmem:[%s255 + $0x159] sm:$0xff]
        %v1460 = vld [vmem:[%s255 + $0x169] sm:$0xff]
        %v1461 = vld [vmem:[%s255 + $0x171] sm:$0xff]
        %s1462 = scalar_lea.vmem %s1, 256
        %v1463 = vld [vmem:[%s1462] sm:$0xff]
        %v1464 = vld [vmem:[%s1462 + $0x8] sm:$0xff]
        %v1465 = vld [vmem:[%s1462 + $0x10] sm:$0xff]
        %v1466 = vld [vmem:[%s1462 + $0x18] sm:$0xff]
        %v1467 = vld [vmem:[%s1462 + $0x20] sm:$0xff]
        %v1468 = vld [vmem:[%s1462 + $0x28] sm:$0xff]
        %v1469 = vld [vmem:[%s1462 + $0x30] sm:$0xff]
        %v1470 = vld [vmem:[%s1462 + $0x38] sm:$0xff]
        %v1472 = vsel %vm256, %v1430, 0
        %v1475 = vsel %vm256, %v1431, 0
        %v1478 = vsel %vm256, %v1432, 0
        %v1481 = vsel %vm256, %v1433, 0
        %v1484 = vsel %vm256, %v1434, 0
        %v1487 = vsel %vm256, %v1435, 0
        %v1490 = vsel %vm256, %v1436, 0
        %v1493 = vsel %vm256, %v1437, 0
        %v1496 = vsel %vm256, %v1438, 0
        %v1499 = vsel %vm256, %v1439, 0
        %v1502 = vsel %vm256, %v1440, 0
        %v1505 = vsel %vm256, %v1441, 0
        %v1508 = vsel %vm256, %v1442, 0
        %v1511 = vsel %vm256, %v1443, 0
        %v1514 = vsel %vm256, %v1444, 0
        %v1517 = vsel %vm256, %v1445, 0
        %v1520 = vsel %vm256, %v1446, 0
        %v1523 = vsel %vm256, %v1447, 0
        %v1526 = vsel %vm256, %v1448, 0
        %v1529 = vsel %vm256, %v1449, 0
        %v1532 = vsel %vm256, %v1450, 0
        %v1535 = vsel %vm256, %v1451, 0
        %v1538 = vsel %vm256, %v1452, 0
        %v1541 = vsel %vm256, %v1453, 0
        %v1544 = vsel %vm256, %v1454, 0
        %v1547 = vsel %vm256, %v1455, 0
        %v1550 = vsel %vm256, %v1456, 0
        %v1553 = vsel %vm256, %v1457, 0
        %v1556 = vsel %vm256, %v1458, 0
        %v1559 = vsel %vm256, %v1459, 0
        %v1562 = vsel %vm256, %v1460, 0
        %v1565 = vsel %vm256, %v1461, 0
        %1567 = vmatpush.msra.mxu0 0.0
        %1568 = vmatpush.msra.mxu0 0.0
        %1569 = vmatpush.msra.mxu0 0.0
        %1570 = vmatpush.msra.mxu0 0.0
        %1571 = vmatpush.msra.mxu0 0.0
        %1572 = vmatpush.msra.mxu0 0.0
        %1573 = vmatpush.msra.mxu0 0.0
        %1574 = vmatpush.msra.mxu0 0.0
        %1575 = vmatpush.msra.mxu0 %v1470
        %1576 = vmatpush.msra.mxu0 %v1469
        %1577 = vmatpush.msra.mxu0 %v1468
        %1578 = vmatpush.msra.mxu0 %v1467
        %1579 = vmatpush.msra.mxu0 %v1466
        %1580 = vmatpush.msra.mxu0 %v1465
        %1581 = vmatpush.msra.mxu0 %v1464
        %1582 = vmatpush.msra.mxu0 %v1463
        %1583 = vmatmul.f32.gmra.mxu0 %v1472
        %v1584 = vpop.f32.mrf.mxu0
        %v1585 = vadd.f32 0.0, %v1584
        %1586 = vmatmul.f32.gmra.mxu0 %v1475
        %v1587 = vpop.f32.mrf.mxu0
        %v1588 = vadd.f32 0.0, %v1587
        %1589 = vmatmul.f32.gmra.mxu0 %v1478
        %v1590 = vpop.f32.mrf.mxu0
        %v1591 = vadd.f32 0.0, %v1590
        %1592 = vmatmul.f32.gmra.mxu0 %v1481
        %v1593 = vpop.f32.mrf.mxu0
        %v1594 = vadd.f32 0.0, %v1593
        %1595 = vmatmul.f32.gmra.mxu0 %v1484
        %v1596 = vpop.f32.mrf.mxu0
        %v1597 = vadd.f32 0.0, %v1596
        %1598 = vmatmul.f32.gmra.mxu0 %v1487
        %v1599 = vpop.f32.mrf.mxu0
        %v1600 = vadd.f32 0.0, %v1599
        %1601 = vmatmul.f32.gmra.mxu0 %v1490
        %v1602 = vpop.f32.mrf.mxu0
        %v1603 = vadd.f32 0.0, %v1602
        %1604 = vmatmul.f32.gmra.mxu0 %v1493
        %v1605 = vpop.f32.mrf.mxu0
        %v1606 = vadd.f32 0.0, %v1605
        %1607 = vmatmul.f32.gmra.mxu0 %v1496
        %v1608 = vpop.f32.mrf.mxu0
        %v1609 = vadd.f32 0.0, %v1608
        %1610 = vmatmul.f32.gmra.mxu0 %v1499
        %v1611 = vpop.f32.mrf.mxu0
        %v1612 = vadd.f32 0.0, %v1611
        %1613 = vmatmul.f32.gmra.mxu0 %v1502
        %v1614 = vpop.f32.mrf.mxu0
        %v1615 = vadd.f32 0.0, %v1614
        %1616 = vmatmul.f32.gmra.mxu0 %v1505
        %v1617 = vpop.f32.mrf.mxu0
        %v1618 = vadd.f32 0.0, %v1617
        %1619 = vmatmul.f32.gmra.mxu0 %v1508
        %v1620 = vpop.f32.mrf.mxu0
        %v1621 = vadd.f32 0.0, %v1620
        %1622 = vmatmul.f32.gmra.mxu0 %v1511
        %v1623 = vpop.f32.mrf.mxu0
        %v1624 = vadd.f32 0.0, %v1623
        %1625 = vmatmul.f32.gmra.mxu0 %v1514
        %v1626 = vpop.f32.mrf.mxu0
        %v1627 = vadd.f32 0.0, %v1626
        %1628 = vmatmul.f32.gmra.mxu0 %v1517
        %v1629 = vpop.f32.mrf.mxu0
        %v1630 = vadd.f32 0.0, %v1629
        %1631 = vmatmul.f32.gmra.mxu0 %v1520
        %v1632 = vpop.f32.mrf.mxu0
        %v1633 = vadd.f32 0.0, %v1632
        %1634 = vmatmul.f32.gmra.mxu0 %v1523
        %v1635 = vpop.f32.mrf.mxu0
        %v1636 = vadd.f32 0.0, %v1635
        %1637 = vmatmul.f32.gmra.mxu0 %v1526
        %v1638 = vpop.f32.mrf.mxu0
        %v1639 = vadd.f32 0.0, %v1638
        %1640 = vmatmul.f32.gmra.mxu0 %v1529
        %v1641 = vpop.f32.mrf.mxu0
        %v1642 = vadd.f32 0.0, %v1641
        %1643 = vmatmul.f32.gmra.mxu0 %v1532
        %v1644 = vpop.f32.mrf.mxu0
        %v1645 = vadd.f32 0.0, %v1644
        %1646 = vmatmul.f32.gmra.mxu0 %v1535
        %v1647 = vpop.f32.mrf.mxu0
        %v1648 = vadd.f32 0.0, %v1647
        %1649 = vmatmul.f32.gmra.mxu0 %v1538
        %v1650 = vpop.f32.mrf.mxu0
        %v1651 = vadd.f32 0.0, %v1650
        %1652 = vmatmul.f32.gmra.mxu0 %v1541
        %v1653 = vpop.f32.mrf.mxu0
        %v1654 = vadd.f32 0.0, %v1653
        %1655 = vmatmul.f32.gmra.mxu0 %v1544
        %v1656 = vpop.f32.mrf.mxu0
        %v1657 = vadd.f32 0.0, %v1656
        %1658 = vmatmul.f32.gmra.mxu0 %v1547
        %v1659 = vpop.f32.mrf.mxu0
        %v1660 = vadd.f32 0.0, %v1659
        %1661 = vmatmul.f32.gmra.mxu0 %v1550
        %v1662 = vpop.f32.mrf.mxu0
        %v1663 = vadd.f32 0.0, %v1662
        %1664 = vmatmul.f32.gmra.mxu0 %v1553
        %v1665 = vpop.f32.mrf.mxu0
        %v1666 = vadd.f32 0.0, %v1665
        %1667 = vmatmul.f32.gmra.mxu0 %v1556
        %v1668 = vpop.f32.mrf.mxu0
        %v1669 = vadd.f32 0.0, %v1668
        %1670 = vmatmul.f32.gmra.mxu0 %v1559
        %v1671 = vpop.f32.mrf.mxu0
        %v1672 = vadd.f32 0.0, %v1671
        %1673 = vmatmul.f32.gmra.mxu0 %v1562
        %v1674 = vpop.f32.mrf.mxu0
        %v1675 = vadd.f32 0.0, %v1674
        %1676 = vmatmul.f32.gmra.mxu0 %v1565
        %v1677 = vpop.f32.mrf.mxu0
        %v1678 = vadd.f32 0.0, %v1677
        %1679 = vdwg.mxu0
        %v1680 = vadd.f32 %v1398, %v1585
        %v1681 = vadd.f32 %v1399, %v1588
        %v1682 = vadd.f32 %v1400, %v1591
        %v1683 = vadd.f32 %v1401, %v1594
        %v1684 = vadd.f32 %v1402, %v1597
        %v1685 = vadd.f32 %v1403, %v1600
        %v1686 = vadd.f32 %v1404, %v1603
        %v1687 = vadd.f32 %v1405, %v1606
        %v1688 = vadd.f32 %v1406, %v1609
        %v1689 = vadd.f32 %v1407, %v1612
        %v1690 = vadd.f32 %v1408, %v1615
        %v1691 = vadd.f32 %v1409, %v1618
        %v1692 = vadd.f32 %v1410, %v1621
        %v1693 = vadd.f32 %v1411, %v1624
        %v1694 = vadd.f32 %v1412, %v1627
        %v1695 = vadd.f32 %v1413, %v1630
        %v1696 = vadd.f32 %v1414, %v1633
        %v1697 = vadd.f32 %v1415, %v1636
        %v1698 = vadd.f32 %v1416, %v1639
        %v1699 = vadd.f32 %v1417, %v1642
        %v1700 = vadd.f32 %v1418, %v1645
        %v1701 = vadd.f32 %v1419, %v1648
        %v1702 = vadd.f32 %v1420, %v1651
        %v1703 = vadd.f32 %v1421, %v1654
        %v1704 = vadd.f32 %v1422, %v1657
        %v1705 = vadd.f32 %v1423, %v1660
        %v1706 = vadd.f32 %v1424, %v1663
        %v1707 = vadd.f32 %v1425, %v1666
        %v1708 = vadd.f32 %v1426, %v1669
        %v1709 = vadd.f32 %v1427, %v1672
        %v1710 = vadd.f32 %v1428, %v1675
        %v1711 = vadd.f32 %v1429, %v1678
        %v1712 = vld [vmem:[%s255 + $0x2] sm:$0xff]
        %v1713 = vld [vmem:[%s255 + $0xa] sm:$0xff]
        %v1714 = vld [vmem:[%s255 + $0x1a] sm:$0xff]
        %v1715 = vld [vmem:[%s255 + $0x22] sm:$0xff]
        %v1716 = vld [vmem:[%s255 + $0x32] sm:$0xff]
        %v1717 = vld [vmem:[%s255 + $0x3a] sm:$0xff]
        %v1718 = vld [vmem:[%s255 + $0x4a] sm:$0xff]
        %v1719 = vld [vmem:[%s255 + $0x52] sm:$0xff]
        %v1720 = vld [vmem:[%s255 + $0x62] sm:$0xff]
        %v1721 = vld [vmem:[%s255 + $0x6a] sm:$0xff]
        %v1722 = vld [vmem:[%s255 + $0x7a] sm:$0xff]
        %v1723 = vld [vmem:[%s255 + $0x82] sm:$0xff]
        %v1724 = vld [vmem:[%s255 + $0x92] sm:$0xff]
        %v1725 = vld [vmem:[%s255 + $0x9a] sm:$0xff]
        %v1726 = vld [vmem:[%s255 + $0xaa] sm:$0xff]
        %v1727 = vld [vmem:[%s255 + $0xb2] sm:$0xff]
        %v1728 = vld [vmem:[%s255 + $0xc2] sm:$0xff]
        %v1729 = vld [vmem:[%s255 + $0xca] sm:$0xff]
        %v1730 = vld [vmem:[%s255 + $0xda] sm:$0xff]
        %v1731 = vld [vmem:[%s255 + $0xe2] sm:$0xff]
        %v1732 = vld [vmem:[%s255 + $0xf2] sm:$0xff]
        %v1733 = vld [vmem:[%s255 + $0xfa] sm:$0xff]
        %v1734 = vld [vmem:[%s255 + $0x10a] sm:$0xff]
        %v1735 = vld [vmem:[%s255 + $0x112] sm:$0xff]
        %v1736 = vld [vmem:[%s255 + $0x122] sm:$0xff]
        %v1737 = vld [vmem:[%s255 + $0x12a] sm:$0xff]
        %v1738 = vld [vmem:[%s255 + $0x13a] sm:$0xff]
        %v1739 = vld [vmem:[%s255 + $0x142] sm:$0xff]
        %v1740 = vld [vmem:[%s255 + $0x152] sm:$0xff]
        %v1741 = vld [vmem:[%s255 + $0x15a] sm:$0xff]
        %v1742 = vld [vmem:[%s255 + $0x16a] sm:$0xff]
        %v1743 = vld [vmem:[%s255 + $0x172] sm:$0xff]
        %s1744 = scalar_lea.vmem %s1, 320
        %v1745 = vld [vmem:[%s1744] sm:$0xff]
        %v1746 = vld [vmem:[%s1744 + $0x8] sm:$0xff]
        %v1747 = vld [vmem:[%s1744 + $0x10] sm:$0xff]
        %v1748 = vld [vmem:[%s1744 + $0x18] sm:$0xff]
        %v1749 = vld [vmem:[%s1744 + $0x20] sm:$0xff]
        %v1750 = vld [vmem:[%s1744 + $0x28] sm:$0xff]
        %v1751 = vld [vmem:[%s1744 + $0x30] sm:$0xff]
        %v1752 = vld [vmem:[%s1744 + $0x38] sm:$0xff]
        %v1754 = vsel %vm256, %v1712, 0
        %v1757 = vsel %vm256, %v1713, 0
        %v1760 = vsel %vm256, %v1714, 0
        %v1763 = vsel %vm256, %v1715, 0
        %v1766 = vsel %vm256, %v1716, 0
        %v1769 = vsel %vm256, %v1717, 0
        %v1772 = vsel %vm256, %v1718, 0
        %v1775 = vsel %vm256, %v1719, 0
        %v1778 = vsel %vm256, %v1720, 0
        %v1781 = vsel %vm256, %v1721, 0
        %v1784 = vsel %vm256, %v1722, 0
        %v1787 = vsel %vm256, %v1723, 0
        %v1790 = vsel %vm256, %v1724, 0
        %v1793 = vsel %vm256, %v1725, 0
        %v1796 = vsel %vm256, %v1726, 0
        %v1799 = vsel %vm256, %v1727, 0
        %v1802 = vsel %vm256, %v1728, 0
        %v1805 = vsel %vm256, %v1729, 0
        %v1808 = vsel %vm256, %v1730, 0
        %v1811 = vsel %vm256, %v1731, 0
        %v1814 = vsel %vm256, %v1732, 0
        %v1817 = vsel %vm256, %v1733, 0
        %v1820 = vsel %vm256, %v1734, 0
        %v1823 = vsel %vm256, %v1735, 0
        %v1826 = vsel %vm256, %v1736, 0
        %v1829 = vsel %vm256, %v1737, 0
        %v1832 = vsel %vm256, %v1738, 0
        %v1835 = vsel %vm256, %v1739, 0
        %v1838 = vsel %vm256, %v1740, 0
        %v1841 = vsel %vm256, %v1741, 0
        %v1844 = vsel %vm256, %v1742, 0
        %v1847 = vsel %vm256, %v1743, 0
        %1849 = vmatpush.msra.mxu0 0.0
        %1850 = vmatpush.msra.mxu0 0.0
        %1851 = vmatpush.msra.mxu0 0.0
        %1852 = vmatpush.msra.mxu0 0.0
        %1853 = vmatpush.msra.mxu0 0.0
        %1854 = vmatpush.msra.mxu0 0.0
        %1855 = vmatpush.msra.mxu0 0.0
        %1856 = vmatpush.msra.mxu0 0.0
        %1857 = vmatpush.msra.mxu0 %v1752
        %1858 = vmatpush.msra.mxu0 %v1751
        %1859 = vmatpush.msra.mxu0 %v1750
        %1860 = vmatpush.msra.mxu0 %v1749
        %1861 = vmatpush.msra.mxu0 %v1748
        %1862 = vmatpush.msra.mxu0 %v1747
        %1863 = vmatpush.msra.mxu0 %v1746
        %1864 = vmatpush.msra.mxu0 %v1745
        %1865 = vmatmul.f32.gmra.mxu0 %v1754
        %v1866 = vpop.f32.mrf.mxu0
        %v1867 = vadd.f32 0.0, %v1866
        %1868 = vmatmul.f32.gmra.mxu0 %v1757
        %v1869 = vpop.f32.mrf.mxu0
        %v1870 = vadd.f32 0.0, %v1869
        %1871 = vmatmul.f32.gmra.mxu0 %v1760
        %v1872 = vpop.f32.mrf.mxu0
        %v1873 = vadd.f32 0.0, %v1872
        %1874 = vmatmul.f32.gmra.mxu0 %v1763
        %v1875 = vpop.f32.mrf.mxu0
        %v1876 = vadd.f32 0.0, %v1875
        %1877 = vmatmul.f32.gmra.mxu0 %v1766
        %v1878 = vpop.f32.mrf.mxu0
        %v1879 = vadd.f32 0.0, %v1878
        %1880 = vmatmul.f32.gmra.mxu0 %v1769
        %v1881 = vpop.f32.mrf.mxu0
        %v1882 = vadd.f32 0.0, %v1881
        %1883 = vmatmul.f32.gmra.mxu0 %v1772
        %v1884 = vpop.f32.mrf.mxu0
        %v1885 = vadd.f32 0.0, %v1884
        %1886 = vmatmul.f32.gmra.mxu0 %v1775
        %v1887 = vpop.f32.mrf.mxu0
        %v1888 = vadd.f32 0.0, %v1887
        %1889 = vmatmul.f32.gmra.mxu0 %v1778
        %v1890 = vpop.f32.mrf.mxu0
        %v1891 = vadd.f32 0.0, %v1890
        %1892 = vmatmul.f32.gmra.mxu0 %v1781
        %v1893 = vpop.f32.mrf.mxu0
        %v1894 = vadd.f32 0.0, %v1893
        %1895 = vmatmul.f32.gmra.mxu0 %v1784
        %v1896 = vpop.f32.mrf.mxu0
        %v1897 = vadd.f32 0.0, %v1896
        %1898 = vmatmul.f32.gmra.mxu0 %v1787
        %v1899 = vpop.f32.mrf.mxu0
        %v1900 = vadd.f32 0.0, %v1899
        %1901 = vmatmul.f32.gmra.mxu0 %v1790
        %v1902 = vpop.f32.mrf.mxu0
        %v1903 = vadd.f32 0.0, %v1902
        %1904 = vmatmul.f32.gmra.mxu0 %v1793
        %v1905 = vpop.f32.mrf.mxu0
        %v1906 = vadd.f32 0.0, %v1905
        %1907 = vmatmul.f32.gmra.mxu0 %v1796
        %v1908 = vpop.f32.mrf.mxu0
        %v1909 = vadd.f32 0.0, %v1908
        %1910 = vmatmul.f32.gmra.mxu0 %v1799
        %v1911 = vpop.f32.mrf.mxu0
        %v1912 = vadd.f32 0.0, %v1911
        %1913 = vmatmul.f32.gmra.mxu0 %v1802
        %v1914 = vpop.f32.mrf.mxu0
        %v1915 = vadd.f32 0.0, %v1914
        %1916 = vmatmul.f32.gmra.mxu0 %v1805
        %v1917 = vpop.f32.mrf.mxu0
        %v1918 = vadd.f32 0.0, %v1917
        %1919 = vmatmul.f32.gmra.mxu0 %v1808
        %v1920 = vpop.f32.mrf.mxu0
        %v1921 = vadd.f32 0.0, %v1920
        %1922 = vmatmul.f32.gmra.mxu0 %v1811
        %v1923 = vpop.f32.mrf.mxu0
        %v1924 = vadd.f32 0.0, %v1923
        %1925 = vmatmul.f32.gmra.mxu0 %v1814
        %v1926 = vpop.f32.mrf.mxu0
        %v1927 = vadd.f32 0.0, %v1926
        %1928 = vmatmul.f32.gmra.mxu0 %v1817
        %v1929 = vpop.f32.mrf.mxu0
        %v1930 = vadd.f32 0.0, %v1929
        %1931 = vmatmul.f32.gmra.mxu0 %v1820
        %v1932 = vpop.f32.mrf.mxu0
        %v1933 = vadd.f32 0.0, %v1932
        %1934 = vmatmul.f32.gmra.mxu0 %v1823
        %v1935 = vpop.f32.mrf.mxu0
        %v1936 = vadd.f32 0.0, %v1935
        %1937 = vmatmul.f32.gmra.mxu0 %v1826
        %v1938 = vpop.f32.mrf.mxu0
        %v1939 = vadd.f32 0.0, %v1938
        %1940 = vmatmul.f32.gmra.mxu0 %v1829
        %v1941 = vpop.f32.mrf.mxu0
        %v1942 = vadd.f32 0.0, %v1941
        %1943 = vmatmul.f32.gmra.mxu0 %v1832
        %v1944 = vpop.f32.mrf.mxu0
        %v1945 = vadd.f32 0.0, %v1944
        %1946 = vmatmul.f32.gmra.mxu0 %v1835
        %v1947 = vpop.f32.mrf.mxu0
        %v1948 = vadd.f32 0.0, %v1947
        %1949 = vmatmul.f32.gmra.mxu0 %v1838
        %v1950 = vpop.f32.mrf.mxu0
        %v1951 = vadd.f32 0.0, %v1950
        %1952 = vmatmul.f32.gmra.mxu0 %v1841
        %v1953 = vpop.f32.mrf.mxu0
        %v1954 = vadd.f32 0.0, %v1953
        %1955 = vmatmul.f32.gmra.mxu0 %v1844
        %v1956 = vpop.f32.mrf.mxu0
        %v1957 = vadd.f32 0.0, %v1956
        %1958 = vmatmul.f32.gmra.mxu0 %v1847
        %v1959 = vpop.f32.mrf.mxu0
        %v1960 = vadd.f32 0.0, %v1959
        %1961 = vdwg.mxu0
        %v1962 = vadd.f32 %v1680, %v1867
        %v1963 = vadd.f32 %v1681, %v1870
        %v1964 = vadd.f32 %v1682, %v1873
        %v1965 = vadd.f32 %v1683, %v1876
        %v1966 = vadd.f32 %v1684, %v1879
        %v1967 = vadd.f32 %v1685, %v1882
        %v1968 = vadd.f32 %v1686, %v1885
        %v1969 = vadd.f32 %v1687, %v1888
        %v1970 = vadd.f32 %v1688, %v1891
        %v1971 = vadd.f32 %v1689, %v1894
        %v1972 = vadd.f32 %v1690, %v1897
        %v1973 = vadd.f32 %v1691, %v1900
        %v1974 = vadd.f32 %v1692, %v1903
        %v1975 = vadd.f32 %v1693, %v1906
        %v1976 = vadd.f32 %v1694, %v1909
        %v1977 = vadd.f32 %v1695, %v1912
        %v1978 = vadd.f32 %v1696, %v1915
        %v1979 = vadd.f32 %v1697, %v1918
        %v1980 = vadd.f32 %v1698, %v1921
        %v1981 = vadd.f32 %v1699, %v1924
        %v1982 = vadd.f32 %v1700, %v1927
        %v1983 = vadd.f32 %v1701, %v1930
        %v1984 = vadd.f32 %v1702, %v1933
        %v1985 = vadd.f32 %v1703, %v1936
        %v1986 = vadd.f32 %v1704, %v1939
        %v1987 = vadd.f32 %v1705, %v1942
        %v1988 = vadd.f32 %v1706, %v1945
        %v1989 = vadd.f32 %v1707, %v1948
        %v1990 = vadd.f32 %v1708, %v1951
        %v1991 = vadd.f32 %v1709, %v1954
        %v1992 = vadd.f32 %v1710, %v1957
        %v1993 = vadd.f32 %v1711, %v1960
        %s1994 = scalar_lea.vmem [#allocation2], 48
        %v1995 = vld [vmem:[%s1994] sm:$0xff]
        %v1996 = vld [vmem:[%s1994 + $0x8] sm:$0xff]
        %v1997 = vld [vmem:[%s1994 + $0x18] sm:$0xff]
        %v1998 = vld [vmem:[%s1994 + $0x20] sm:$0xff]
        %v1999 = vld [vmem:[%s1994 + $0x30] sm:$0xff]
        %v2000 = vld [vmem:[%s1994 + $0x38] sm:$0xff]
        %v2001 = vld [vmem:[%s1994 + $0x48] sm:$0xff]
        %v2002 = vld [vmem:[%s1994 + $0x50] sm:$0xff]
        %v2003 = vld [vmem:[%s1994 + $0x60] sm:$0xff]
        %v2004 = vld [vmem:[%s1994 + $0x68] sm:$0xff]
        %v2005 = vld [vmem:[%s1994 + $0x78] sm:$0xff]
        %v2006 = vld [vmem:[%s1994 + $0x80] sm:$0xff]
        %v2007 = vld [vmem:[%s1994 + $0x90] sm:$0xff]
        %v2008 = vld [vmem:[%s1994 + $0x98] sm:$0xff]
        %v2009 = vld [vmem:[%s1994 + $0xa8] sm:$0xff]
        %v2010 = vld [vmem:[%s1994 + $0xb0] sm:$0xff]
        %v2011 = vld [vmem:[%s1994 + $0xc0] sm:$0xff]
        %v2012 = vld [vmem:[%s1994 + $0xc8] sm:$0xff]
        %v2013 = vld [vmem:[%s1994 + $0xd8] sm:$0xff]
        %v2014 = vld [vmem:[%s1994 + $0xe0] sm:$0xff]
        %v2015 = vld [vmem:[%s1994 + $0xf0] sm:$0xff]
        %v2016 = vld [vmem:[%s1994 + $0xf8] sm:$0xff]
        %v2017 = vld [vmem:[%s1994 + $0x108] sm:$0xff]
        %v2018 = vld [vmem:[%s1994 + $0x110] sm:$0xff]
        %v2019 = vld [vmem:[%s1994 + $0x120] sm:$0xff]
        %v2020 = vld [vmem:[%s1994 + $0x128] sm:$0xff]
        %v2021 = vld [vmem:[%s1994 + $0x138] sm:$0xff]
        %v2022 = vld [vmem:[%s1994 + $0x140] sm:$0xff]
        %v2023 = vld [vmem:[%s1994 + $0x150] sm:$0xff]
        %v2024 = vld [vmem:[%s1994 + $0x158] sm:$0xff]
        %v2025 = vld [vmem:[%s1994 + $0x168] sm:$0xff]
        %v2026 = vld [vmem:[%s1994 + $0x170] sm:$0xff]
        %s2027 = scalar_lea.vmem %s1, 384
        %v2028 = vld [vmem:[%s2027] sm:$0xff]
        %v2029 = vld [vmem:[%s2027 + $0x8] sm:$0xff]
        %v2030 = vld [vmem:[%s2027 + $0x10] sm:$0xff]
        %v2031 = vld [vmem:[%s2027 + $0x18] sm:$0xff]
        %v2032 = vld [vmem:[%s2027 + $0x20] sm:$0xff]
        %v2033 = vld [vmem:[%s2027 + $0x28] sm:$0xff]
        %v2034 = vld [vmem:[%s2027 + $0x30] sm:$0xff]
        %v2035 = vld [vmem:[%s2027 + $0x38] sm:$0xff]
        %v2037 = vsel %vm256, %v1995, 0
        %v2040 = vsel %vm256, %v1996, 0
        %v2043 = vsel %vm256, %v1997, 0
        %v2046 = vsel %vm256, %v1998, 0
        %v2049 = vsel %vm256, %v1999, 0
        %v2052 = vsel %vm256, %v2000, 0
        %v2055 = vsel %vm256, %v2001, 0
        %v2058 = vsel %vm256, %v2002, 0
        %v2061 = vsel %vm256, %v2003, 0
        %v2064 = vsel %vm256, %v2004, 0
        %v2067 = vsel %vm256, %v2005, 0
        %v2070 = vsel %vm256, %v2006, 0
        %v2073 = vsel %vm256, %v2007, 0
        %v2076 = vsel %vm256, %v2008, 0
        %v2079 = vsel %vm256, %v2009, 0
        %v2082 = vsel %vm256, %v2010, 0
        %v2085 = vsel %vm256, %v2011, 0
        %v2088 = vsel %vm256, %v2012, 0
        %v2091 = vsel %vm256, %v2013, 0
        %v2094 = vsel %vm256, %v2014, 0
        %v2097 = vsel %vm256, %v2015, 0
        %v2100 = vsel %vm256, %v2016, 0
        %v2103 = vsel %vm256, %v2017, 0
        %v2106 = vsel %vm256, %v2018, 0
        %v2109 = vsel %vm256, %v2019, 0
        %v2112 = vsel %vm256, %v2020, 0
        %v2115 = vsel %vm256, %v2021, 0
        %v2118 = vsel %vm256, %v2022, 0
        %v2121 = vsel %vm256, %v2023, 0
        %v2124 = vsel %vm256, %v2024, 0
        %v2127 = vsel %vm256, %v2025, 0
        %v2130 = vsel %vm256, %v2026, 0
        %2132 = vmatpush.msra.mxu0 0.0
        %2133 = vmatpush.msra.mxu0 0.0
        %2134 = vmatpush.msra.mxu0 0.0
        %2135 = vmatpush.msra.mxu0 0.0
        %2136 = vmatpush.msra.mxu0 0.0
        %2137 = vmatpush.msra.mxu0 0.0
        %2138 = vmatpush.msra.mxu0 0.0
        %2139 = vmatpush.msra.mxu0 0.0
        %2140 = vmatpush.msra.mxu0 %v2035
        %2141 = vmatpush.msra.mxu0 %v2034
        %2142 = vmatpush.msra.mxu0 %v2033
        %2143 = vmatpush.msra.mxu0 %v2032
        %2144 = vmatpush.msra.mxu0 %v2031
        %2145 = vmatpush.msra.mxu0 %v2030
        %2146 = vmatpush.msra.mxu0 %v2029
        %2147 = vmatpush.msra.mxu0 %v2028
        %2148 = vmatmul.f32.gmra.mxu0 %v2037
        %v2149 = vpop.f32.mrf.mxu0
        %v2150 = vadd.f32 0.0, %v2149
        %2151 = vmatmul.f32.gmra.mxu0 %v2040
        %v2152 = vpop.f32.mrf.mxu0
        %v2153 = vadd.f32 0.0, %v2152
        %2154 = vmatmul.f32.gmra.mxu0 %v2043
        %v2155 = vpop.f32.mrf.mxu0
        %v2156 = vadd.f32 0.0, %v2155
        %2157 = vmatmul.f32.gmra.mxu0 %v2046
        %v2158 = vpop.f32.mrf.mxu0
        %v2159 = vadd.f32 0.0, %v2158
        %2160 = vmatmul.f32.gmra.mxu0 %v2049
        %v2161 = vpop.f32.mrf.mxu0
        %v2162 = vadd.f32 0.0, %v2161
        %2163 = vmatmul.f32.gmra.mxu0 %v2052
        %v2164 = vpop.f32.mrf.mxu0
        %v2165 = vadd.f32 0.0, %v2164
        %2166 = vmatmul.f32.gmra.mxu0 %v2055
        %v2167 = vpop.f32.mrf.mxu0
        %v2168 = vadd.f32 0.0, %v2167
        %2169 = vmatmul.f32.gmra.mxu0 %v2058
        %v2170 = vpop.f32.mrf.mxu0
        %v2171 = vadd.f32 0.0, %v2170
        %2172 = vmatmul.f32.gmra.mxu0 %v2061
        %v2173 = vpop.f32.mrf.mxu0
        %v2174 = vadd.f32 0.0, %v2173
        %2175 = vmatmul.f32.gmra.mxu0 %v2064
        %v2176 = vpop.f32.mrf.mxu0
        %v2177 = vadd.f32 0.0, %v2176
        %2178 = vmatmul.f32.gmra.mxu0 %v2067
        %v2179 = vpop.f32.mrf.mxu0
        %v2180 = vadd.f32 0.0, %v2179
        %2181 = vmatmul.f32.gmra.mxu0 %v2070
        %v2182 = vpop.f32.mrf.mxu0
        %v2183 = vadd.f32 0.0, %v2182
        %2184 = vmatmul.f32.gmra.mxu0 %v2073
        %v2185 = vpop.f32.mrf.mxu0
        %v2186 = vadd.f32 0.0, %v2185
        %2187 = vmatmul.f32.gmra.mxu0 %v2076
        %v2188 = vpop.f32.mrf.mxu0
        %v2189 = vadd.f32 0.0, %v2188
        %2190 = vmatmul.f32.gmra.mxu0 %v2079
        %v2191 = vpop.f32.mrf.mxu0
        %v2192 = vadd.f32 0.0, %v2191
        %2193 = vmatmul.f32.gmra.mxu0 %v2082
        %v2194 = vpop.f32.mrf.mxu0
        %v2195 = vadd.f32 0.0, %v2194
        %2196 = vmatmul.f32.gmra.mxu0 %v2085
        %v2197 = vpop.f32.mrf.mxu0
        %v2198 = vadd.f32 0.0, %v2197
        %2199 = vmatmul.f32.gmra.mxu0 %v2088
        %v2200 = vpop.f32.mrf.mxu0
        %v2201 = vadd.f32 0.0, %v2200
        %2202 = vmatmul.f32.gmra.mxu0 %v2091
        %v2203 = vpop.f32.mrf.mxu0
        %v2204 = vadd.f32 0.0, %v2203
        %2205 = vmatmul.f32.gmra.mxu0 %v2094
        %v2206 = vpop.f32.mrf.mxu0
        %v2207 = vadd.f32 0.0, %v2206
        %2208 = vmatmul.f32.gmra.mxu0 %v2097
        %v2209 = vpop.f32.mrf.mxu0
        %v2210 = vadd.f32 0.0, %v2209
        %2211 = vmatmul.f32.gmra.mxu0 %v2100
        %v2212 = vpop.f32.mrf.mxu0
        %v2213 = vadd.f32 0.0, %v2212
        %2214 = vmatmul.f32.gmra.mxu0 %v2103
        %v2215 = vpop.f32.mrf.mxu0
        %v2216 = vadd.f32 0.0, %v2215
        %2217 = vmatmul.f32.gmra.mxu0 %v2106
        %v2218 = vpop.f32.mrf.mxu0
        %v2219 = vadd.f32 0.0, %v2218
        %2220 = vmatmul.f32.gmra.mxu0 %v2109
        %v2221 = vpop.f32.mrf.mxu0
        %v2222 = vadd.f32 0.0, %v2221
        %2223 = vmatmul.f32.gmra.mxu0 %v2112
        %v2224 = vpop.f32.mrf.mxu0
        %v2225 = vadd.f32 0.0, %v2224
        %2226 = vmatmul.f32.gmra.mxu0 %v2115
        %v2227 = vpop.f32.mrf.mxu0
        %v2228 = vadd.f32 0.0, %v2227
        %2229 = vmatmul.f32.gmra.mxu0 %v2118
        %v2230 = vpop.f32.mrf.mxu0
        %v2231 = vadd.f32 0.0, %v2230
        %2232 = vmatmul.f32.gmra.mxu0 %v2121
        %v2233 = vpop.f32.mrf.mxu0
        %v2234 = vadd.f32 0.0, %v2233
        %2235 = vmatmul.f32.gmra.mxu0 %v2124
        %v2236 = vpop.f32.mrf.mxu0
        %v2237 = vadd.f32 0.0, %v2236
        %2238 = vmatmul.f32.gmra.mxu0 %v2127
        %v2239 = vpop.f32.mrf.mxu0
        %v2240 = vadd.f32 0.0, %v2239
        %2241 = vmatmul.f32.gmra.mxu0 %v2130
        %v2242 = vpop.f32.mrf.mxu0
        %v2243 = vadd.f32 0.0, %v2242
        %2244 = vdwg.mxu0
        %v2245 = vadd.f32 %v1962, %v2150
        %v2246 = vadd.f32 %v1963, %v2153
        %v2247 = vadd.f32 %v1964, %v2156
        %v2248 = vadd.f32 %v1965, %v2159
        %v2249 = vadd.f32 %v1966, %v2162
        %v2250 = vadd.f32 %v1967, %v2165
        %v2251 = vadd.f32 %v1968, %v2168
        %v2252 = vadd.f32 %v1969, %v2171
        %v2253 = vadd.f32 %v1970, %v2174
        %v2254 = vadd.f32 %v1971, %v2177
        %v2255 = vadd.f32 %v1972, %v2180
        %v2256 = vadd.f32 %v1973, %v2183
        %v2257 = vadd.f32 %v1974, %v2186
        %v2258 = vadd.f32 %v1975, %v2189
        %v2259 = vadd.f32 %v1976, %v2192
        %v2260 = vadd.f32 %v1977, %v2195
        %v2261 = vadd.f32 %v1978, %v2198
        %v2262 = vadd.f32 %v1979, %v2201
        %v2263 = vadd.f32 %v1980, %v2204
        %v2264 = vadd.f32 %v1981, %v2207
        %v2265 = vadd.f32 %v1982, %v2210
        %v2266 = vadd.f32 %v1983, %v2213
        %v2267 = vadd.f32 %v1984, %v2216
        %v2268 = vadd.f32 %v1985, %v2219
        %v2269 = vadd.f32 %v1986, %v2222
        %v2270 = vadd.f32 %v1987, %v2225
        %v2271 = vadd.f32 %v1988, %v2228
        %v2272 = vadd.f32 %v1989, %v2231
        %v2273 = vadd.f32 %v1990, %v2234
        %v2274 = vadd.f32 %v1991, %v2237
        %v2275 = vadd.f32 %v1992, %v2240
        %v2276 = vadd.f32 %v1993, %v2243
        %v2277 = vld [vmem:[%s1994 + $0x1] sm:$0xff]
        %v2278 = vld [vmem:[%s1994 + $0x9] sm:$0xff]
        %v2279 = vld [vmem:[%s1994 + $0x19] sm:$0xff]
        %v2280 = vld [vmem:[%s1994 + $0x21] sm:$0xff]
        %v2281 = vld [vmem:[%s1994 + $0x31] sm:$0xff]
        %v2282 = vld [vmem:[%s1994 + $0x39] sm:$0xff]
        %v2283 = vld [vmem:[%s1994 + $0x49] sm:$0xff]
        %v2284 = vld [vmem:[%s1994 + $0x51] sm:$0xff]
        %v2285 = vld [vmem:[%s1994 + $0x61] sm:$0xff]
        %v2286 = vld [vmem:[%s1994 + $0x69] sm:$0xff]
        %v2287 = vld [vmem:[%s1994 + $0x79] sm:$0xff]
        %v2288 = vld [vmem:[%s1994 + $0x81] sm:$0xff]
        %v2289 = vld [vmem:[%s1994 + $0x91] sm:$0xff]
        %v2290 = vld [vmem:[%s1994 + $0x99] sm:$0xff]
        %v2291 = vld [vmem:[%s1994 + $0xa9] sm:$0xff]
        %v2292 = vld [vmem:[%s1994 + $0xb1] sm:$0xff]
        %v2293 = vld [vmem:[%s1994 + $0xc1] sm:$0xff]
        %v2294 = vld [vmem:[%s1994 + $0xc9] sm:$0xff]
        %v2295 = vld [vmem:[%s1994 + $0xd9] sm:$0xff]
        %v2296 = vld [vmem:[%s1994 + $0xe1] sm:$0xff]
        %v2297 = vld [vmem:[%s1994 + $0xf1] sm:$0xff]
        %v2298 = vld [vmem:[%s1994 + $0xf9] sm:$0xff]
        %v2299 = vld [vmem:[%s1994 + $0x109] sm:$0xff]
        %v2300 = vld [vmem:[%s1994 + $0x111] sm:$0xff]
        %v2301 = vld [vmem:[%s1994 + $0x121] sm:$0xff]
        %v2302 = vld [vmem:[%s1994 + $0x129] sm:$0xff]
        %v2303 = vld [vmem:[%s1994 + $0x139] sm:$0xff]
        %v2304 = vld [vmem:[%s1994 + $0x141] sm:$0xff]
        %v2305 = vld [vmem:[%s1994 + $0x151] sm:$0xff]
        %v2306 = vld [vmem:[%s1994 + $0x159] sm:$0xff]
        %v2307 = vld [vmem:[%s1994 + $0x169] sm:$0xff]
        %v2308 = vld [vmem:[%s1994 + $0x171] sm:$0xff]
        %s2309 = scalar_lea.vmem %s1, 448
        %v2310 = vld [vmem:[%s2309] sm:$0xff]
        %v2311 = vld [vmem:[%s2309 + $0x8] sm:$0xff]
        %v2312 = vld [vmem:[%s2309 + $0x10] sm:$0xff]
        %v2313 = vld [vmem:[%s2309 + $0x18] sm:$0xff]
        %v2314 = vld [vmem:[%s2309 + $0x20] sm:$0xff]
        %v2315 = vld [vmem:[%s2309 + $0x28] sm:$0xff]
        %v2316 = vld [vmem:[%s2309 + $0x30] sm:$0xff]
        %v2317 = vld [vmem:[%s2309 + $0x38] sm:$0xff]
        %v2319 = vsel %vm256, %v2277, 0
        %v2322 = vsel %vm256, %v2278, 0
        %v2325 = vsel %vm256, %v2279, 0
        %v2328 = vsel %vm256, %v2280, 0
        %v2331 = vsel %vm256, %v2281, 0
        %v2334 = vsel %vm256, %v2282, 0
        %v2337 = vsel %vm256, %v2283, 0
        %v2340 = vsel %vm256, %v2284, 0
        %v2343 = vsel %vm256, %v2285, 0
        %v2346 = vsel %vm256, %v2286, 0
        %v2349 = vsel %vm256, %v2287, 0
        %v2352 = vsel %vm256, %v2288, 0
        %v2355 = vsel %vm256, %v2289, 0
        %v2358 = vsel %vm256, %v2290, 0
        %v2361 = vsel %vm256, %v2291, 0
        %v2364 = vsel %vm256, %v2292, 0
        %v2367 = vsel %vm256, %v2293, 0
        %v2370 = vsel %vm256, %v2294, 0
        %v2373 = vsel %vm256, %v2295, 0
        %v2376 = vsel %vm256, %v2296, 0
        %v2379 = vsel %vm256, %v2297, 0
        %v2382 = vsel %vm256, %v2298, 0
        %v2385 = vsel %vm256, %v2299, 0
        %v2388 = vsel %vm256, %v2300, 0
        %v2391 = vsel %vm256, %v2301, 0
        %v2394 = vsel %vm256, %v2302, 0
        %v2397 = vsel %vm256, %v2303, 0
        %v2400 = vsel %vm256, %v2304, 0
        %v2403 = vsel %vm256, %v2305, 0
        %v2406 = vsel %vm256, %v2306, 0
        %v2409 = vsel %vm256, %v2307, 0
        %v2412 = vsel %vm256, %v2308, 0
        %2414 = vmatpush.msra.mxu0 0.0
        %2415 = vmatpush.msra.mxu0 0.0
        %2416 = vmatpush.msra.mxu0 0.0
        %2417 = vmatpush.msra.mxu0 0.0
        %2418 = vmatpush.msra.mxu0 0.0
        %2419 = vmatpush.msra.mxu0 0.0
        %2420 = vmatpush.msra.mxu0 0.0
        %2421 = vmatpush.msra.mxu0 0.0
        %2422 = vmatpush.msra.mxu0 %v2317
        %2423 = vmatpush.msra.mxu0 %v2316
        %2424 = vmatpush.msra.mxu0 %v2315
        %2425 = vmatpush.msra.mxu0 %v2314
        %2426 = vmatpush.msra.mxu0 %v2313
        %2427 = vmatpush.msra.mxu0 %v2312
        %2428 = vmatpush.msra.mxu0 %v2311
        %2429 = vmatpush.msra.mxu0 %v2310
        %2430 = vmatmul.f32.gmra.mxu0 %v2319
        %v2431 = vpop.f32.mrf.mxu0
        %v2432 = vadd.f32 0.0, %v2431
        %2433 = vmatmul.f32.gmra.mxu0 %v2322
        %v2434 = vpop.f32.mrf.mxu0
        %v2435 = vadd.f32 0.0, %v2434
        %2436 = vmatmul.f32.gmra.mxu0 %v2325
        %v2437 = vpop.f32.mrf.mxu0
        %v2438 = vadd.f32 0.0, %v2437
        %2439 = vmatmul.f32.gmra.mxu0 %v2328
        %v2440 = vpop.f32.mrf.mxu0
        %v2441 = vadd.f32 0.0, %v2440
        %2442 = vmatmul.f32.gmra.mxu0 %v2331
        %v2443 = vpop.f32.mrf.mxu0
        %v2444 = vadd.f32 0.0, %v2443
        %2445 = vmatmul.f32.gmra.mxu0 %v2334
        %v2446 = vpop.f32.mrf.mxu0
        %v2447 = vadd.f32 0.0, %v2446
        %2448 = vmatmul.f32.gmra.mxu0 %v2337
        %v2449 = vpop.f32.mrf.mxu0
        %v2450 = vadd.f32 0.0, %v2449
        %2451 = vmatmul.f32.gmra.mxu0 %v2340
        %v2452 = vpop.f32.mrf.mxu0
        %v2453 = vadd.f32 0.0, %v2452
        %2454 = vmatmul.f32.gmra.mxu0 %v2343
        %v2455 = vpop.f32.mrf.mxu0
        %v2456 = vadd.f32 0.0, %v2455
        %2457 = vmatmul.f32.gmra.mxu0 %v2346
        %v2458 = vpop.f32.mrf.mxu0
        %v2459 = vadd.f32 0.0, %v2458
        %2460 = vmatmul.f32.gmra.mxu0 %v2349
        %v2461 = vpop.f32.mrf.mxu0
        %v2462 = vadd.f32 0.0, %v2461
        %2463 = vmatmul.f32.gmra.mxu0 %v2352
        %v2464 = vpop.f32.mrf.mxu0
        %v2465 = vadd.f32 0.0, %v2464
        %2466 = vmatmul.f32.gmra.mxu0 %v2355
        %v2467 = vpop.f32.mrf.mxu0
        %v2468 = vadd.f32 0.0, %v2467
        %2469 = vmatmul.f32.gmra.mxu0 %v2358
        %v2470 = vpop.f32.mrf.mxu0
        %v2471 = vadd.f32 0.0, %v2470
        %2472 = vmatmul.f32.gmra.mxu0 %v2361
        %v2473 = vpop.f32.mrf.mxu0
        %v2474 = vadd.f32 0.0, %v2473
        %2475 = vmatmul.f32.gmra.mxu0 %v2364
        %v2476 = vpop.f32.mrf.mxu0
        %v2477 = vadd.f32 0.0, %v2476
        %2478 = vmatmul.f32.gmra.mxu0 %v2367
        %v2479 = vpop.f32.mrf.mxu0
        %v2480 = vadd.f32 0.0, %v2479
        %2481 = vmatmul.f32.gmra.mxu0 %v2370
        %v2482 = vpop.f32.mrf.mxu0
        %v2483 = vadd.f32 0.0, %v2482
        %2484 = vmatmul.f32.gmra.mxu0 %v2373
        %v2485 = vpop.f32.mrf.mxu0
        %v2486 = vadd.f32 0.0, %v2485
        %2487 = vmatmul.f32.gmra.mxu0 %v2376
        %v2488 = vpop.f32.mrf.mxu0
        %v2489 = vadd.f32 0.0, %v2488
        %2490 = vmatmul.f32.gmra.mxu0 %v2379
        %v2491 = vpop.f32.mrf.mxu0
        %v2492 = vadd.f32 0.0, %v2491
        %2493 = vmatmul.f32.gmra.mxu0 %v2382
        %v2494 = vpop.f32.mrf.mxu0
        %v2495 = vadd.f32 0.0, %v2494
        %2496 = vmatmul.f32.gmra.mxu0 %v2385
        %v2497 = vpop.f32.mrf.mxu0
        %v2498 = vadd.f32 0.0, %v2497
        %2499 = vmatmul.f32.gmra.mxu0 %v2388
        %v2500 = vpop.f32.mrf.mxu0
        %v2501 = vadd.f32 0.0, %v2500
        %2502 = vmatmul.f32.gmra.mxu0 %v2391
        %v2503 = vpop.f32.mrf.mxu0
        %v2504 = vadd.f32 0.0, %v2503
        %2505 = vmatmul.f32.gmra.mxu0 %v2394
        %v2506 = vpop.f32.mrf.mxu0
        %v2507 = vadd.f32 0.0, %v2506
        %2508 = vmatmul.f32.gmra.mxu0 %v2397
        %v2509 = vpop.f32.mrf.mxu0
        %v2510 = vadd.f32 0.0, %v2509
        %2511 = vmatmul.f32.gmra.mxu0 %v2400
        %v2512 = vpop.f32.mrf.mxu0
        %v2513 = vadd.f32 0.0, %v2512
        %2514 = vmatmul.f32.gmra.mxu0 %v2403
        %v2515 = vpop.f32.mrf.mxu0
        %v2516 = vadd.f32 0.0, %v2515
        %2517 = vmatmul.f32.gmra.mxu0 %v2406
        %v2518 = vpop.f32.mrf.mxu0
        %v2519 = vadd.f32 0.0, %v2518
        %2520 = vmatmul.f32.gmra.mxu0 %v2409
        %v2521 = vpop.f32.mrf.mxu0
        %v2522 = vadd.f32 0.0, %v2521
        %2523 = vmatmul.f32.gmra.mxu0 %v2412
        %v2524 = vpop.f32.mrf.mxu0
        %v2525 = vadd.f32 0.0, %v2524
        %2526 = vdwg.mxu0
        %v2527 = vadd.f32 %v2245, %v2432
        %v2528 = vadd.f32 %v2246, %v2435
        %v2529 = vadd.f32 %v2247, %v2438
        %v2530 = vadd.f32 %v2248, %v2441
        %v2531 = vadd.f32 %v2249, %v2444
        %v2532 = vadd.f32 %v2250, %v2447
        %v2533 = vadd.f32 %v2251, %v2450
        %v2534 = vadd.f32 %v2252, %v2453
        %v2535 = vadd.f32 %v2253, %v2456
        %v2536 = vadd.f32 %v2254, %v2459
        %v2537 = vadd.f32 %v2255, %v2462
        %v2538 = vadd.f32 %v2256, %v2465
        %v2539 = vadd.f32 %v2257, %v2468
        %v2540 = vadd.f32 %v2258, %v2471
        %v2541 = vadd.f32 %v2259, %v2474
        %v2542 = vadd.f32 %v2260, %v2477
        %v2543 = vadd.f32 %v2261, %v2480
        %v2544 = vadd.f32 %v2262, %v2483
        %v2545 = vadd.f32 %v2263, %v2486
        %v2546 = vadd.f32 %v2264, %v2489
        %v2547 = vadd.f32 %v2265, %v2492
        %v2548 = vadd.f32 %v2266, %v2495
        %v2549 = vadd.f32 %v2267, %v2498
        %v2550 = vadd.f32 %v2268, %v2501
        %v2551 = vadd.f32 %v2269, %v2504
        %v2552 = vadd.f32 %v2270, %v2507
        %v2553 = vadd.f32 %v2271, %v2510
        %v2554 = vadd.f32 %v2272, %v2513
        %v2555 = vadd.f32 %v2273, %v2516
        %v2556 = vadd.f32 %v2274, %v2519
        %v2557 = vadd.f32 %v2275, %v2522
        %v2558 = vadd.f32 %v2276, %v2525
        %v2559 = vld [vmem:[%s1994 + $0x2] sm:$0xff]
        %v2560 = vld [vmem:[%s1994 + $0xa] sm:$0xff]
        %v2561 = vld [vmem:[%s1994 + $0x1a] sm:$0xff]
        %v2562 = vld [vmem:[%s1994 + $0x22] sm:$0xff]
        %v2563 = vld [vmem:[%s1994 + $0x32] sm:$0xff]
        %v2564 = vld [vmem:[%s1994 + $0x3a] sm:$0xff]
        %v2565 = vld [vmem:[%s1994 + $0x4a] sm:$0xff]
        %v2566 = vld [vmem:[%s1994 + $0x52] sm:$0xff]
        %v2567 = vld [vmem:[%s1994 + $0x62] sm:$0xff]
        %v2568 = vld [vmem:[%s1994 + $0x6a] sm:$0xff]
        %v2569 = vld [vmem:[%s1994 + $0x7a] sm:$0xff]
        %v2570 = vld [vmem:[%s1994 + $0x82] sm:$0xff]
        %v2571 = vld [vmem:[%s1994 + $0x92] sm:$0xff]
        %v2572 = vld [vmem:[%s1994 + $0x9a] sm:$0xff]
        %v2573 = vld [vmem:[%s1994 + $0xaa] sm:$0xff]
        %v2574 = vld [vmem:[%s1994 + $0xb2] sm:$0xff]
        %v2575 = vld [vmem:[%s1994 + $0xc2] sm:$0xff]
        %v2576 = vld [vmem:[%s1994 + $0xca] sm:$0xff]
        %v2577 = vld [vmem:[%s1994 + $0xda] sm:$0xff]
        %v2578 = vld [vmem:[%s1994 + $0xe2] sm:$0xff]
        %v2579 = vld [vmem:[%s1994 + $0xf2] sm:$0xff]
        %v2580 = vld [vmem:[%s1994 + $0xfa] sm:$0xff]
        %v2581 = vld [vmem:[%s1994 + $0x10a] sm:$0xff]
        %v2582 = vld [vmem:[%s1994 + $0x112] sm:$0xff]
        %v2583 = vld [vmem:[%s1994 + $0x122] sm:$0xff]
        %v2584 = vld [vmem:[%s1994 + $0x12a] sm:$0xff]
        %v2585 = vld [vmem:[%s1994 + $0x13a] sm:$0xff]
        %v2586 = vld [vmem:[%s1994 + $0x142] sm:$0xff]
        %v2587 = vld [vmem:[%s1994 + $0x152] sm:$0xff]
        %v2588 = vld [vmem:[%s1994 + $0x15a] sm:$0xff]
        %v2589 = vld [vmem:[%s1994 + $0x16a] sm:$0xff]
        %v2590 = vld [vmem:[%s1994 + $0x172] sm:$0xff]
        %s2591 = scalar_lea.vmem %s1, 512
        %v2592 = vld [vmem:[%s2591] sm:$0xff]
        %v2593 = vld [vmem:[%s2591 + $0x8] sm:$0xff]
        %v2594 = vld [vmem:[%s2591 + $0x10] sm:$0xff]
        %v2595 = vld [vmem:[%s2591 + $0x18] sm:$0xff]
        %v2596 = vld [vmem:[%s2591 + $0x20] sm:$0xff]
        %v2597 = vld [vmem:[%s2591 + $0x28] sm:$0xff]
        %v2598 = vld [vmem:[%s2591 + $0x30] sm:$0xff]
        %v2599 = vld [vmem:[%s2591 + $0x38] sm:$0xff]
        %v2601 = vsel %vm256, %v2559, 0
        %v2604 = vsel %vm256, %v2560, 0
        %v2607 = vsel %vm256, %v2561, 0
        %v2610 = vsel %vm256, %v2562, 0
        %v2613 = vsel %vm256, %v2563, 0
        %v2616 = vsel %vm256, %v2564, 0
        %v2619 = vsel %vm256, %v2565, 0
        %v2622 = vsel %vm256, %v2566, 0
        %v2625 = vsel %vm256, %v2567, 0
        %v2628 = vsel %vm256, %v2568, 0
        %v2631 = vsel %vm256, %v2569, 0
        %v2634 = vsel %vm256, %v2570, 0
        %v2637 = vsel %vm256, %v2571, 0
        %v2640 = vsel %vm256, %v2572, 0
        %v2643 = vsel %vm256, %v2573, 0
        %v2646 = vsel %vm256, %v2574, 0
        %v2649 = vsel %vm256, %v2575, 0
        %v2652 = vsel %vm256, %v2576, 0
        %v2655 = vsel %vm256, %v2577, 0
        %v2658 = vsel %vm256, %v2578, 0
        %v2661 = vsel %vm256, %v2579, 0
        %v2664 = vsel %vm256, %v2580, 0
        %v2667 = vsel %vm256, %v2581, 0
        %v2670 = vsel %vm256, %v2582, 0
        %v2673 = vsel %vm256, %v2583, 0
        %v2676 = vsel %vm256, %v2584, 0
        %v2679 = vsel %vm256, %v2585, 0
        %v2682 = vsel %vm256, %v2586, 0
        %v2685 = vsel %vm256, %v2587, 0
        %v2688 = vsel %vm256, %v2588, 0
        %v2691 = vsel %vm256, %v2589, 0
        %v2694 = vsel %vm256, %v2590, 0
        %2696 = vmatpush.msra.mxu0 0.0
        %2697 = vmatpush.msra.mxu0 0.0
        %2698 = vmatpush.msra.mxu0 0.0
        %2699 = vmatpush.msra.mxu0 0.0
        %2700 = vmatpush.msra.mxu0 0.0
        %2701 = vmatpush.msra.mxu0 0.0
        %2702 = vmatpush.msra.mxu0 0.0
        %2703 = vmatpush.msra.mxu0 0.0
        %2704 = vmatpush.msra.mxu0 %v2599
        %2705 = vmatpush.msra.mxu0 %v2598
        %2706 = vmatpush.msra.mxu0 %v2597
        %2707 = vmatpush.msra.mxu0 %v2596
        %2708 = vmatpush.msra.mxu0 %v2595
        %2709 = vmatpush.msra.mxu0 %v2594
        %2710 = vmatpush.msra.mxu0 %v2593
        %2711 = vmatpush.msra.mxu0 %v2592
        %2712 = vmatmul.f32.gmra.mxu0 %v2601
        %v2713 = vpop.f32.mrf.mxu0
        %v2714 = vadd.f32 0.0, %v2713
        %2715 = vmatmul.f32.gmra.mxu0 %v2604
        %v2716 = vpop.f32.mrf.mxu0
        %v2717 = vadd.f32 0.0, %v2716
        %2718 = vmatmul.f32.gmra.mxu0 %v2607
        %v2719 = vpop.f32.mrf.mxu0
        %v2720 = vadd.f32 0.0, %v2719
        %2721 = vmatmul.f32.gmra.mxu0 %v2610
        %v2722 = vpop.f32.mrf.mxu0
        %v2723 = vadd.f32 0.0, %v2722
        %2724 = vmatmul.f32.gmra.mxu0 %v2613
        %v2725 = vpop.f32.mrf.mxu0
        %v2726 = vadd.f32 0.0, %v2725
        %2727 = vmatmul.f32.gmra.mxu0 %v2616
        %v2728 = vpop.f32.mrf.mxu0
        %v2729 = vadd.f32 0.0, %v2728
        %2730 = vmatmul.f32.gmra.mxu0 %v2619
        %v2731 = vpop.f32.mrf.mxu0
        %v2732 = vadd.f32 0.0, %v2731
        %2733 = vmatmul.f32.gmra.mxu0 %v2622
        %v2734 = vpop.f32.mrf.mxu0
        %v2735 = vadd.f32 0.0, %v2734
        %2736 = vmatmul.f32.gmra.mxu0 %v2625
        %v2737 = vpop.f32.mrf.mxu0
        %v2738 = vadd.f32 0.0, %v2737
        %2739 = vmatmul.f32.gmra.mxu0 %v2628
        %v2740 = vpop.f32.mrf.mxu0
        %v2741 = vadd.f32 0.0, %v2740
        %2742 = vmatmul.f32.gmra.mxu0 %v2631
        %v2743 = vpop.f32.mrf.mxu0
        %v2744 = vadd.f32 0.0, %v2743
        %2745 = vmatmul.f32.gmra.mxu0 %v2634
        %v2746 = vpop.f32.mrf.mxu0
        %v2747 = vadd.f32 0.0, %v2746
        %2748 = vmatmul.f32.gmra.mxu0 %v2637
        %v2749 = vpop.f32.mrf.mxu0
        %v2750 = vadd.f32 0.0, %v2749
        %2751 = vmatmul.f32.gmra.mxu0 %v2640
        %v2752 = vpop.f32.mrf.mxu0
        %v2753 = vadd.f32 0.0, %v2752
        %2754 = vmatmul.f32.gmra.mxu0 %v2643
        %v2755 = vpop.f32.mrf.mxu0
        %v2756 = vadd.f32 0.0, %v2755
        %2757 = vmatmul.f32.gmra.mxu0 %v2646
        %v2758 = vpop.f32.mrf.mxu0
        %v2759 = vadd.f32 0.0, %v2758
        %2760 = vmatmul.f32.gmra.mxu0 %v2649
        %v2761 = vpop.f32.mrf.mxu0
        %v2762 = vadd.f32 0.0, %v2761
        %2763 = vmatmul.f32.gmra.mxu0 %v2652
        %v2764 = vpop.f32.mrf.mxu0
        %v2765 = vadd.f32 0.0, %v2764
        %2766 = vmatmul.f32.gmra.mxu0 %v2655
        %v2767 = vpop.f32.mrf.mxu0
        %v2768 = vadd.f32 0.0, %v2767
        %2769 = vmatmul.f32.gmra.mxu0 %v2658
        %v2770 = vpop.f32.mrf.mxu0
        %v2771 = vadd.f32 0.0, %v2770
        %2772 = vmatmul.f32.gmra.mxu0 %v2661
        %v2773 = vpop.f32.mrf.mxu0
        %v2774 = vadd.f32 0.0, %v2773
        %2775 = vmatmul.f32.gmra.mxu0 %v2664
        %v2776 = vpop.f32.mrf.mxu0
        %v2777 = vadd.f32 0.0, %v2776
        %2778 = vmatmul.f32.gmra.mxu0 %v2667
        %v2779 = vpop.f32.mrf.mxu0
        %v2780 = vadd.f32 0.0, %v2779
        %2781 = vmatmul.f32.gmra.mxu0 %v2670
        %v2782 = vpop.f32.mrf.mxu0
        %v2783 = vadd.f32 0.0, %v2782
        %2784 = vmatmul.f32.gmra.mxu0 %v2673
        %v2785 = vpop.f32.mrf.mxu0
        %v2786 = vadd.f32 0.0, %v2785
        %2787 = vmatmul.f32.gmra.mxu0 %v2676
        %v2788 = vpop.f32.mrf.mxu0
        %v2789 = vadd.f32 0.0, %v2788
        %2790 = vmatmul.f32.gmra.mxu0 %v2679
        %v2791 = vpop.f32.mrf.mxu0
        %v2792 = vadd.f32 0.0, %v2791
        %2793 = vmatmul.f32.gmra.mxu0 %v2682
        %v2794 = vpop.f32.mrf.mxu0
        %v2795 = vadd.f32 0.0, %v2794
        %2796 = vmatmul.f32.gmra.mxu0 %v2685
        %v2797 = vpop.f32.mrf.mxu0
        %v2798 = vadd.f32 0.0, %v2797
        %2799 = vmatmul.f32.gmra.mxu0 %v2688
        %v2800 = vpop.f32.mrf.mxu0
        %v2801 = vadd.f32 0.0, %v2800
        %2802 = vmatmul.f32.gmra.mxu0 %v2691
        %v2803 = vpop.f32.mrf.mxu0
        %v2804 = vadd.f32 0.0, %v2803
        %2805 = vmatmul.f32.gmra.mxu0 %v2694
        %v2806 = vpop.f32.mrf.mxu0
        %v2807 = vadd.f32 0.0, %v2806
        %2808 = vdwg.mxu0
        %v2809 = vadd.f32 %v2527, %v2714
        %v2810 = vadd.f32 %v2528, %v2717
        %v2811 = vadd.f32 %v2529, %v2720
        %v2812 = vadd.f32 %v2530, %v2723
        %v2813 = vadd.f32 %v2531, %v2726
        %v2814 = vadd.f32 %v2532, %v2729
        %v2815 = vadd.f32 %v2533, %v2732
        %v2816 = vadd.f32 %v2534, %v2735
        %v2817 = vadd.f32 %v2535, %v2738
        %v2818 = vadd.f32 %v2536, %v2741
        %v2819 = vadd.f32 %v2537, %v2744
        %v2820 = vadd.f32 %v2538, %v2747
        %v2821 = vadd.f32 %v2539, %v2750
        %v2822 = vadd.f32 %v2540, %v2753
        %v2823 = vadd.f32 %v2541, %v2756
        %v2824 = vadd.f32 %v2542, %v2759
        %v2825 = vadd.f32 %v2543, %v2762
        %v2826 = vadd.f32 %v2544, %v2765
        %v2827 = vadd.f32 %v2545, %v2768
        %v2828 = vadd.f32 %v2546, %v2771
        %v2829 = vadd.f32 %v2547, %v2774
        %v2830 = vadd.f32 %v2548, %v2777
        %v2831 = vadd.f32 %v2549, %v2780
        %v2832 = vadd.f32 %v2550, %v2783
        %v2833 = vadd.f32 %v2551, %v2786
        %v2834 = vadd.f32 %v2552, %v2789
        %v2835 = vadd.f32 %v2553, %v2792
        %v2836 = vadd.f32 %v2554, %v2795
        %v2837 = vadd.f32 %v2555, %v2798
        %v2838 = vadd.f32 %v2556, %v2801
        %v2839 = vadd.f32 %v2557, %v2804
        %v2840 = vadd.f32 %v2558, %v2807
        %v2841 = vld [vmem:[%s2] sm:$0x1]
        %v2843 = vperm.slane %v2841, 0
        %v2845 = vadd.f32 %v2809, %v2843
        %v2846 = vadd.f32 %v2810, %v2843
        %v2847 = vadd.f32 %v2811, %v2843
        %v2848 = vadd.f32 %v2812, %v2843
        %v2849 = vadd.f32 %v2813, %v2843
        %v2850 = vadd.f32 %v2814, %v2843
        %v2851 = vadd.f32 %v2815, %v2843
        %v2852 = vadd.f32 %v2816, %v2843
        %v2853 = vadd.f32 %v2817, %v2843
        %v2854 = vadd.f32 %v2818, %v2843
        %v2855 = vadd.f32 %v2819, %v2843
        %v2856 = vadd.f32 %v2820, %v2843
        %v2857 = vadd.f32 %v2821, %v2843
        %v2858 = vadd.f32 %v2822, %v2843
        %v2859 = vadd.f32 %v2823, %v2843
        %v2860 = vadd.f32 %v2824, %v2843
        %v2861 = vadd.f32 %v2825, %v2843
        %v2862 = vadd.f32 %v2826, %v2843
        %v2863 = vadd.f32 %v2827, %v2843
        %v2864 = vadd.f32 %v2828, %v2843
        %v2865 = vadd.f32 %v2829, %v2843
        %v2866 = vadd.f32 %v2830, %v2843
        %v2867 = vadd.f32 %v2831, %v2843
        %v2868 = vadd.f32 %v2832, %v2843
        %v2869 = vadd.f32 %v2833, %v2843
        %v2870 = vadd.f32 %v2834, %v2843
        %v2871 = vadd.f32 %v2835, %v2843
        %v2872 = vadd.f32 %v2836, %v2843
        %v2873 = vadd.f32 %v2837, %v2843
        %v2874 = vadd.f32 %v2838, %v2843
        %v2875 = vadd.f32 %v2839, %v2843
        %v2876 = vadd.f32 %v2840, %v2843
        %vm2877 = vcmp.ge.f32.partialorder %v2845, 0.0
        %vm2878 = vcmp.ge.f32.partialorder %v2846, 0.0
        %vm2879 = vcmp.ge.f32.partialorder %v2847, 0.0
        %vm2880 = vcmp.ge.f32.partialorder %v2848, 0.0
        %vm2881 = vcmp.ge.f32.partialorder %v2849, 0.0
        %vm2882 = vcmp.ge.f32.partialorder %v2850, 0.0
        %vm2883 = vcmp.ge.f32.partialorder %v2851, 0.0
        %vm2884 = vcmp.ge.f32.partialorder %v2852, 0.0
        %vm2885 = vcmp.ge.f32.partialorder %v2853, 0.0
        %vm2886 = vcmp.ge.f32.partialorder %v2854, 0.0
        %vm2887 = vcmp.ge.f32.partialorder %v2855, 0.0
        %vm2888 = vcmp.ge.f32.partialorder %v2856, 0.0
        %vm2889 = vcmp.ge.f32.partialorder %v2857, 0.0
        %vm2890 = vcmp.ge.f32.partialorder %v2858, 0.0
        %vm2891 = vcmp.ge.f32.partialorder %v2859, 0.0
        %vm2892 = vcmp.ge.f32.partialorder %v2860, 0.0
        %vm2893 = vcmp.ge.f32.partialorder %v2861, 0.0
        %vm2894 = vcmp.ge.f32.partialorder %v2862, 0.0
        %vm2895 = vcmp.ge.f32.partialorder %v2863, 0.0
        %vm2896 = vcmp.ge.f32.partialorder %v2864, 0.0
        %vm2897 = vcmp.ge.f32.partialorder %v2865, 0.0
        %vm2898 = vcmp.ge.f32.partialorder %v2866, 0.0
        %vm2899 = vcmp.ge.f32.partialorder %v2867, 0.0
        %vm2900 = vcmp.ge.f32.partialorder %v2868, 0.0
        %vm2901 = vcmp.ge.f32.partialorder %v2869, 0.0
        %vm2902 = vcmp.ge.f32.partialorder %v2870, 0.0
        %vm2903 = vcmp.ge.f32.partialorder %v2871, 0.0
        %vm2904 = vcmp.ge.f32.partialorder %v2872, 0.0
        %vm2905 = vcmp.ge.f32.partialorder %v2873, 0.0
        %vm2906 = vcmp.ge.f32.partialorder %v2874, 0.0
        %vm2907 = vcmp.ge.f32.partialorder %v2875, 0.0
        %vm2908 = vcmp.ge.f32.partialorder %v2876, 0.0
        %v2909 = vmul.f32 %v2845, 0.2
        %v2910 = vmul.f32 %v2846, 0.2
        %v2911 = vmul.f32 %v2847, 0.2
        %v2912 = vmul.f32 %v2848, 0.2
        %v2913 = vmul.f32 %v2849, 0.2
        %v2914 = vmul.f32 %v2850, 0.2
        %v2915 = vmul.f32 %v2851, 0.2
        %v2916 = vmul.f32 %v2852, 0.2
        %v2917 = vmul.f32 %v2853, 0.2
        %v2918 = vmul.f32 %v2854, 0.2
        %v2919 = vmul.f32 %v2855, 0.2
        %v2920 = vmul.f32 %v2856, 0.2
        %v2921 = vmul.f32 %v2857, 0.2
        %v2922 = vmul.f32 %v2858, 0.2
        %v2923 = vmul.f32 %v2859, 0.2
        %v2924 = vmul.f32 %v2860, 0.2
        %v2925 = vmul.f32 %v2861, 0.2
        %v2926 = vmul.f32 %v2862, 0.2
        %v2927 = vmul.f32 %v2863, 0.2
        %v2928 = vmul.f32 %v2864, 0.2
        %v2929 = vmul.f32 %v2865, 0.2
        %v2930 = vmul.f32 %v2866, 0.2
        %v2931 = vmul.f32 %v2867, 0.2
        %v2932 = vmul.f32 %v2868, 0.2
        %v2933 = vmul.f32 %v2869, 0.2
        %v2934 = vmul.f32 %v2870, 0.2
        %v2935 = vmul.f32 %v2871, 0.2
        %v2936 = vmul.f32 %v2872, 0.2
        %v2937 = vmul.f32 %v2873, 0.2
        %v2938 = vmul.f32 %v2874, 0.2
        %v2939 = vmul.f32 %v2875, 0.2
        %v2940 = vmul.f32 %v2876, 0.2
        %v2941 = vsel %vm2877, %v2845, %v2909
        %v2942 = vsel %vm2878, %v2846, %v2910
        %v2943 = vsel %vm2879, %v2847, %v2911
        %v2944 = vsel %vm2880, %v2848, %v2912
        %v2945 = vsel %vm2881, %v2849, %v2913
        %v2946 = vsel %vm2882, %v2850, %v2914
        %v2947 = vsel %vm2883, %v2851, %v2915
        %v2948 = vsel %vm2884, %v2852, %v2916
        %v2949 = vsel %vm2885, %v2853, %v2917
        %v2950 = vsel %vm2886, %v2854, %v2918
        %v2951 = vsel %vm2887, %v2855, %v2919
        %v2952 = vsel %vm2888, %v2856, %v2920
        %v2953 = vsel %vm2889, %v2857, %v2921
        %v2954 = vsel %vm2890, %v2858, %v2922
        %v2955 = vsel %vm2891, %v2859, %v2923
        %v2956 = vsel %vm2892, %v2860, %v2924
        %v2957 = vsel %vm2893, %v2861, %v2925
        %v2958 = vsel %vm2894, %v2862, %v2926
        %v2959 = vsel %vm2895, %v2863, %v2927
        %v2960 = vsel %vm2896, %v2864, %v2928
        %v2961 = vsel %vm2897, %v2865, %v2929
        %v2962 = vsel %vm2898, %v2866, %v2930
        %v2963 = vsel %vm2899, %v2867, %v2931
        %v2964 = vsel %vm2900, %v2868, %v2932
        %v2965 = vsel %vm2901, %v2869, %v2933
        %v2966 = vsel %vm2902, %v2870, %v2934
        %v2967 = vsel %vm2903, %v2871, %v2935
        %v2968 = vsel %vm2904, %v2872, %v2936
        %v2969 = vsel %vm2905, %v2873, %v2937
        %v2970 = vsel %vm2906, %v2874, %v2938
        %v2971 = vsel %vm2907, %v2875, %v2939
        %v2972 = vsel %vm2908, %v2876, %v2940
        %2973 = vst.msk [vmem:[%s255 + $0x1] sm:$0xff] %vm256, %v2941
        %2974 = vst.msk [vmem:[%s255 + $0x9] sm:$0xff] %vm256, %v2942
        %2975 = vst.msk [vmem:[%s255 + $0x19] sm:$0xff] %vm256, %v2943
        %2976 = vst.msk [vmem:[%s255 + $0x21] sm:$0xff] %vm256, %v2944
        %2977 = vst.msk [vmem:[%s255 + $0x31] sm:$0xff] %vm256, %v2945
        %2978 = vst.msk [vmem:[%s255 + $0x39] sm:$0xff] %vm256, %v2946
        %2979 = vst.msk [vmem:[%s255 + $0x49] sm:$0xff] %vm256, %v2947
        %2980 = vst.msk [vmem:[%s255 + $0x51] sm:$0xff] %vm256, %v2948
        %2981 = vst.msk [vmem:[%s255 + $0x61] sm:$0xff] %vm256, %v2949
        %2982 = vst.msk [vmem:[%s255 + $0x69] sm:$0xff] %vm256, %v2950
        %2983 = vst.msk [vmem:[%s255 + $0x79] sm:$0xff] %vm256, %v2951
        %2984 = vst.msk [vmem:[%s255 + $0x81] sm:$0xff] %vm256, %v2952
        %2985 = vst.msk [vmem:[%s255 + $0x91] sm:$0xff] %vm256, %v2953
        %2986 = vst.msk [vmem:[%s255 + $0x99] sm:$0xff] %vm256, %v2954
        %2987 = vst.msk [vmem:[%s255 + $0xa9] sm:$0xff] %vm256, %v2955
        %2988 = vst.msk [vmem:[%s255 + $0xb1] sm:$0xff] %vm256, %v2956
        %2989 = vst.msk [vmem:[%s255 + $0xc1] sm:$0xff] %vm256, %v2957
        %2990 = vst.msk [vmem:[%s255 + $0xc9] sm:$0xff] %vm256, %v2958
        %2991 = vst.msk [vmem:[%s255 + $0xd9] sm:$0xff] %vm256, %v2959
        %2992 = vst.msk [vmem:[%s255 + $0xe1] sm:$0xff] %vm256, %v2960
        %2993 = vst.msk [vmem:[%s255 + $0xf1] sm:$0xff] %vm256, %v2961
        %2994 = vst.msk [vmem:[%s255 + $0xf9] sm:$0xff] %vm256, %v2962
        %2995 = vst.msk [vmem:[%s255 + $0x109] sm:$0xff] %vm256, %v2963
        %2996 = vst.msk [vmem:[%s255 + $0x111] sm:$0xff] %vm256, %v2964
        %2997 = vst.msk [vmem:[%s255 + $0x121] sm:$0xff] %vm256, %v2965
        %2998 = vst.msk [vmem:[%s255 + $0x129] sm:$0xff] %vm256, %v2966
        %2999 = vst.msk [vmem:[%s255 + $0x139] sm:$0xff] %vm256, %v2967
        %3000 = vst.msk [vmem:[%s255 + $0x141] sm:$0xff] %vm256, %v2968
        %3001 = vst.msk [vmem:[%s255 + $0x151] sm:$0xff] %vm256, %v2969
        %3002 = vst.msk [vmem:[%s255 + $0x159] sm:$0xff] %vm256, %v2970
        %3003 = vst.msk [vmem:[%s255 + $0x169] sm:$0xff] %vm256, %v2971
        %3004 = vst.msk [vmem:[%s255 + $0x171] sm:$0xff] %vm256, %v2972
        %3005 = vst.msk [vmem:[#allocation2 + $0x1] sm:$0xff] %vm256, %v2943
        %3006 = vst.msk [vmem:[#allocation2 + $0x9] sm:$0xff] %vm256, %v2944
        %3007 = vst.msk [vmem:[%s291 + $0x1] sm:$0xff] %vm256, %v2969
        %3008 = vst.msk [vmem:[%s291 + $0x9] sm:$0xff] %vm256, %v2970
        %v3009 = vld [vmem:[#allocation2 + $0x2] sm:$0x1]
        %v3010 = vld [vmem:[#allocation2 + $0x1a] sm:$0x1]
        %v3011 = vld [vmem:[#allocation2 + $0x32] sm:$0x1]
        %v3012 = vld [vmem:[#allocation2 + $0x4a] sm:$0x1]
        %v3013 = vld [vmem:[#allocation2 + $0x62] sm:$0x1]
        %v3014 = vld [vmem:[#allocation2 + $0x7a] sm:$0x1]
        %v3015 = vld [vmem:[#allocation2 + $0x92] sm:$0x1]
        %v3016 = vld [vmem:[#allocation2 + $0xaa] sm:$0x1]
        %v3017 = vld [vmem:[#allocation2 + $0xc2] sm:$0x1]
        %v3018 = vld [vmem:[#allocation2 + $0xda] sm:$0x1]
        %v3019 = vld [vmem:[#allocation2 + $0xf2] sm:$0x1]
        %v3020 = vld [vmem:[#allocation2 + $0x10a] sm:$0x1]
        %v3021 = vld [vmem:[#allocation2 + $0x122] sm:$0x1]
        %v3022 = vld [vmem:[#allocation2 + $0x13a] sm:$0x1]
        %v3023 = vld [vmem:[#allocation2 + $0x152] sm:$0x1]
        %v3024 = vld [vmem:[#allocation2 + $0x16a] sm:$0x1]
        %v3025 = vld [vmem:[#allocation2 + $0x182] sm:$0x1]
        %v3026 = vld [vmem:[#allocation2 + $0x19a] sm:$0x1]
        %3027 = vst.msk [vmem:[#allocation2] sm:$0x1] %vm312, %v3009
        %3028 = vst.msk [vmem:[#allocation2 + $0x18] sm:$0x1] %vm312, %v3010
        %3029 = vst.msk [vmem:[#allocation2 + $0x30] sm:$0x1] %vm312, %v3011
        %3030 = vst.msk [vmem:[#allocation2 + $0x48] sm:$0x1] %vm312, %v3012
        %3031 = vst.msk [vmem:[#allocation2 + $0x60] sm:$0x1] %vm312, %v3013
        %3032 = vst.msk [vmem:[#allocation2 + $0x78] sm:$0x1] %vm312, %v3014
        %3033 = vst.msk [vmem:[#allocation2 + $0x90] sm:$0x1] %vm312, %v3015
        %3034 = vst.msk [vmem:[#allocation2 + $0xa8] sm:$0x1] %vm312, %v3016
        %3035 = vst.msk [vmem:[#allocation2 + $0xc0] sm:$0x1] %vm312, %v3017
        %3036 = vst.msk [vmem:[#allocation2 + $0xd8] sm:$0x1] %vm312, %v3018
        %3037 = vst.msk [vmem:[#allocation2 + $0xf0] sm:$0x1] %vm312, %v3019
        %3038 = vst.msk [vmem:[#allocation2 + $0x108] sm:$0x1] %vm312, %v3020
        %3039 = vst.msk [vmem:[#allocation2 + $0x120] sm:$0x1] %vm312, %v3021
        %3040 = vst.msk [vmem:[#allocation2 + $0x138] sm:$0x1] %vm312, %v3022
        %3041 = vst.msk [vmem:[#allocation2 + $0x150] sm:$0x1] %vm312, %v3023
        %3042 = vst.msk [vmem:[#allocation2 + $0x168] sm:$0x1] %vm312, %v3024
        %3043 = vst.msk [vmem:[#allocation2 + $0x180] sm:$0x1] %vm312, %v3025
        %3044 = vst.msk [vmem:[#allocation2 + $0x198] sm:$0x1] %vm312, %v3026
        %v3045 = vld [vmem:[#allocation2 + $0xf] sm:$0x1]
        %v3046 = vld [vmem:[#allocation2 + $0x27] sm:$0x1]
        %v3047 = vld [vmem:[#allocation2 + $0x3f] sm:$0x1]
        %v3048 = vld [vmem:[#allocation2 + $0x57] sm:$0x1]
        %v3049 = vld [vmem:[#allocation2 + $0x6f] sm:$0x1]
        %v3050 = vld [vmem:[#allocation2 + $0x87] sm:$0x1]
        %v3051 = vld [vmem:[#allocation2 + $0x9f] sm:$0x1]
        %v3052 = vld [vmem:[#allocation2 + $0xb7] sm:$0x1]
        %v3053 = vld [vmem:[#allocation2 + $0xcf] sm:$0x1]
        %v3054 = vld [vmem:[#allocation2 + $0xe7] sm:$0x1]
        %v3055 = vld [vmem:[#allocation2 + $0xff] sm:$0x1]
        %v3056 = vld [vmem:[#allocation2 + $0x117] sm:$0x1]
        %v3057 = vld [vmem:[#allocation2 + $0x12f] sm:$0x1]
        %v3058 = vld [vmem:[#allocation2 + $0x147] sm:$0x1]
        %v3059 = vld [vmem:[#allocation2 + $0x15f] sm:$0x1]
        %v3060 = vld [vmem:[#allocation2 + $0x177] sm:$0x1]
        %v3061 = vld [vmem:[#allocation2 + $0x18f] sm:$0x1]
        %v3062 = vld [vmem:[#allocation2 + $0x1a7] sm:$0x1]
        %3063 = vst.msk [vmem:[#allocation2 + $0x11] sm:$0x1] %vm312, %v3045
        %3064 = vst.msk [vmem:[#allocation2 + $0x29] sm:$0x1] %vm312, %v3046
        %3065 = vst.msk [vmem:[#allocation2 + $0x41] sm:$0x1] %vm312, %v3047
        %3066 = vst.msk [vmem:[#allocation2 + $0x59] sm:$0x1] %vm312, %v3048
        %3067 = vst.msk [vmem:[#allocation2 + $0x71] sm:$0x1] %vm312, %v3049
        %3068 = vst.msk [vmem:[#allocation2 + $0x89] sm:$0x1] %vm312, %v3050
        %3069 = vst.msk [vmem:[#allocation2 + $0xa1] sm:$0x1] %vm312, %v3051
        %3070 = vst.msk [vmem:[#allocation2 + $0xb9] sm:$0x1] %vm312, %v3052
        %3071 = vst.msk [vmem:[#allocation2 + $0xd1] sm:$0x1] %vm312, %v3053
        %3072 = vst.msk [vmem:[#allocation2 + $0xe9] sm:$0x1] %vm312, %v3054
        %3073 = vst.msk [vmem:[#allocation2 + $0x101] sm:$0x1] %vm312, %v3055
        %3074 = vst.msk [vmem:[#allocation2 + $0x119] sm:$0x1] %vm312, %v3056
        %3075 = vst.msk [vmem:[#allocation2 + $0x131] sm:$0x1] %vm312, %v3057
        %3076 = vst.msk [vmem:[#allocation2 + $0x149] sm:$0x1] %vm312, %v3058
        %3077 = vst.msk [vmem:[#allocation2 + $0x161] sm:$0x1] %vm312, %v3059
        %3078 = vst.msk [vmem:[#allocation2 + $0x179] sm:$0x1] %vm312, %v3060
        %3079 = vst.msk [vmem:[#allocation2 + $0x191] sm:$0x1] %vm312, %v3061
        %3080 = vst.msk [vmem:[#allocation2 + $0x1a9] sm:$0x1] %vm312, %v3062
        %v3081 = vld [vmem:[#allocation2] sm:$0xff]
        %v3082 = vld [vmem:[#allocation2 + $0x8] sm:$0xff]
        %v3083 = vld [vmem:[#allocation2 + $0x18] sm:$0xff]
        %v3084 = vld [vmem:[#allocation2 + $0x20] sm:$0xff]
        %v3085 = vld [vmem:[#allocation2 + $0x30] sm:$0xff]
        %v3086 = vld [vmem:[#allocation2 + $0x38] sm:$0xff]
        %v3087 = vld [vmem:[#allocation2 + $0x48] sm:$0xff]
        %v3088 = vld [vmem:[#allocation2 + $0x50] sm:$0xff]
        %v3089 = vld [vmem:[#allocation2 + $0x60] sm:$0xff]
        %v3090 = vld [vmem:[#allocation2 + $0x68] sm:$0xff]
        %v3091 = vld [vmem:[#allocation2 + $0x78] sm:$0xff]
        %v3092 = vld [vmem:[#allocation2 + $0x80] sm:$0xff]
        %v3093 = vld [vmem:[#allocation2 + $0x90] sm:$0xff]
        %v3094 = vld [vmem:[#allocation2 + $0x98] sm:$0xff]
        %v3095 = vld [vmem:[#allocation2 + $0xa8] sm:$0xff]
        %v3096 = vld [vmem:[#allocation2 + $0xb0] sm:$0xff]
        %v3097 = vld [vmem:[#allocation2 + $0xc0] sm:$0xff]
        %v3098 = vld [vmem:[#allocation2 + $0xc8] sm:$0xff]
        %v3099 = vld [vmem:[#allocation2 + $0xd8] sm:$0xff]
        %v3100 = vld [vmem:[#allocation2 + $0xe0] sm:$0xff]
        %v3101 = vld [vmem:[#allocation2 + $0xf0] sm:$0xff]
        %v3102 = vld [vmem:[#allocation2 + $0xf8] sm:$0xff]
        %v3103 = vld [vmem:[#allocation2 + $0x108] sm:$0xff]
        %v3104 = vld [vmem:[#allocation2 + $0x110] sm:$0xff]
        %v3105 = vld [vmem:[#allocation2 + $0x120] sm:$0xff]
        %v3106 = vld [vmem:[#allocation2 + $0x128] sm:$0xff]
        %v3107 = vld [vmem:[#allocation2 + $0x138] sm:$0xff]
        %v3108 = vld [vmem:[#allocation2 + $0x140] sm:$0xff]
        %v3109 = vld [vmem:[#allocation2 + $0x150] sm:$0xff]
        %v3110 = vld [vmem:[#allocation2 + $0x158] sm:$0xff]
        %v3111 = vld [vmem:[#allocation2 + $0x168] sm:$0xff]
        %v3112 = vld [vmem:[#allocation2 + $0x170] sm:$0xff]
        %v3113 = vld [vmem:[%s3] sm:$0xff]
        %v3114 = vld [vmem:[%s3 + $0x8] sm:$0xff]
        %v3115 = vld [vmem:[%s3 + $0x10] sm:$0xff]
        %v3116 = vld [vmem:[%s3 + $0x18] sm:$0xff]
        %v3117 = vld [vmem:[%s3 + $0x20] sm:$0xff]
        %v3118 = vld [vmem:[%s3 + $0x28] sm:$0xff]
        %v3119 = vld [vmem:[%s3 + $0x30] sm:$0xff]
        %v3120 = vld [vmem:[%s3 + $0x38] sm:$0xff]
        %v3121 = vld [vmem:[#allocation2 + $0x1] sm:$0xff]
        %v3122 = vld [vmem:[#allocation2 + $0x9] sm:$0xff]
        %v3123 = vld [vmem:[#allocation2 + $0x19] sm:$0xff]
        %v3124 = vld [vmem:[#allocation2 + $0x21] sm:$0xff]
        %v3125 = vld [vmem:[#allocation2 + $0x31] sm:$0xff]
        %v3126 = vld [vmem:[#allocation2 + $0x39] sm:$0xff]
        %v3127 = vld [vmem:[#allocation2 + $0x49] sm:$0xff]
        %v3128 = vld [vmem:[#allocation2 + $0x51] sm:$0xff]
        %v3129 = vld [vmem:[#allocation2 + $0x61] sm:$0xff]
        %v3130 = vld [vmem:[#allocation2 + $0x69] sm:$0xff]
        %v3131 = vld [vmem:[#allocation2 + $0x79] sm:$0xff]
        %v3132 = vld [vmem:[#allocation2 + $0x81] sm:$0xff]
        %v3133 = vld [vmem:[#allocation2 + $0x91] sm:$0xff]
        %v3134 = vld [vmem:[#allocation2 + $0x99] sm:$0xff]
        %v3135 = vld [vmem:[#allocation2 + $0xa9] sm:$0xff]
        %v3136 = vld [vmem:[#allocation2 + $0xb1] sm:$0xff]
        %v3137 = vld [vmem:[#allocation2 + $0xc1] sm:$0xff]
        %v3138 = vld [vmem:[#allocation2 + $0xc9] sm:$0xff]
        %v3139 = vld [vmem:[#allocation2 + $0xd9] sm:$0xff]
        %v3140 = vld [vmem:[#allocation2 + $0xe1] sm:$0xff]
        %v3141 = vld [vmem:[#allocation2 + $0xf1] sm:$0xff]
        %v3142 = vld [vmem:[#allocation2 + $0xf9] sm:$0xff]
        %v3143 = vld [vmem:[#allocation2 + $0x109] sm:$0xff]
        %v3144 = vld [vmem:[#allocation2 + $0x111] sm:$0xff]
        %v3145 = vld [vmem:[#allocation2 + $0x121] sm:$0xff]
        %v3146 = vld [vmem:[#allocation2 + $0x129] sm:$0xff]
        %v3147 = vld [vmem:[#allocation2 + $0x139] sm:$0xff]
        %v3148 = vld [vmem:[#allocation2 + $0x141] sm:$0xff]
        %v3149 = vld [vmem:[#allocation2 + $0x151] sm:$0xff]
        %v3150 = vld [vmem:[#allocation2 + $0x159] sm:$0xff]
        %v3151 = vld [vmem:[#allocation2 + $0x169] sm:$0xff]
        %v3152 = vld [vmem:[#allocation2 + $0x171] sm:$0xff]
        %s3153 = scalar_lea.vmem %s3, 64
        %v3154 = vld [vmem:[%s3153] sm:$0xff]
        %v3155 = vld [vmem:[%s3153 + $0x8] sm:$0xff]
        %v3156 = vld [vmem:[%s3153 + $0x10] sm:$0xff]
        %v3157 = vld [vmem:[%s3153 + $0x18] sm:$0xff]
        %v3158 = vld [vmem:[%s3153 + $0x20] sm:$0xff]
        %v3159 = vld [vmem:[%s3153 + $0x28] sm:$0xff]
        %v3160 = vld [vmem:[%s3153 + $0x30] sm:$0xff]
        %v3161 = vld [vmem:[%s3153 + $0x38] sm:$0xff]
        %v3163 = vsel %vm256, %v3121, 0
        %v3166 = vsel %vm256, %v3122, 0
        %v3169 = vsel %vm256, %v3123, 0
        %v3172 = vsel %vm256, %v3124, 0
        %v3175 = vsel %vm256, %v3125, 0
        %v3178 = vsel %vm256, %v3126, 0
        %v3181 = vsel %vm256, %v3127, 0
        %v3184 = vsel %vm256, %v3128, 0
        %v3187 = vsel %vm256, %v3129, 0
        %v3190 = vsel %vm256, %v3130, 0
        %v3193 = vsel %vm256, %v3131, 0
        %v3196 = vsel %vm256, %v3132, 0
        %v3199 = vsel %vm256, %v3133, 0
        %v3202 = vsel %vm256, %v3134, 0
        %v3205 = vsel %vm256, %v3135, 0
        %v3208 = vsel %vm256, %v3136, 0
        %v3211 = vsel %vm256, %v3137, 0
        %v3214 = vsel %vm256, %v3138, 0
        %v3217 = vsel %vm256, %v3139, 0
        %v3220 = vsel %vm256, %v3140, 0
        %v3223 = vsel %vm256, %v3141, 0
        %v3226 = vsel %vm256, %v3142, 0
        %v3229 = vsel %vm256, %v3143, 0
        %v3232 = vsel %vm256, %v3144, 0
        %v3235 = vsel %vm256, %v3145, 0
        %v3238 = vsel %vm256, %v3146, 0
        %v3241 = vsel %vm256, %v3147, 0
        %v3244 = vsel %vm256, %v3148, 0
        %v3247 = vsel %vm256, %v3149, 0
        %v3250 = vsel %vm256, %v3150, 0
        %v3253 = vsel %vm256, %v3151, 0
        %v3256 = vsel %vm256, %v3152, 0
        %3258 = vmatpush.msra.mxu0 0.0
        %3259 = vmatpush.msra.mxu0 0.0
        %3260 = vmatpush.msra.mxu0 0.0
        %3261 = vmatpush.msra.mxu0 0.0
        %3262 = vmatpush.msra.mxu0 0.0
        %3263 = vmatpush.msra.mxu0 0.0
        %3264 = vmatpush.msra.mxu0 0.0
        %3265 = vmatpush.msra.mxu0 0.0
        %3266 = vmatpush.msra.mxu0 %v3161
        %3267 = vmatpush.msra.mxu0 %v3160
        %3268 = vmatpush.msra.mxu0 %v3159
        %3269 = vmatpush.msra.mxu0 %v3158
        %3270 = vmatpush.msra.mxu0 %v3157
        %3271 = vmatpush.msra.mxu0 %v3156
        %3272 = vmatpush.msra.mxu0 %v3155
        %3273 = vmatpush.msra.mxu0 %v3154
        %3274 = vmatmul.f32.gmra.mxu0 %v3163
        %v3275 = vpop.f32.mrf.mxu0
        %v3276 = vadd.f32 0.0, %v3275
        %3277 = vmatmul.f32.gmra.mxu0 %v3166
        %v3278 = vpop.f32.mrf.mxu0
        %v3279 = vadd.f32 0.0, %v3278
        %3280 = vmatmul.f32.gmra.mxu0 %v3169
        %v3281 = vpop.f32.mrf.mxu0
        %v3282 = vadd.f32 0.0, %v3281
        %3283 = vmatmul.f32.gmra.mxu0 %v3172
        %v3284 = vpop.f32.mrf.mxu0
        %v3285 = vadd.f32 0.0, %v3284
        %3286 = vmatmul.f32.gmra.mxu0 %v3175
        %v3287 = vpop.f32.mrf.mxu0
        %v3288 = vadd.f32 0.0, %v3287
        %3289 = vmatmul.f32.gmra.mxu0 %v3178
        %v3290 = vpop.f32.mrf.mxu0
        %v3291 = vadd.f32 0.0, %v3290
        %3292 = vmatmul.f32.gmra.mxu0 %v3181
        %v3293 = vpop.f32.mrf.mxu0
        %v3294 = vadd.f32 0.0, %v3293
        %3295 = vmatmul.f32.gmra.mxu0 %v3184
        %v3296 = vpop.f32.mrf.mxu0
        %v3297 = vadd.f32 0.0, %v3296
        %3298 = vmatmul.f32.gmra.mxu0 %v3187
        %v3299 = vpop.f32.mrf.mxu0
        %v3300 = vadd.f32 0.0, %v3299
        %3301 = vmatmul.f32.gmra.mxu0 %v3190
        %v3302 = vpop.f32.mrf.mxu0
        %v3303 = vadd.f32 0.0, %v3302
        %3304 = vmatmul.f32.gmra.mxu0 %v3193
        %v3305 = vpop.f32.mrf.mxu0
        %v3306 = vadd.f32 0.0, %v3305
        %3307 = vmatmul.f32.gmra.mxu0 %v3196
        %v3308 = vpop.f32.mrf.mxu0
        %v3309 = vadd.f32 0.0, %v3308
        %3310 = vmatmul.f32.gmra.mxu0 %v3199
        %v3311 = vpop.f32.mrf.mxu0
        %v3312 = vadd.f32 0.0, %v3311
        %3313 = vmatmul.f32.gmra.mxu0 %v3202
        %v3314 = vpop.f32.mrf.mxu0
        %v3315 = vadd.f32 0.0, %v3314
        %3316 = vmatmul.f32.gmra.mxu0 %v3205
        %v3317 = vpop.f32.mrf.mxu0
        %v3318 = vadd.f32 0.0, %v3317
        %3319 = vmatmul.f32.gmra.mxu0 %v3208
        %v3320 = vpop.f32.mrf.mxu0
        %v3321 = vadd.f32 0.0, %v3320
        %3322 = vmatmul.f32.gmra.mxu0 %v3211
        %v3323 = vpop.f32.mrf.mxu0
        %v3324 = vadd.f32 0.0, %v3323
        %3325 = vmatmul.f32.gmra.mxu0 %v3214
        %v3326 = vpop.f32.mrf.mxu0
        %v3327 = vadd.f32 0.0, %v3326
        %3328 = vmatmul.f32.gmra.mxu0 %v3217
        %v3329 = vpop.f32.mrf.mxu0
        %v3330 = vadd.f32 0.0, %v3329
        %3331 = vmatmul.f32.gmra.mxu0 %v3220
        %v3332 = vpop.f32.mrf.mxu0
        %v3333 = vadd.f32 0.0, %v3332
        %3334 = vmatmul.f32.gmra.mxu0 %v3223
        %v3335 = vpop.f32.mrf.mxu0
        %v3336 = vadd.f32 0.0, %v3335
        %3337 = vmatmul.f32.gmra.mxu0 %v3226
        %v3338 = vpop.f32.mrf.mxu0
        %v3339 = vadd.f32 0.0, %v3338
        %3340 = vmatmul.f32.gmra.mxu0 %v3229
        %v3341 = vpop.f32.mrf.mxu0
        %v3342 = vadd.f32 0.0, %v3341
        %3343 = vmatmul.f32.gmra.mxu0 %v3232
        %v3344 = vpop.f32.mrf.mxu0
        %v3345 = vadd.f32 0.0, %v3344
        %3346 = vmatmul.f32.gmra.mxu0 %v3235
        %v3347 = vpop.f32.mrf.mxu0
        %v3348 = vadd.f32 0.0, %v3347
        %3349 = vmatmul.f32.gmra.mxu0 %v3238
        %v3350 = vpop.f32.mrf.mxu0
        %v3351 = vadd.f32 0.0, %v3350
        %3352 = vmatmul.f32.gmra.mxu0 %v3241
        %v3353 = vpop.f32.mrf.mxu0
        %v3354 = vadd.f32 0.0, %v3353
        %3355 = vmatmul.f32.gmra.mxu0 %v3244
        %v3356 = vpop.f32.mrf.mxu0
        %v3357 = vadd.f32 0.0, %v3356
        %3358 = vmatmul.f32.gmra.mxu0 %v3247
        %v3359 = vpop.f32.mrf.mxu0
        %v3360 = vadd.f32 0.0, %v3359
        %3361 = vmatmul.f32.gmra.mxu0 %v3250
        %v3362 = vpop.f32.mrf.mxu0
        %v3363 = vadd.f32 0.0, %v3362
        %3364 = vmatmul.f32.gmra.mxu0 %v3253
        %v3365 = vpop.f32.mrf.mxu0
        %v3366 = vadd.f32 0.0, %v3365
        %3367 = vmatmul.f32.gmra.mxu0 %v3256
        %v3368 = vpop.f32.mrf.mxu0
        %v3369 = vadd.f32 0.0, %v3368
        %3370 = vdwg.mxu0
        %v3372 = vsel %vm256, %v3081, 0
        %v3375 = vsel %vm256, %v3082, 0
        %v3378 = vsel %vm256, %v3083, 0
        %v3381 = vsel %vm256, %v3084, 0
        %v3384 = vsel %vm256, %v3085, 0
        %v3387 = vsel %vm256, %v3086, 0
        %v3390 = vsel %vm256, %v3087, 0
        %v3393 = vsel %vm256, %v3088, 0
        %v3396 = vsel %vm256, %v3089, 0
        %v3399 = vsel %vm256, %v3090, 0
        %v3402 = vsel %vm256, %v3091, 0
        %v3405 = vsel %vm256, %v3092, 0
        %v3408 = vsel %vm256, %v3093, 0
        %v3411 = vsel %vm256, %v3094, 0
        %v3414 = vsel %vm256, %v3095, 0
        %v3417 = vsel %vm256, %v3096, 0
        %v3420 = vsel %vm256, %v3097, 0
        %v3423 = vsel %vm256, %v3098, 0
        %v3426 = vsel %vm256, %v3099, 0
        %v3429 = vsel %vm256, %v3100, 0
        %v3432 = vsel %vm256, %v3101, 0
        %v3435 = vsel %vm256, %v3102, 0
        %v3438 = vsel %vm256, %v3103, 0
        %v3441 = vsel %vm256, %v3104, 0
        %v3444 = vsel %vm256, %v3105, 0
        %v3447 = vsel %vm256, %v3106, 0
        %v3450 = vsel %vm256, %v3107, 0
        %v3453 = vsel %vm256, %v3108, 0
        %v3456 = vsel %vm256, %v3109, 0
        %v3459 = vsel %vm256, %v3110, 0
        %v3462 = vsel %vm256, %v3111, 0
        %v3465 = vsel %vm256, %v3112, 0
        %3467 = vmatpush.msra.mxu0 0.0
        %3468 = vmatpush.msra.mxu0 0.0
        %3469 = vmatpush.msra.mxu0 0.0
        %3470 = vmatpush.msra.mxu0 0.0
        %3471 = vmatpush.msra.mxu0 0.0
        %3472 = vmatpush.msra.mxu0 0.0
        %3473 = vmatpush.msra.mxu0 0.0
        %3474 = vmatpush.msra.mxu0 0.0
        %3475 = vmatpush.msra.mxu0 %v3120
        %3476 = vmatpush.msra.mxu0 %v3119
        %3477 = vmatpush.msra.mxu0 %v3118
        %3478 = vmatpush.msra.mxu0 %v3117
        %3479 = vmatpush.msra.mxu0 %v3116
        %3480 = vmatpush.msra.mxu0 %v3115
        %3481 = vmatpush.msra.mxu0 %v3114
        %3482 = vmatpush.msra.mxu0 %v3113
        %3483 = vmatmul.f32.gmra.mxu0 %v3372
        %v3484 = vpop.f32.mrf.mxu0
        %v3485 = vadd.f32 %v3276, %v3484
        %3486 = vmatmul.f32.gmra.mxu0 %v3375
        %v3487 = vpop.f32.mrf.mxu0
        %v3488 = vadd.f32 %v3279, %v3487
        %3489 = vmatmul.f32.gmra.mxu0 %v3378
        %v3490 = vpop.f32.mrf.mxu0
        %v3491 = vadd.f32 %v3282, %v3490
        %3492 = vmatmul.f32.gmra.mxu0 %v3381
        %v3493 = vpop.f32.mrf.mxu0
        %v3494 = vadd.f32 %v3285, %v3493
        %3495 = vmatmul.f32.gmra.mxu0 %v3384
        %v3496 = vpop.f32.mrf.mxu0
        %v3497 = vadd.f32 %v3288, %v3496
        %3498 = vmatmul.f32.gmra.mxu0 %v3387
        %v3499 = vpop.f32.mrf.mxu0
        %v3500 = vadd.f32 %v3291, %v3499
        %3501 = vmatmul.f32.gmra.mxu0 %v3390
        %v3502 = vpop.f32.mrf.mxu0
        %v3503 = vadd.f32 %v3294, %v3502
        %3504 = vmatmul.f32.gmra.mxu0 %v3393
        %v3505 = vpop.f32.mrf.mxu0
        %v3506 = vadd.f32 %v3297, %v3505
        %3507 = vmatmul.f32.gmra.mxu0 %v3396
        %v3508 = vpop.f32.mrf.mxu0
        %v3509 = vadd.f32 %v3300, %v3508
        %3510 = vmatmul.f32.gmra.mxu0 %v3399
        %v3511 = vpop.f32.mrf.mxu0
        %v3512 = vadd.f32 %v3303, %v3511
        %3513 = vmatmul.f32.gmra.mxu0 %v3402
        %v3514 = vpop.f32.mrf.mxu0
        %v3515 = vadd.f32 %v3306, %v3514
        %3516 = vmatmul.f32.gmra.mxu0 %v3405
        %v3517 = vpop.f32.mrf.mxu0
        %v3518 = vadd.f32 %v3309, %v3517
        %3519 = vmatmul.f32.gmra.mxu0 %v3408
        %v3520 = vpop.f32.mrf.mxu0
        %v3521 = vadd.f32 %v3312, %v3520
        %3522 = vmatmul.f32.gmra.mxu0 %v3411
        %v3523 = vpop.f32.mrf.mxu0
        %v3524 = vadd.f32 %v3315, %v3523
        %3525 = vmatmul.f32.gmra.mxu0 %v3414
        %v3526 = vpop.f32.mrf.mxu0
        %v3527 = vadd.f32 %v3318, %v3526
        %3528 = vmatmul.f32.gmra.mxu0 %v3417
        %v3529 = vpop.f32.mrf.mxu0
        %v3530 = vadd.f32 %v3321, %v3529
        %3531 = vmatmul.f32.gmra.mxu0 %v3420
        %v3532 = vpop.f32.mrf.mxu0
        %v3533 = vadd.f32 %v3324, %v3532
        %3534 = vmatmul.f32.gmra.mxu0 %v3423
        %v3535 = vpop.f32.mrf.mxu0
        %v3536 = vadd.f32 %v3327, %v3535
        %3537 = vmatmul.f32.gmra.mxu0 %v3426
        %v3538 = vpop.f32.mrf.mxu0
        %v3539 = vadd.f32 %v3330, %v3538
        %3540 = vmatmul.f32.gmra.mxu0 %v3429
        %v3541 = vpop.f32.mrf.mxu0
        %v3542 = vadd.f32 %v3333, %v3541
        %3543 = vmatmul.f32.gmra.mxu0 %v3432
        %v3544 = vpop.f32.mrf.mxu0
        %v3545 = vadd.f32 %v3336, %v3544
        %3546 = vmatmul.f32.gmra.mxu0 %v3435
        %v3547 = vpop.f32.mrf.mxu0
        %v3548 = vadd.f32 %v3339, %v3547
        %3549 = vmatmul.f32.gmra.mxu0 %v3438
        %v3550 = vpop.f32.mrf.mxu0
        %v3551 = vadd.f32 %v3342, %v3550
        %3552 = vmatmul.f32.gmra.mxu0 %v3441
        %v3553 = vpop.f32.mrf.mxu0
        %v3554 = vadd.f32 %v3345, %v3553
        %3555 = vmatmul.f32.gmra.mxu0 %v3444
        %v3556 = vpop.f32.mrf.mxu0
        %v3557 = vadd.f32 %v3348, %v3556
        %3558 = vmatmul.f32.gmra.mxu0 %v3447
        %v3559 = vpop.f32.mrf.mxu0
        %v3560 = vadd.f32 %v3351, %v3559
        %3561 = vmatmul.f32.gmra.mxu0 %v3450
        %v3562 = vpop.f32.mrf.mxu0
        %v3563 = vadd.f32 %v3354, %v3562
        %3564 = vmatmul.f32.gmra.mxu0 %v3453
        %v3565 = vpop.f32.mrf.mxu0
        %v3566 = vadd.f32 %v3357, %v3565
        %3567 = vmatmul.f32.gmra.mxu0 %v3456
        %v3568 = vpop.f32.mrf.mxu0
        %v3569 = vadd.f32 %v3360, %v3568
        %3570 = vmatmul.f32.gmra.mxu0 %v3459
        %v3571 = vpop.f32.mrf.mxu0
        %v3572 = vadd.f32 %v3363, %v3571
        %3573 = vmatmul.f32.gmra.mxu0 %v3462
        %v3574 = vpop.f32.mrf.mxu0
        %v3575 = vadd.f32 %v3366, %v3574
        %3576 = vmatmul.f32.gmra.mxu0 %v3465
        %v3577 = vpop.f32.mrf.mxu0
        %v3578 = vadd.f32 %v3369, %v3577
        %3579 = vdwg.mxu0
        %v3580 = vld [vmem:[#allocation2 + $0x2] sm:$0xff]
        %v3581 = vld [vmem:[#allocation2 + $0xa] sm:$0xff]
        %v3582 = vld [vmem:[#allocation2 + $0x1a] sm:$0xff]
        %v3583 = vld [vmem:[#allocation2 + $0x22] sm:$0xff]
        %v3584 = vld [vmem:[#allocation2 + $0x32] sm:$0xff]
        %v3585 = vld [vmem:[#allocation2 + $0x3a] sm:$0xff]
        %v3586 = vld [vmem:[#allocation2 + $0x4a] sm:$0xff]
        %v3587 = vld [vmem:[#allocation2 + $0x52] sm:$0xff]
        %v3588 = vld [vmem:[#allocation2 + $0x62] sm:$0xff]
        %v3589 = vld [vmem:[#allocation2 + $0x6a] sm:$0xff]
        %v3590 = vld [vmem:[#allocation2 + $0x7a] sm:$0xff]
        %v3591 = vld [vmem:[#allocation2 + $0x82] sm:$0xff]
        %v3592 = vld [vmem:[#allocation2 + $0x92] sm:$0xff]
        %v3593 = vld [vmem:[#allocation2 + $0x9a] sm:$0xff]
        %v3594 = vld [vmem:[#allocation2 + $0xaa] sm:$0xff]
        %v3595 = vld [vmem:[#allocation2 + $0xb2] sm:$0xff]
        %v3596 = vld [vmem:[#allocation2 + $0xc2] sm:$0xff]
        %v3597 = vld [vmem:[#allocation2 + $0xca] sm:$0xff]
        %v3598 = vld [vmem:[#allocation2 + $0xda] sm:$0xff]
        %v3599 = vld [vmem:[#allocation2 + $0xe2] sm:$0xff]
        %v3600 = vld [vmem:[#allocation2 + $0xf2] sm:$0xff]
        %v3601 = vld [vmem:[#allocation2 + $0xfa] sm:$0xff]
        %v3602 = vld [vmem:[#allocation2 + $0x10a] sm:$0xff]
        %v3603 = vld [vmem:[#allocation2 + $0x112] sm:$0xff]
        %v3604 = vld [vmem:[#allocation2 + $0x122] sm:$0xff]
        %v3605 = vld [vmem:[#allocation2 + $0x12a] sm:$0xff]
        %v3606 = vld [vmem:[#allocation2 + $0x13a] sm:$0xff]
        %v3607 = vld [vmem:[#allocation2 + $0x142] sm:$0xff]
        %v3608 = vld [vmem:[#allocation2 + $0x152] sm:$0xff]
        %v3609 = vld [vmem:[#allocation2 + $0x15a] sm:$0xff]
        %v3610 = vld [vmem:[#allocation2 + $0x16a] sm:$0xff]
        %v3611 = vld [vmem:[#allocation2 + $0x172] sm:$0xff]
        %s3612 = scalar_lea.vmem %s3, 128
        %v3613 = vld [vmem:[%s3612] sm:$0xff]
        %v3614 = vld [vmem:[%s3612 + $0x8] sm:$0xff]
        %v3615 = vld [vmem:[%s3612 + $0x10] sm:$0xff]
        %v3616 = vld [vmem:[%s3612 + $0x18] sm:$0xff]
        %v3617 = vld [vmem:[%s3612 + $0x20] sm:$0xff]
        %v3618 = vld [vmem:[%s3612 + $0x28] sm:$0xff]
        %v3619 = vld [vmem:[%s3612 + $0x30] sm:$0xff]
        %v3620 = vld [vmem:[%s3612 + $0x38] sm:$0xff]
        %v3622 = vsel %vm256, %v3580, 0
        %v3625 = vsel %vm256, %v3581, 0
        %v3628 = vsel %vm256, %v3582, 0
        %v3631 = vsel %vm256, %v3583, 0
        %v3634 = vsel %vm256, %v3584, 0
        %v3637 = vsel %vm256, %v3585, 0
        %v3640 = vsel %vm256, %v3586, 0
        %v3643 = vsel %vm256, %v3587, 0
        %v3646 = vsel %vm256, %v3588, 0
        %v3649 = vsel %vm256, %v3589, 0
        %v3652 = vsel %vm256, %v3590, 0
        %v3655 = vsel %vm256, %v3591, 0
        %v3658 = vsel %vm256, %v3592, 0
        %v3661 = vsel %vm256, %v3593, 0
        %v3664 = vsel %vm256, %v3594, 0
        %v3667 = vsel %vm256, %v3595, 0
        %v3670 = vsel %vm256, %v3596, 0
        %v3673 = vsel %vm256, %v3597, 0
        %v3676 = vsel %vm256, %v3598, 0
        %v3679 = vsel %vm256, %v3599, 0
        %v3682 = vsel %vm256, %v3600, 0
        %v3685 = vsel %vm256, %v3601, 0
        %v3688 = vsel %vm256, %v3602, 0
        %v3691 = vsel %vm256, %v3603, 0
        %v3694 = vsel %vm256, %v3604, 0
        %v3697 = vsel %vm256, %v3605, 0
        %v3700 = vsel %vm256, %v3606, 0
        %v3703 = vsel %vm256, %v3607, 0
        %v3706 = vsel %vm256, %v3608, 0
        %v3709 = vsel %vm256, %v3609, 0
        %v3712 = vsel %vm256, %v3610, 0
        %v3715 = vsel %vm256, %v3611, 0
        %3717 = vmatpush.msra.mxu0 0.0
        %3718 = vmatpush.msra.mxu0 0.0
        %3719 = vmatpush.msra.mxu0 0.0
        %3720 = vmatpush.msra.mxu0 0.0
        %3721 = vmatpush.msra.mxu0 0.0
        %3722 = vmatpush.msra.mxu0 0.0
        %3723 = vmatpush.msra.mxu0 0.0
        %3724 = vmatpush.msra.mxu0 0.0
        %3725 = vmatpush.msra.mxu0 %v3620
        %3726 = vmatpush.msra.mxu0 %v3619
        %3727 = vmatpush.msra.mxu0 %v3618
        %3728 = vmatpush.msra.mxu0 %v3617
        %3729 = vmatpush.msra.mxu0 %v3616
        %3730 = vmatpush.msra.mxu0 %v3615
        %3731 = vmatpush.msra.mxu0 %v3614
        %3732 = vmatpush.msra.mxu0 %v3613
        %3733 = vmatmul.f32.gmra.mxu0 %v3622
        %v3734 = vpop.f32.mrf.mxu0
        %v3735 = vadd.f32 0.0, %v3734
        %3736 = vmatmul.f32.gmra.mxu0 %v3625
        %v3737 = vpop.f32.mrf.mxu0
        %v3738 = vadd.f32 0.0, %v3737
        %3739 = vmatmul.f32.gmra.mxu0 %v3628
        %v3740 = vpop.f32.mrf.mxu0
        %v3741 = vadd.f32 0.0, %v3740
        %3742 = vmatmul.f32.gmra.mxu0 %v3631
        %v3743 = vpop.f32.mrf.mxu0
        %v3744 = vadd.f32 0.0, %v3743
        %3745 = vmatmul.f32.gmra.mxu0 %v3634
        %v3746 = vpop.f32.mrf.mxu0
        %v3747 = vadd.f32 0.0, %v3746
        %3748 = vmatmul.f32.gmra.mxu0 %v3637
        %v3749 = vpop.f32.mrf.mxu0
        %v3750 = vadd.f32 0.0, %v3749
        %3751 = vmatmul.f32.gmra.mxu0 %v3640
        %v3752 = vpop.f32.mrf.mxu0
        %v3753 = vadd.f32 0.0, %v3752
        %3754 = vmatmul.f32.gmra.mxu0 %v3643
        %v3755 = vpop.f32.mrf.mxu0
        %v3756 = vadd.f32 0.0, %v3755
        %3757 = vmatmul.f32.gmra.mxu0 %v3646
        %v3758 = vpop.f32.mrf.mxu0
        %v3759 = vadd.f32 0.0, %v3758
        %3760 = vmatmul.f32.gmra.mxu0 %v3649
        %v3761 = vpop.f32.mrf.mxu0
        %v3762 = vadd.f32 0.0, %v3761
        %3763 = vmatmul.f32.gmra.mxu0 %v3652
        %v3764 = vpop.f32.mrf.mxu0
        %v3765 = vadd.f32 0.0, %v3764
        %3766 = vmatmul.f32.gmra.mxu0 %v3655
        %v3767 = vpop.f32.mrf.mxu0
        %v3768 = vadd.f32 0.0, %v3767
        %3769 = vmatmul.f32.gmra.mxu0 %v3658
        %v3770 = vpop.f32.mrf.mxu0
        %v3771 = vadd.f32 0.0, %v3770
        %3772 = vmatmul.f32.gmra.mxu0 %v3661
        %v3773 = vpop.f32.mrf.mxu0
        %v3774 = vadd.f32 0.0, %v3773
        %3775 = vmatmul.f32.gmra.mxu0 %v3664
        %v3776 = vpop.f32.mrf.mxu0
        %v3777 = vadd.f32 0.0, %v3776
        %3778 = vmatmul.f32.gmra.mxu0 %v3667
        %v3779 = vpop.f32.mrf.mxu0
        %v3780 = vadd.f32 0.0, %v3779
        %3781 = vmatmul.f32.gmra.mxu0 %v3670
        %v3782 = vpop.f32.mrf.mxu0
        %v3783 = vadd.f32 0.0, %v3782
        %3784 = vmatmul.f32.gmra.mxu0 %v3673
        %v3785 = vpop.f32.mrf.mxu0
        %v3786 = vadd.f32 0.0, %v3785
        %3787 = vmatmul.f32.gmra.mxu0 %v3676
        %v3788 = vpop.f32.mrf.mxu0
        %v3789 = vadd.f32 0.0, %v3788
        %3790 = vmatmul.f32.gmra.mxu0 %v3679
        %v3791 = vpop.f32.mrf.mxu0
        %v3792 = vadd.f32 0.0, %v3791
        %3793 = vmatmul.f32.gmra.mxu0 %v3682
        %v3794 = vpop.f32.mrf.mxu0
        %v3795 = vadd.f32 0.0, %v3794
        %3796 = vmatmul.f32.gmra.mxu0 %v3685
        %v3797 = vpop.f32.mrf.mxu0
        %v3798 = vadd.f32 0.0, %v3797
        %3799 = vmatmul.f32.gmra.mxu0 %v3688
        %v3800 = vpop.f32.mrf.mxu0
        %v3801 = vadd.f32 0.0, %v3800
        %3802 = vmatmul.f32.gmra.mxu0 %v3691
        %v3803 = vpop.f32.mrf.mxu0
        %v3804 = vadd.f32 0.0, %v3803
        %3805 = vmatmul.f32.gmra.mxu0 %v3694
        %v3806 = vpop.f32.mrf.mxu0
        %v3807 = vadd.f32 0.0, %v3806
        %3808 = vmatmul.f32.gmra.mxu0 %v3697
        %v3809 = vpop.f32.mrf.mxu0
        %v3810 = vadd.f32 0.0, %v3809
        %3811 = vmatmul.f32.gmra.mxu0 %v3700
        %v3812 = vpop.f32.mrf.mxu0
        %v3813 = vadd.f32 0.0, %v3812
        %3814 = vmatmul.f32.gmra.mxu0 %v3703
        %v3815 = vpop.f32.mrf.mxu0
        %v3816 = vadd.f32 0.0, %v3815
        %3817 = vmatmul.f32.gmra.mxu0 %v3706
        %v3818 = vpop.f32.mrf.mxu0
        %v3819 = vadd.f32 0.0, %v3818
        %3820 = vmatmul.f32.gmra.mxu0 %v3709
        %v3821 = vpop.f32.mrf.mxu0
        %v3822 = vadd.f32 0.0, %v3821
        %3823 = vmatmul.f32.gmra.mxu0 %v3712
        %v3824 = vpop.f32.mrf.mxu0
        %v3825 = vadd.f32 0.0, %v3824
        %3826 = vmatmul.f32.gmra.mxu0 %v3715
        %v3827 = vpop.f32.mrf.mxu0
        %v3828 = vadd.f32 0.0, %v3827
        %3829 = vdwg.mxu0
        %v3830 = vadd.f32 %v3485, %v3735
        %v3831 = vadd.f32 %v3488, %v3738
        %v3832 = vadd.f32 %v3491, %v3741
        %v3833 = vadd.f32 %v3494, %v3744
        %v3834 = vadd.f32 %v3497, %v3747
        %v3835 = vadd.f32 %v3500, %v3750
        %v3836 = vadd.f32 %v3503, %v3753
        %v3837 = vadd.f32 %v3506, %v3756
        %v3838 = vadd.f32 %v3509, %v3759
        %v3839 = vadd.f32 %v3512, %v3762
        %v3840 = vadd.f32 %v3515, %v3765
        %v3841 = vadd.f32 %v3518, %v3768
        %v3842 = vadd.f32 %v3521, %v3771
        %v3843 = vadd.f32 %v3524, %v3774
        %v3844 = vadd.f32 %v3527, %v3777
        %v3845 = vadd.f32 %v3530, %v3780
        %v3846 = vadd.f32 %v3533, %v3783
        %v3847 = vadd.f32 %v3536, %v3786
        %v3848 = vadd.f32 %v3539, %v3789
        %v3849 = vadd.f32 %v3542, %v3792
        %v3850 = vadd.f32 %v3545, %v3795
        %v3851 = vadd.f32 %v3548, %v3798
        %v3852 = vadd.f32 %v3551, %v3801
        %v3853 = vadd.f32 %v3554, %v3804
        %v3854 = vadd.f32 %v3557, %v3807
        %v3855 = vadd.f32 %v3560, %v3810
        %v3856 = vadd.f32 %v3563, %v3813
        %v3857 = vadd.f32 %v3566, %v3816
        %v3858 = vadd.f32 %v3569, %v3819
        %v3859 = vadd.f32 %v3572, %v3822
        %v3860 = vadd.f32 %v3575, %v3825
        %v3861 = vadd.f32 %v3578, %v3828
        %v3862 = vld [vmem:[%s255] sm:$0xff]
        %v3863 = vld [vmem:[%s255 + $0x8] sm:$0xff]
        %v3864 = vld [vmem:[%s255 + $0x18] sm:$0xff]
        %v3865 = vld [vmem:[%s255 + $0x20] sm:$0xff]
        %v3866 = vld [vmem:[%s255 + $0x30] sm:$0xff]
        %v3867 = vld [vmem:[%s255 + $0x38] sm:$0xff]
        %v3868 = vld [vmem:[%s255 + $0x48] sm:$0xff]
        %v3869 = vld [vmem:[%s255 + $0x50] sm:$0xff]
        %v3870 = vld [vmem:[%s255 + $0x60] sm:$0xff]
        %v3871 = vld [vmem:[%s255 + $0x68] sm:$0xff]
        %v3872 = vld [vmem:[%s255 + $0x78] sm:$0xff]
        %v3873 = vld [vmem:[%s255 + $0x80] sm:$0xff]
        %v3874 = vld [vmem:[%s255 + $0x90] sm:$0xff]
        %v3875 = vld [vmem:[%s255 + $0x98] sm:$0xff]
        %v3876 = vld [vmem:[%s255 + $0xa8] sm:$0xff]
        %v3877 = vld [vmem:[%s255 + $0xb0] sm:$0xff]
        %v3878 = vld [vmem:[%s255 + $0xc0] sm:$0xff]
        %v3879 = vld [vmem:[%s255 + $0xc8] sm:$0xff]
        %v3880 = vld [vmem:[%s255 + $0xd8] sm:$0xff]
        %v3881 = vld [vmem:[%s255 + $0xe0] sm:$0xff]
        %v3882 = vld [vmem:[%s255 + $0xf0] sm:$0xff]
        %v3883 = vld [vmem:[%s255 + $0xf8] sm:$0xff]
        %v3884 = vld [vmem:[%s255 + $0x108] sm:$0xff]
        %v3885 = vld [vmem:[%s255 + $0x110] sm:$0xff]
        %v3886 = vld [vmem:[%s255 + $0x120] sm:$0xff]
        %v3887 = vld [vmem:[%s255 + $0x128] sm:$0xff]
        %v3888 = vld [vmem:[%s255 + $0x138] sm:$0xff]
        %v3889 = vld [vmem:[%s255 + $0x140] sm:$0xff]
        %v3890 = vld [vmem:[%s255 + $0x150] sm:$0xff]
        %v3891 = vld [vmem:[%s255 + $0x158] sm:$0xff]
        %v3892 = vld [vmem:[%s255 + $0x168] sm:$0xff]
        %v3893 = vld [vmem:[%s255 + $0x170] sm:$0xff]
        %s3894 = scalar_lea.vmem %s3, 192
        %v3895 = vld [vmem:[%s3894] sm:$0xff]
        %v3896 = vld [vmem:[%s3894 + $0x8] sm:$0xff]
        %v3897 = vld [vmem:[%s3894 + $0x10] sm:$0xff]
        %v3898 = vld [vmem:[%s3894 + $0x18] sm:$0xff]
        %v3899 = vld [vmem:[%s3894 + $0x20] sm:$0xff]
        %v3900 = vld [vmem:[%s3894 + $0x28] sm:$0xff]
        %v3901 = vld [vmem:[%s3894 + $0x30] sm:$0xff]
        %v3902 = vld [vmem:[%s3894 + $0x38] sm:$0xff]
        %v3904 = vsel %vm256, %v3862, 0
        %v3907 = vsel %vm256, %v3863, 0
        %v3910 = vsel %vm256, %v3864, 0
        %v3913 = vsel %vm256, %v3865, 0
        %v3916 = vsel %vm256, %v3866, 0
        %v3919 = vsel %vm256, %v3867, 0
        %v3922 = vsel %vm256, %v3868, 0
        %v3925 = vsel %vm256, %v3869, 0
        %v3928 = vsel %vm256, %v3870, 0
        %v3931 = vsel %vm256, %v3871, 0
        %v3934 = vsel %vm256, %v3872, 0
        %v3937 = vsel %vm256, %v3873, 0
        %v3940 = vsel %vm256, %v3874, 0
        %v3943 = vsel %vm256, %v3875, 0
        %v3946 = vsel %vm256, %v3876, 0
        %v3949 = vsel %vm256, %v3877, 0
        %v3952 = vsel %vm256, %v3878, 0
        %v3955 = vsel %vm256, %v3879, 0
        %v3958 = vsel %vm256, %v3880, 0
        %v3961 = vsel %vm256, %v3881, 0
        %v3964 = vsel %vm256, %v3882, 0
        %v3967 = vsel %vm256, %v3883, 0
        %v3970 = vsel %vm256, %v3884, 0
        %v3973 = vsel %vm256, %v3885, 0
        %v3976 = vsel %vm256, %v3886, 0
        %v3979 = vsel %vm256, %v3887, 0
        %v3982 = vsel %vm256, %v3888, 0
        %v3985 = vsel %vm256, %v3889, 0
        %v3988 = vsel %vm256, %v3890, 0
        %v3991 = vsel %vm256, %v3891, 0
        %v3994 = vsel %vm256, %v3892, 0
        %v3997 = vsel %vm256, %v3893, 0
        %3999 = vmatpush.msra.mxu0 0.0
        %4000 = vmatpush.msra.mxu0 0.0
        %4001 = vmatpush.msra.mxu0 0.0
        %4002 = vmatpush.msra.mxu0 0.0
        %4003 = vmatpush.msra.mxu0 0.0
        %4004 = vmatpush.msra.mxu0 0.0
        %4005 = vmatpush.msra.mxu0 0.0
        %4006 = vmatpush.msra.mxu0 0.0
        %4007 = vmatpush.msra.mxu0 %v3902
        %4008 = vmatpush.msra.mxu0 %v3901
        %4009 = vmatpush.msra.mxu0 %v3900
        %4010 = vmatpush.msra.mxu0 %v3899
        %4011 = vmatpush.msra.mxu0 %v3898
        %4012 = vmatpush.msra.mxu0 %v3897
        %4013 = vmatpush.msra.mxu0 %v3896
        %4014 = vmatpush.msra.mxu0 %v3895
        %4015 = vmatmul.f32.gmra.mxu0 %v3904
        %v4016 = vpop.f32.mrf.mxu0
        %v4017 = vadd.f32 0.0, %v4016
        %4018 = vmatmul.f32.gmra.mxu0 %v3907
        %v4019 = vpop.f32.mrf.mxu0
        %v4020 = vadd.f32 0.0, %v4019
        %4021 = vmatmul.f32.gmra.mxu0 %v3910
        %v4022 = vpop.f32.mrf.mxu0
        %v4023 = vadd.f32 0.0, %v4022
        %4024 = vmatmul.f32.gmra.mxu0 %v3913
        %v4025 = vpop.f32.mrf.mxu0
        %v4026 = vadd.f32 0.0, %v4025
        %4027 = vmatmul.f32.gmra.mxu0 %v3916
        %v4028 = vpop.f32.mrf.mxu0
        %v4029 = vadd.f32 0.0, %v4028
        %4030 = vmatmul.f32.gmra.mxu0 %v3919
        %v4031 = vpop.f32.mrf.mxu0
        %v4032 = vadd.f32 0.0, %v4031
        %4033 = vmatmul.f32.gmra.mxu0 %v3922
        %v4034 = vpop.f32.mrf.mxu0
        %v4035 = vadd.f32 0.0, %v4034
        %4036 = vmatmul.f32.gmra.mxu0 %v3925
        %v4037 = vpop.f32.mrf.mxu0
        %v4038 = vadd.f32 0.0, %v4037
        %4039 = vmatmul.f32.gmra.mxu0 %v3928
        %v4040 = vpop.f32.mrf.mxu0
        %v4041 = vadd.f32 0.0, %v4040
        %4042 = vmatmul.f32.gmra.mxu0 %v3931
        %v4043 = vpop.f32.mrf.mxu0
        %v4044 = vadd.f32 0.0, %v4043
        %4045 = vmatmul.f32.gmra.mxu0 %v3934
        %v4046 = vpop.f32.mrf.mxu0
        %v4047 = vadd.f32 0.0, %v4046
        %4048 = vmatmul.f32.gmra.mxu0 %v3937
        %v4049 = vpop.f32.mrf.mxu0
        %v4050 = vadd.f32 0.0, %v4049
        %4051 = vmatmul.f32.gmra.mxu0 %v3940
        %v4052 = vpop.f32.mrf.mxu0
        %v4053 = vadd.f32 0.0, %v4052
        %4054 = vmatmul.f32.gmra.mxu0 %v3943
        %v4055 = vpop.f32.mrf.mxu0
        %v4056 = vadd.f32 0.0, %v4055
        %4057 = vmatmul.f32.gmra.mxu0 %v3946
        %v4058 = vpop.f32.mrf.mxu0
        %v4059 = vadd.f32 0.0, %v4058
        %4060 = vmatmul.f32.gmra.mxu0 %v3949
        %v4061 = vpop.f32.mrf.mxu0
        %v4062 = vadd.f32 0.0, %v4061
        %4063 = vmatmul.f32.gmra.mxu0 %v3952
        %v4064 = vpop.f32.mrf.mxu0
        %v4065 = vadd.f32 0.0, %v4064
        %4066 = vmatmul.f32.gmra.mxu0 %v3955
        %v4067 = vpop.f32.mrf.mxu0
        %v4068 = vadd.f32 0.0, %v4067
        %4069 = vmatmul.f32.gmra.mxu0 %v3958
        %v4070 = vpop.f32.mrf.mxu0
        %v4071 = vadd.f32 0.0, %v4070
        %4072 = vmatmul.f32.gmra.mxu0 %v3961
        %v4073 = vpop.f32.mrf.mxu0
        %v4074 = vadd.f32 0.0, %v4073
        %4075 = vmatmul.f32.gmra.mxu0 %v3964
        %v4076 = vpop.f32.mrf.mxu0
        %v4077 = vadd.f32 0.0, %v4076
        %4078 = vmatmul.f32.gmra.mxu0 %v3967
        %v4079 = vpop.f32.mrf.mxu0
        %v4080 = vadd.f32 0.0, %v4079
        %4081 = vmatmul.f32.gmra.mxu0 %v3970
        %v4082 = vpop.f32.mrf.mxu0
        %v4083 = vadd.f32 0.0, %v4082
        %4084 = vmatmul.f32.gmra.mxu0 %v3973
        %v4085 = vpop.f32.mrf.mxu0
        %v4086 = vadd.f32 0.0, %v4085
        %4087 = vmatmul.f32.gmra.mxu0 %v3976
        %v4088 = vpop.f32.mrf.mxu0
        %v4089 = vadd.f32 0.0, %v4088
        %4090 = vmatmul.f32.gmra.mxu0 %v3979
        %v4091 = vpop.f32.mrf.mxu0
        %v4092 = vadd.f32 0.0, %v4091
        %4093 = vmatmul.f32.gmra.mxu0 %v3982
        %v4094 = vpop.f32.mrf.mxu0
        %v4095 = vadd.f32 0.0, %v4094
        %4096 = vmatmul.f32.gmra.mxu0 %v3985
        %v4097 = vpop.f32.mrf.mxu0
        %v4098 = vadd.f32 0.0, %v4097
        %4099 = vmatmul.f32.gmra.mxu0 %v3988
        %v4100 = vpop.f32.mrf.mxu0
        %v4101 = vadd.f32 0.0, %v4100
        %4102 = vmatmul.f32.gmra.mxu0 %v3991
        %v4103 = vpop.f32.mrf.mxu0
        %v4104 = vadd.f32 0.0, %v4103
        %4105 = vmatmul.f32.gmra.mxu0 %v3994
        %v4106 = vpop.f32.mrf.mxu0
        %v4107 = vadd.f32 0.0, %v4106
        %4108 = vmatmul.f32.gmra.mxu0 %v3997
        %v4109 = vpop.f32.mrf.mxu0
        %v4110 = vadd.f32 0.0, %v4109
        %4111 = vdwg.mxu0
        %v4112 = vadd.f32 %v3830, %v4017
        %v4113 = vadd.f32 %v3831, %v4020
        %v4114 = vadd.f32 %v3832, %v4023
        %v4115 = vadd.f32 %v3833, %v4026
        %v4116 = vadd.f32 %v3834, %v4029
        %v4117 = vadd.f32 %v3835, %v4032
        %v4118 = vadd.f32 %v3836, %v4035
        %v4119 = vadd.f32 %v3837, %v4038
        %v4120 = vadd.f32 %v3838, %v4041
        %v4121 = vadd.f32 %v3839, %v4044
        %v4122 = vadd.f32 %v3840, %v4047
        %v4123 = vadd.f32 %v3841, %v4050
        %v4124 = vadd.f32 %v3842, %v4053
        %v4125 = vadd.f32 %v3843, %v4056
        %v4126 = vadd.f32 %v3844, %v4059
        %v4127 = vadd.f32 %v3845, %v4062
        %v4128 = vadd.f32 %v3846, %v4065
        %v4129 = vadd.f32 %v3847, %v4068
        %v4130 = vadd.f32 %v3848, %v4071
        %v4131 = vadd.f32 %v3849, %v4074
        %v4132 = vadd.f32 %v3850, %v4077
        %v4133 = vadd.f32 %v3851, %v4080
        %v4134 = vadd.f32 %v3852, %v4083
        %v4135 = vadd.f32 %v3853, %v4086
        %v4136 = vadd.f32 %v3854, %v4089
        %v4137 = vadd.f32 %v3855, %v4092
        %v4138 = vadd.f32 %v3856, %v4095
        %v4139 = vadd.f32 %v3857, %v4098
        %v4140 = vadd.f32 %v3858, %v4101
        %v4141 = vadd.f32 %v3859, %v4104
        %v4142 = vadd.f32 %v3860, %v4107
        %v4143 = vadd.f32 %v3861, %v4110
        %v4144 = vld [vmem:[%s255 + $0x1] sm:$0xff]
        %v4145 = vld [vmem:[%s255 + $0x9] sm:$0xff]
        %v4146 = vld [vmem:[%s255 + $0x19] sm:$0xff]
        %v4147 = vld [vmem:[%s255 + $0x21] sm:$0xff]
        %v4148 = vld [vmem:[%s255 + $0x31] sm:$0xff]
        %v4149 = vld [vmem:[%s255 + $0x39] sm:$0xff]
        %v4150 = vld [vmem:[%s255 + $0x49] sm:$0xff]
        %v4151 = vld [vmem:[%s255 + $0x51] sm:$0xff]
        %v4152 = vld [vmem:[%s255 + $0x61] sm:$0xff]
        %v4153 = vld [vmem:[%s255 + $0x69] sm:$0xff]
        %v4154 = vld [vmem:[%s255 + $0x79] sm:$0xff]
        %v4155 = vld [vmem:[%s255 + $0x81] sm:$0xff]
        %v4156 = vld [vmem:[%s255 + $0x91] sm:$0xff]
        %v4157 = vld [vmem:[%s255 + $0x99] sm:$0xff]
        %v4158 = vld [vmem:[%s255 + $0xa9] sm:$0xff]
        %v4159 = vld [vmem:[%s255 + $0xb1] sm:$0xff]
        %v4160 = vld [vmem:[%s255 + $0xc1] sm:$0xff]
        %v4161 = vld [vmem:[%s255 + $0xc9] sm:$0xff]
        %v4162 = vld [vmem:[%s255 + $0xd9] sm:$0xff]
        %v4163 = vld [vmem:[%s255 + $0xe1] sm:$0xff]
        %v4164 = vld [vmem:[%s255 + $0xf1] sm:$0xff]
        %v4165 = vld [vmem:[%s255 + $0xf9] sm:$0xff]
        %v4166 = vld [vmem:[%s255 + $0x109] sm:$0xff]
        %v4167 = vld [vmem:[%s255 + $0x111] sm:$0xff]
        %v4168 = vld [vmem:[%s255 + $0x121] sm:$0xff]
        %v4169 = vld [vmem:[%s255 + $0x129] sm:$0xff]
        %v4170 = vld [vmem:[%s255 + $0x139] sm:$0xff]
        %v4171 = vld [vmem:[%s255 + $0x141] sm:$0xff]
        %v4172 = vld [vmem:[%s255 + $0x151] sm:$0xff]
        %v4173 = vld [vmem:[%s255 + $0x159] sm:$0xff]
        %v4174 = vld [vmem:[%s255 + $0x169] sm:$0xff]
        %v4175 = vld [vmem:[%s255 + $0x171] sm:$0xff]
        %s4176 = scalar_lea.vmem %s3, 256
        %v4177 = vld [vmem:[%s4176] sm:$0xff]
        %v4178 = vld [vmem:[%s4176 + $0x8] sm:$0xff]
        %v4179 = vld [vmem:[%s4176 + $0x10] sm:$0xff]
        %v4180 = vld [vmem:[%s4176 + $0x18] sm:$0xff]
        %v4181 = vld [vmem:[%s4176 + $0x20] sm:$0xff]
        %v4182 = vld [vmem:[%s4176 + $0x28] sm:$0xff]
        %v4183 = vld [vmem:[%s4176 + $0x30] sm:$0xff]
        %v4184 = vld [vmem:[%s4176 + $0x38] sm:$0xff]
        %v4186 = vsel %vm256, %v4144, 0
        %v4189 = vsel %vm256, %v4145, 0
        %v4192 = vsel %vm256, %v4146, 0
        %v4195 = vsel %vm256, %v4147, 0
        %v4198 = vsel %vm256, %v4148, 0
        %v4201 = vsel %vm256, %v4149, 0
        %v4204 = vsel %vm256, %v4150, 0
        %v4207 = vsel %vm256, %v4151, 0
        %v4210 = vsel %vm256, %v4152, 0
        %v4213 = vsel %vm256, %v4153, 0
        %v4216 = vsel %vm256, %v4154, 0
        %v4219 = vsel %vm256, %v4155, 0
        %v4222 = vsel %vm256, %v4156, 0
        %v4225 = vsel %vm256, %v4157, 0
        %v4228 = vsel %vm256, %v4158, 0
        %v4231 = vsel %vm256, %v4159, 0
        %v4234 = vsel %vm256, %v4160, 0
        %v4237 = vsel %vm256, %v4161, 0
        %v4240 = vsel %vm256, %v4162, 0
        %v4243 = vsel %vm256, %v4163, 0
        %v4246 = vsel %vm256, %v4164, 0
        %v4249 = vsel %vm256, %v4165, 0
        %v4252 = vsel %vm256, %v4166, 0
        %v4255 = vsel %vm256, %v4167, 0
        %v4258 = vsel %vm256, %v4168, 0
        %v4261 = vsel %vm256, %v4169, 0
        %v4264 = vsel %vm256, %v4170, 0
        %v4267 = vsel %vm256, %v4171, 0
        %v4270 = vsel %vm256, %v4172, 0
        %v4273 = vsel %vm256, %v4173, 0
        %v4276 = vsel %vm256, %v4174, 0
        %v4279 = vsel %vm256, %v4175, 0
        %4281 = vmatpush.msra.mxu0 0.0
        %4282 = vmatpush.msra.mxu0 0.0
        %4283 = vmatpush.msra.mxu0 0.0
        %4284 = vmatpush.msra.mxu0 0.0
        %4285 = vmatpush.msra.mxu0 0.0
        %4286 = vmatpush.msra.mxu0 0.0
        %4287 = vmatpush.msra.mxu0 0.0
        %4288 = vmatpush.msra.mxu0 0.0
        %4289 = vmatpush.msra.mxu0 %v4184
        %4290 = vmatpush.msra.mxu0 %v4183
        %4291 = vmatpush.msra.mxu0 %v4182
        %4292 = vmatpush.msra.mxu0 %v4181
        %4293 = vmatpush.msra.mxu0 %v4180
        %4294 = vmatpush.msra.mxu0 %v4179
        %4295 = vmatpush.msra.mxu0 %v4178
        %4296 = vmatpush.msra.mxu0 %v4177
        %4297 = vmatmul.f32.gmra.mxu0 %v4186
        %v4298 = vpop.f32.mrf.mxu0
        %v4299 = vadd.f32 0.0, %v4298
        %4300 = vmatmul.f32.gmra.mxu0 %v4189
        %v4301 = vpop.f32.mrf.mxu0
        %v4302 = vadd.f32 0.0, %v4301
        %4303 = vmatmul.f32.gmra.mxu0 %v4192
        %v4304 = vpop.f32.mrf.mxu0
        %v4305 = vadd.f32 0.0, %v4304
        %4306 = vmatmul.f32.gmra.mxu0 %v4195
        %v4307 = vpop.f32.mrf.mxu0
        %v4308 = vadd.f32 0.0, %v4307
        %4309 = vmatmul.f32.gmra.mxu0 %v4198
        %v4310 = vpop.f32.mrf.mxu0
        %v4311 = vadd.f32 0.0, %v4310
        %4312 = vmatmul.f32.gmra.mxu0 %v4201
        %v4313 = vpop.f32.mrf.mxu0
        %v4314 = vadd.f32 0.0, %v4313
        %4315 = vmatmul.f32.gmra.mxu0 %v4204
        %v4316 = vpop.f32.mrf.mxu0
        %v4317 = vadd.f32 0.0, %v4316
        %4318 = vmatmul.f32.gmra.mxu0 %v4207
        %v4319 = vpop.f32.mrf.mxu0
        %v4320 = vadd.f32 0.0, %v4319
        %4321 = vmatmul.f32.gmra.mxu0 %v4210
        %v4322 = vpop.f32.mrf.mxu0
        %v4323 = vadd.f32 0.0, %v4322
        %4324 = vmatmul.f32.gmra.mxu0 %v4213
        %v4325 = vpop.f32.mrf.mxu0
        %v4326 = vadd.f32 0.0, %v4325
        %4327 = vmatmul.f32.gmra.mxu0 %v4216
        %v4328 = vpop.f32.mrf.mxu0
        %v4329 = vadd.f32 0.0, %v4328
        %4330 = vmatmul.f32.gmra.mxu0 %v4219
        %v4331 = vpop.f32.mrf.mxu0
        %v4332 = vadd.f32 0.0, %v4331
        %4333 = vmatmul.f32.gmra.mxu0 %v4222
        %v4334 = vpop.f32.mrf.mxu0
        %v4335 = vadd.f32 0.0, %v4334
        %4336 = vmatmul.f32.gmra.mxu0 %v4225
        %v4337 = vpop.f32.mrf.mxu0
        %v4338 = vadd.f32 0.0, %v4337
        %4339 = vmatmul.f32.gmra.mxu0 %v4228
        %v4340 = vpop.f32.mrf.mxu0
        %v4341 = vadd.f32 0.0, %v4340
        %4342 = vmatmul.f32.gmra.mxu0 %v4231
        %v4343 = vpop.f32.mrf.mxu0
        %v4344 = vadd.f32 0.0, %v4343
        %4345 = vmatmul.f32.gmra.mxu0 %v4234
        %v4346 = vpop.f32.mrf.mxu0
        %v4347 = vadd.f32 0.0, %v4346
        %4348 = vmatmul.f32.gmra.mxu0 %v4237
        %v4349 = vpop.f32.mrf.mxu0
        %v4350 = vadd.f32 0.0, %v4349
        %4351 = vmatmul.f32.gmra.mxu0 %v4240
        %v4352 = vpop.f32.mrf.mxu0
        %v4353 = vadd.f32 0.0, %v4352
        %4354 = vmatmul.f32.gmra.mxu0 %v4243
        %v4355 = vpop.f32.mrf.mxu0
        %v4356 = vadd.f32 0.0, %v4355
        %4357 = vmatmul.f32.gmra.mxu0 %v4246
        %v4358 = vpop.f32.mrf.mxu0
        %v4359 = vadd.f32 0.0, %v4358
        %4360 = vmatmul.f32.gmra.mxu0 %v4249
        %v4361 = vpop.f32.mrf.mxu0
        %v4362 = vadd.f32 0.0, %v4361
        %4363 = vmatmul.f32.gmra.mxu0 %v4252
        %v4364 = vpop.f32.mrf.mxu0
        %v4365 = vadd.f32 0.0, %v4364
        %4366 = vmatmul.f32.gmra.mxu0 %v4255
        %v4367 = vpop.f32.mrf.mxu0
        %v4368 = vadd.f32 0.0, %v4367
        %4369 = vmatmul.f32.gmra.mxu0 %v4258
        %v4370 = vpop.f32.mrf.mxu0
        %v4371 = vadd.f32 0.0, %v4370
        %4372 = vmatmul.f32.gmra.mxu0 %v4261
        %v4373 = vpop.f32.mrf.mxu0
        %v4374 = vadd.f32 0.0, %v4373
        %4375 = vmatmul.f32.gmra.mxu0 %v4264
        %v4376 = vpop.f32.mrf.mxu0
        %v4377 = vadd.f32 0.0, %v4376
        %4378 = vmatmul.f32.gmra.mxu0 %v4267
        %v4379 = vpop.f32.mrf.mxu0
        %v4380 = vadd.f32 0.0, %v4379
        %4381 = vmatmul.f32.gmra.mxu0 %v4270
        %v4382 = vpop.f32.mrf.mxu0
        %v4383 = vadd.f32 0.0, %v4382
        %4384 = vmatmul.f32.gmra.mxu0 %v4273
        %v4385 = vpop.f32.mrf.mxu0
        %v4386 = vadd.f32 0.0, %v4385
        %4387 = vmatmul.f32.gmra.mxu0 %v4276
        %v4388 = vpop.f32.mrf.mxu0
        %v4389 = vadd.f32 0.0, %v4388
        %4390 = vmatmul.f32.gmra.mxu0 %v4279
        %v4391 = vpop.f32.mrf.mxu0
        %v4392 = vadd.f32 0.0, %v4391
        %4393 = vdwg.mxu0
        %v4394 = vadd.f32 %v4112, %v4299
        %v4395 = vadd.f32 %v4113, %v4302
        %v4396 = vadd.f32 %v4114, %v4305
        %v4397 = vadd.f32 %v4115, %v4308
        %v4398 = vadd.f32 %v4116, %v4311
        %v4399 = vadd.f32 %v4117, %v4314
        %v4400 = vadd.f32 %v4118, %v4317
        %v4401 = vadd.f32 %v4119, %v4320
        %v4402 = vadd.f32 %v4120, %v4323
        %v4403 = vadd.f32 %v4121, %v4326
        %v4404 = vadd.f32 %v4122, %v4329
        %v4405 = vadd.f32 %v4123, %v4332
        %v4406 = vadd.f32 %v4124, %v4335
        %v4407 = vadd.f32 %v4125, %v4338
        %v4408 = vadd.f32 %v4126, %v4341
        %v4409 = vadd.f32 %v4127, %v4344
        %v4410 = vadd.f32 %v4128, %v4347
        %v4411 = vadd.f32 %v4129, %v4350
        %v4412 = vadd.f32 %v4130, %v4353
        %v4413 = vadd.f32 %v4131, %v4356
        %v4414 = vadd.f32 %v4132, %v4359
        %v4415 = vadd.f32 %v4133, %v4362
        %v4416 = vadd.f32 %v4134, %v4365
        %v4417 = vadd.f32 %v4135, %v4368
        %v4418 = vadd.f32 %v4136, %v4371
        %v4419 = vadd.f32 %v4137, %v4374
        %v4420 = vadd.f32 %v4138, %v4377
        %v4421 = vadd.f32 %v4139, %v4380
        %v4422 = vadd.f32 %v4140, %v4383
        %v4423 = vadd.f32 %v4141, %v4386
        %v4424 = vadd.f32 %v4142, %v4389
        %v4425 = vadd.f32 %v4143, %v4392
        %v4426 = vld [vmem:[%s255 + $0x2] sm:$0xff]
        %v4427 = vld [vmem:[%s255 + $0xa] sm:$0xff]
        %v4428 = vld [vmem:[%s255 + $0x1a] sm:$0xff]
        %v4429 = vld [vmem:[%s255 + $0x22] sm:$0xff]
        %v4430 = vld [vmem:[%s255 + $0x32] sm:$0xff]
        %v4431 = vld [vmem:[%s255 + $0x3a] sm:$0xff]
        %v4432 = vld [vmem:[%s255 + $0x4a] sm:$0xff]
        %v4433 = vld [vmem:[%s255 + $0x52] sm:$0xff]
        %v4434 = vld [vmem:[%s255 + $0x62] sm:$0xff]
        %v4435 = vld [vmem:[%s255 + $0x6a] sm:$0xff]
        %v4436 = vld [vmem:[%s255 + $0x7a] sm:$0xff]
        %v4437 = vld [vmem:[%s255 + $0x82] sm:$0xff]
        %v4438 = vld [vmem:[%s255 + $0x92] sm:$0xff]
        %v4439 = vld [vmem:[%s255 + $0x9a] sm:$0xff]
        %v4440 = vld [vmem:[%s255 + $0xaa] sm:$0xff]
        %v4441 = vld [vmem:[%s255 + $0xb2] sm:$0xff]
        %v4442 = vld [vmem:[%s255 + $0xc2] sm:$0xff]
        %v4443 = vld [vmem:[%s255 + $0xca] sm:$0xff]
        %v4444 = vld [vmem:[%s255 + $0xda] sm:$0xff]
        %v4445 = vld [vmem:[%s255 + $0xe2] sm:$0xff]
        %v4446 = vld [vmem:[%s255 + $0xf2] sm:$0xff]
        %v4447 = vld [vmem:[%s255 + $0xfa] sm:$0xff]
        %v4448 = vld [vmem:[%s255 + $0x10a] sm:$0xff]
        %v4449 = vld [vmem:[%s255 + $0x112] sm:$0xff]
        %v4450 = vld [vmem:[%s255 + $0x122] sm:$0xff]
        %v4451 = vld [vmem:[%s255 + $0x12a] sm:$0xff]
        %v4452 = vld [vmem:[%s255 + $0x13a] sm:$0xff]
        %v4453 = vld [vmem:[%s255 + $0x142] sm:$0xff]
        %v4454 = vld [vmem:[%s255 + $0x152] sm:$0xff]
        %v4455 = vld [vmem:[%s255 + $0x15a] sm:$0xff]
        %v4456 = vld [vmem:[%s255 + $0x16a] sm:$0xff]
        %v4457 = vld [vmem:[%s255 + $0x172] sm:$0xff]
        %s4458 = scalar_lea.vmem %s3, 320
        %v4459 = vld [vmem:[%s4458] sm:$0xff]
        %v4460 = vld [vmem:[%s4458 + $0x8] sm:$0xff]
        %v4461 = vld [vmem:[%s4458 + $0x10] sm:$0xff]
        %v4462 = vld [vmem:[%s4458 + $0x18] sm:$0xff]
        %v4463 = vld [vmem:[%s4458 + $0x20] sm:$0xff]
        %v4464 = vld [vmem:[%s4458 + $0x28] sm:$0xff]
        %v4465 = vld [vmem:[%s4458 + $0x30] sm:$0xff]
        %v4466 = vld [vmem:[%s4458 + $0x38] sm:$0xff]
        %v4468 = vsel %vm256, %v4426, 0
        %v4471 = vsel %vm256, %v4427, 0
        %v4474 = vsel %vm256, %v4428, 0
        %v4477 = vsel %vm256, %v4429, 0
        %v4480 = vsel %vm256, %v4430, 0
        %v4483 = vsel %vm256, %v4431, 0
        %v4486 = vsel %vm256, %v4432, 0
        %v4489 = vsel %vm256, %v4433, 0
        %v4492 = vsel %vm256, %v4434, 0
        %v4495 = vsel %vm256, %v4435, 0
        %v4498 = vsel %vm256, %v4436, 0
        %v4501 = vsel %vm256, %v4437, 0
        %v4504 = vsel %vm256, %v4438, 0
        %v4507 = vsel %vm256, %v4439, 0
        %v4510 = vsel %vm256, %v4440, 0
        %v4513 = vsel %vm256, %v4441, 0
        %v4516 = vsel %vm256, %v4442, 0
        %v4519 = vsel %vm256, %v4443, 0
        %v4522 = vsel %vm256, %v4444, 0
        %v4525 = vsel %vm256, %v4445, 0
        %v4528 = vsel %vm256, %v4446, 0
        %v4531 = vsel %vm256, %v4447, 0
        %v4534 = vsel %vm256, %v4448, 0
        %v4537 = vsel %vm256, %v4449, 0
        %v4540 = vsel %vm256, %v4450, 0
        %v4543 = vsel %vm256, %v4451, 0
        %v4546 = vsel %vm256, %v4452, 0
        %v4549 = vsel %vm256, %v4453, 0
        %v4552 = vsel %vm256, %v4454, 0
        %v4555 = vsel %vm256, %v4455, 0
        %v4558 = vsel %vm256, %v4456, 0
        %v4561 = vsel %vm256, %v4457, 0
        %4563 = vmatpush.msra.mxu0 0.0
        %4564 = vmatpush.msra.mxu0 0.0
        %4565 = vmatpush.msra.mxu0 0.0
        %4566 = vmatpush.msra.mxu0 0.0
        %4567 = vmatpush.msra.mxu0 0.0
        %4568 = vmatpush.msra.mxu0 0.0
        %4569 = vmatpush.msra.mxu0 0.0
        %4570 = vmatpush.msra.mxu0 0.0
        %4571 = vmatpush.msra.mxu0 %v4466
        %4572 = vmatpush.msra.mxu0 %v4465
        %4573 = vmatpush.msra.mxu0 %v4464
        %4574 = vmatpush.msra.mxu0 %v4463
        %4575 = vmatpush.msra.mxu0 %v4462
        %4576 = vmatpush.msra.mxu0 %v4461
        %4577 = vmatpush.msra.mxu0 %v4460
        %4578 = vmatpush.msra.mxu0 %v4459
        %4579 = vmatmul.f32.gmra.mxu0 %v4468
        %v4580 = vpop.f32.mrf.mxu0
        %v4581 = vadd.f32 0.0, %v4580
        %4582 = vmatmul.f32.gmra.mxu0 %v4471
        %v4583 = vpop.f32.mrf.mxu0
        %v4584 = vadd.f32 0.0, %v4583
        %4585 = vmatmul.f32.gmra.mxu0 %v4474
        %v4586 = vpop.f32.mrf.mxu0
        %v4587 = vadd.f32 0.0, %v4586
        %4588 = vmatmul.f32.gmra.mxu0 %v4477
        %v4589 = vpop.f32.mrf.mxu0
        %v4590 = vadd.f32 0.0, %v4589
        %4591 = vmatmul.f32.gmra.mxu0 %v4480
        %v4592 = vpop.f32.mrf.mxu0
        %v4593 = vadd.f32 0.0, %v4592
        %4594 = vmatmul.f32.gmra.mxu0 %v4483
        %v4595 = vpop.f32.mrf.mxu0
        %v4596 = vadd.f32 0.0, %v4595
        %4597 = vmatmul.f32.gmra.mxu0 %v4486
        %v4598 = vpop.f32.mrf.mxu0
        %v4599 = vadd.f32 0.0, %v4598
        %4600 = vmatmul.f32.gmra.mxu0 %v4489
        %v4601 = vpop.f32.mrf.mxu0
        %v4602 = vadd.f32 0.0, %v4601
        %4603 = vmatmul.f32.gmra.mxu0 %v4492
        %v4604 = vpop.f32.mrf.mxu0
        %v4605 = vadd.f32 0.0, %v4604
        %4606 = vmatmul.f32.gmra.mxu0 %v4495
        %v4607 = vpop.f32.mrf.mxu0
        %v4608 = vadd.f32 0.0, %v4607
        %4609 = vmatmul.f32.gmra.mxu0 %v4498
        %v4610 = vpop.f32.mrf.mxu0
        %v4611 = vadd.f32 0.0, %v4610
        %4612 = vmatmul.f32.gmra.mxu0 %v4501
        %v4613 = vpop.f32.mrf.mxu0
        %v4614 = vadd.f32 0.0, %v4613
        %4615 = vmatmul.f32.gmra.mxu0 %v4504
        %v4616 = vpop.f32.mrf.mxu0
        %v4617 = vadd.f32 0.0, %v4616
        %4618 = vmatmul.f32.gmra.mxu0 %v4507
        %v4619 = vpop.f32.mrf.mxu0
        %v4620 = vadd.f32 0.0, %v4619
        %4621 = vmatmul.f32.gmra.mxu0 %v4510
        %v4622 = vpop.f32.mrf.mxu0
        %v4623 = vadd.f32 0.0, %v4622
        %4624 = vmatmul.f32.gmra.mxu0 %v4513
        %v4625 = vpop.f32.mrf.mxu0
        %v4626 = vadd.f32 0.0, %v4625
        %4627 = vmatmul.f32.gmra.mxu0 %v4516
        %v4628 = vpop.f32.mrf.mxu0
        %v4629 = vadd.f32 0.0, %v4628
        %4630 = vmatmul.f32.gmra.mxu0 %v4519
        %v4631 = vpop.f32.mrf.mxu0
        %v4632 = vadd.f32 0.0, %v4631
        %4633 = vmatmul.f32.gmra.mxu0 %v4522
        %v4634 = vpop.f32.mrf.mxu0
        %v4635 = vadd.f32 0.0, %v4634
        %4636 = vmatmul.f32.gmra.mxu0 %v4525
        %v4637 = vpop.f32.mrf.mxu0
        %v4638 = vadd.f32 0.0, %v4637
        %4639 = vmatmul.f32.gmra.mxu0 %v4528
        %v4640 = vpop.f32.mrf.mxu0
        %v4641 = vadd.f32 0.0, %v4640
        %4642 = vmatmul.f32.gmra.mxu0 %v4531
        %v4643 = vpop.f32.mrf.mxu0
        %v4644 = vadd.f32 0.0, %v4643
        %4645 = vmatmul.f32.gmra.mxu0 %v4534
        %v4646 = vpop.f32.mrf.mxu0
        %v4647 = vadd.f32 0.0, %v4646
        %4648 = vmatmul.f32.gmra.mxu0 %v4537
        %v4649 = vpop.f32.mrf.mxu0
        %v4650 = vadd.f32 0.0, %v4649
        %4651 = vmatmul.f32.gmra.mxu0 %v4540
        %v4652 = vpop.f32.mrf.mxu0
        %v4653 = vadd.f32 0.0, %v4652
        %4654 = vmatmul.f32.gmra.mxu0 %v4543
        %v4655 = vpop.f32.mrf.mxu0
        %v4656 = vadd.f32 0.0, %v4655
        %4657 = vmatmul.f32.gmra.mxu0 %v4546
        %v4658 = vpop.f32.mrf.mxu0
        %v4659 = vadd.f32 0.0, %v4658
        %4660 = vmatmul.f32.gmra.mxu0 %v4549
        %v4661 = vpop.f32.mrf.mxu0
        %v4662 = vadd.f32 0.0, %v4661
        %4663 = vmatmul.f32.gmra.mxu0 %v4552
        %v4664 = vpop.f32.mrf.mxu0
        %v4665 = vadd.f32 0.0, %v4664
        %4666 = vmatmul.f32.gmra.mxu0 %v4555
        %v4667 = vpop.f32.mrf.mxu0
        %v4668 = vadd.f32 0.0, %v4667
        %4669 = vmatmul.f32.gmra.mxu0 %v4558
        %v4670 = vpop.f32.mrf.mxu0
        %v4671 = vadd.f32 0.0, %v4670
        %4672 = vmatmul.f32.gmra.mxu0 %v4561
        %v4673 = vpop.f32.mrf.mxu0
        %v4674 = vadd.f32 0.0, %v4673
        %4675 = vdwg.mxu0
        %v4676 = vadd.f32 %v4394, %v4581
        %v4677 = vadd.f32 %v4395, %v4584
        %v4678 = vadd.f32 %v4396, %v4587
        %v4679 = vadd.f32 %v4397, %v4590
        %v4680 = vadd.f32 %v4398, %v4593
        %v4681 = vadd.f32 %v4399, %v4596
        %v4682 = vadd.f32 %v4400, %v4599
        %v4683 = vadd.f32 %v4401, %v4602
        %v4684 = vadd.f32 %v4402, %v4605
        %v4685 = vadd.f32 %v4403, %v4608
        %v4686 = vadd.f32 %v4404, %v4611
        %v4687 = vadd.f32 %v4405, %v4614
        %v4688 = vadd.f32 %v4406, %v4617
        %v4689 = vadd.f32 %v4407, %v4620
        %v4690 = vadd.f32 %v4408, %v4623
        %v4691 = vadd.f32 %v4409, %v4626
        %v4692 = vadd.f32 %v4410, %v4629
        %v4693 = vadd.f32 %v4411, %v4632
        %v4694 = vadd.f32 %v4412, %v4635
        %v4695 = vadd.f32 %v4413, %v4638
        %v4696 = vadd.f32 %v4414, %v4641
        %v4697 = vadd.f32 %v4415, %v4644
        %v4698 = vadd.f32 %v4416, %v4647
        %v4699 = vadd.f32 %v4417, %v4650
        %v4700 = vadd.f32 %v4418, %v4653
        %v4701 = vadd.f32 %v4419, %v4656
        %v4702 = vadd.f32 %v4420, %v4659
        %v4703 = vadd.f32 %v4421, %v4662
        %v4704 = vadd.f32 %v4422, %v4665
        %v4705 = vadd.f32 %v4423, %v4668
        %v4706 = vadd.f32 %v4424, %v4671
        %v4707 = vadd.f32 %v4425, %v4674
        %v4708 = vld [vmem:[%s1994] sm:$0xff]
        %v4709 = vld [vmem:[%s1994 + $0x8] sm:$0xff]
        %v4710 = vld [vmem:[%s1994 + $0x18] sm:$0xff]
        %v4711 = vld [vmem:[%s1994 + $0x20] sm:$0xff]
        %v4712 = vld [vmem:[%s1994 + $0x30] sm:$0xff]
        %v4713 = vld [vmem:[%s1994 + $0x38] sm:$0xff]
        %v4714 = vld [vmem:[%s1994 + $0x48] sm:$0xff]
        %v4715 = vld [vmem:[%s1994 + $0x50] sm:$0xff]
        %v4716 = vld [vmem:[%s1994 + $0x60] sm:$0xff]
        %v4717 = vld [vmem:[%s1994 + $0x68] sm:$0xff]
        %v4718 = vld [vmem:[%s1994 + $0x78] sm:$0xff]
        %v4719 = vld [vmem:[%s1994 + $0x80] sm:$0xff]
        %v4720 = vld [vmem:[%s1994 + $0x90] sm:$0xff]
        %v4721 = vld [vmem:[%s1994 + $0x98] sm:$0xff]
        %v4722 = vld [vmem:[%s1994 + $0xa8] sm:$0xff]
        %v4723 = vld [vmem:[%s1994 + $0xb0] sm:$0xff]
        %v4724 = vld [vmem:[%s1994 + $0xc0] sm:$0xff]
        %v4725 = vld [vmem:[%s1994 + $0xc8] sm:$0xff]
        %v4726 = vld [vmem:[%s1994 + $0xd8] sm:$0xff]
        %v4727 = vld [vmem:[%s1994 + $0xe0] sm:$0xff]
        %v4728 = vld [vmem:[%s1994 + $0xf0] sm:$0xff]
        %v4729 = vld [vmem:[%s1994 + $0xf8] sm:$0xff]
        %v4730 = vld [vmem:[%s1994 + $0x108] sm:$0xff]
        %v4731 = vld [vmem:[%s1994 + $0x110] sm:$0xff]
        %v4732 = vld [vmem:[%s1994 + $0x120] sm:$0xff]
        %v4733 = vld [vmem:[%s1994 + $0x128] sm:$0xff]
        %v4734 = vld [vmem:[%s1994 + $0x138] sm:$0xff]
        %v4735 = vld [vmem:[%s1994 + $0x140] sm:$0xff]
        %v4736 = vld [vmem:[%s1994 + $0x150] sm:$0xff]
        %v4737 = vld [vmem:[%s1994 + $0x158] sm:$0xff]
        %v4738 = vld [vmem:[%s1994 + $0x168] sm:$0xff]
        %v4739 = vld [vmem:[%s1994 + $0x170] sm:$0xff]
        %s4740 = scalar_lea.vmem %s3, 384
        %v4741 = vld [vmem:[%s4740] sm:$0xff]
        %v4742 = vld [vmem:[%s4740 + $0x8] sm:$0xff]
        %v4743 = vld [vmem:[%s4740 + $0x10] sm:$0xff]
        %v4744 = vld [vmem:[%s4740 + $0x18] sm:$0xff]
        %v4745 = vld [vmem:[%s4740 + $0x20] sm:$0xff]
        %v4746 = vld [vmem:[%s4740 + $0x28] sm:$0xff]
        %v4747 = vld [vmem:[%s4740 + $0x30] sm:$0xff]
        %v4748 = vld [vmem:[%s4740 + $0x38] sm:$0xff]
        %v4750 = vsel %vm256, %v4708, 0
        %v4753 = vsel %vm256, %v4709, 0
        %v4756 = vsel %vm256, %v4710, 0
        %v4759 = vsel %vm256, %v4711, 0
        %v4762 = vsel %vm256, %v4712, 0
        %v4765 = vsel %vm256, %v4713, 0
        %v4768 = vsel %vm256, %v4714, 0
        %v4771 = vsel %vm256, %v4715, 0
        %v4774 = vsel %vm256, %v4716, 0
        %v4777 = vsel %vm256, %v4717, 0
        %v4780 = vsel %vm256, %v4718, 0
        %v4783 = vsel %vm256, %v4719, 0
        %v4786 = vsel %vm256, %v4720, 0
        %v4789 = vsel %vm256, %v4721, 0
        %v4792 = vsel %vm256, %v4722, 0
        %v4795 = vsel %vm256, %v4723, 0
        %v4798 = vsel %vm256, %v4724, 0
        %v4801 = vsel %vm256, %v4725, 0
        %v4804 = vsel %vm256, %v4726, 0
        %v4807 = vsel %vm256, %v4727, 0
        %v4810 = vsel %vm256, %v4728, 0
        %v4813 = vsel %vm256, %v4729, 0
        %v4816 = vsel %vm256, %v4730, 0
        %v4819 = vsel %vm256, %v4731, 0
        %v4822 = vsel %vm256, %v4732, 0
        %v4825 = vsel %vm256, %v4733, 0
        %v4828 = vsel %vm256, %v4734, 0
        %v4831 = vsel %vm256, %v4735, 0
        %v4834 = vsel %vm256, %v4736, 0
        %v4837 = vsel %vm256, %v4737, 0
        %v4840 = vsel %vm256, %v4738, 0
        %v4843 = vsel %vm256, %v4739, 0
        %4845 = vmatpush.msra.mxu0 0.0
        %4846 = vmatpush.msra.mxu0 0.0
        %4847 = vmatpush.msra.mxu0 0.0
        %4848 = vmatpush.msra.mxu0 0.0
        %4849 = vmatpush.msra.mxu0 0.0
        %4850 = vmatpush.msra.mxu0 0.0
        %4851 = vmatpush.msra.mxu0 0.0
        %4852 = vmatpush.msra.mxu0 0.0
        %4853 = vmatpush.msra.mxu0 %v4748
        %4854 = vmatpush.msra.mxu0 %v4747
        %4855 = vmatpush.msra.mxu0 %v4746
        %4856 = vmatpush.msra.mxu0 %v4745
        %4857 = vmatpush.msra.mxu0 %v4744
        %4858 = vmatpush.msra.mxu0 %v4743
        %4859 = vmatpush.msra.mxu0 %v4742
        %4860 = vmatpush.msra.mxu0 %v4741
        %4861 = vmatmul.f32.gmra.mxu0 %v4750
        %v4862 = vpop.f32.mrf.mxu0
        %v4863 = vadd.f32 0.0, %v4862
        %4864 = vmatmul.f32.gmra.mxu0 %v4753
        %v4865 = vpop.f32.mrf.mxu0
        %v4866 = vadd.f32 0.0, %v4865
        %4867 = vmatmul.f32.gmra.mxu0 %v4756
        %v4868 = vpop.f32.mrf.mxu0
        %v4869 = vadd.f32 0.0, %v4868
        %4870 = vmatmul.f32.gmra.mxu0 %v4759
        %v4871 = vpop.f32.mrf.mxu0
        %v4872 = vadd.f32 0.0, %v4871
        %4873 = vmatmul.f32.gmra.mxu0 %v4762
        %v4874 = vpop.f32.mrf.mxu0
        %v4875 = vadd.f32 0.0, %v4874
        %4876 = vmatmul.f32.gmra.mxu0 %v4765
        %v4877 = vpop.f32.mrf.mxu0
        %v4878 = vadd.f32 0.0, %v4877
        %4879 = vmatmul.f32.gmra.mxu0 %v4768
        %v4880 = vpop.f32.mrf.mxu0
        %v4881 = vadd.f32 0.0, %v4880
        %4882 = vmatmul.f32.gmra.mxu0 %v4771
        %v4883 = vpop.f32.mrf.mxu0
        %v4884 = vadd.f32 0.0, %v4883
        %4885 = vmatmul.f32.gmra.mxu0 %v4774
        %v4886 = vpop.f32.mrf.mxu0
        %v4887 = vadd.f32 0.0, %v4886
        %4888 = vmatmul.f32.gmra.mxu0 %v4777
        %v4889 = vpop.f32.mrf.mxu0
        %v4890 = vadd.f32 0.0, %v4889
        %4891 = vmatmul.f32.gmra.mxu0 %v4780
        %v4892 = vpop.f32.mrf.mxu0
        %v4893 = vadd.f32 0.0, %v4892
        %4894 = vmatmul.f32.gmra.mxu0 %v4783
        %v4895 = vpop.f32.mrf.mxu0
        %v4896 = vadd.f32 0.0, %v4895
        %4897 = vmatmul.f32.gmra.mxu0 %v4786
        %v4898 = vpop.f32.mrf.mxu0
        %v4899 = vadd.f32 0.0, %v4898
        %4900 = vmatmul.f32.gmra.mxu0 %v4789
        %v4901 = vpop.f32.mrf.mxu0
        %v4902 = vadd.f32 0.0, %v4901
        %4903 = vmatmul.f32.gmra.mxu0 %v4792
        %v4904 = vpop.f32.mrf.mxu0
        %v4905 = vadd.f32 0.0, %v4904
        %4906 = vmatmul.f32.gmra.mxu0 %v4795
        %v4907 = vpop.f32.mrf.mxu0
        %v4908 = vadd.f32 0.0, %v4907
        %4909 = vmatmul.f32.gmra.mxu0 %v4798
        %v4910 = vpop.f32.mrf.mxu0
        %v4911 = vadd.f32 0.0, %v4910
        %4912 = vmatmul.f32.gmra.mxu0 %v4801
        %v4913 = vpop.f32.mrf.mxu0
        %v4914 = vadd.f32 0.0, %v4913
        %4915 = vmatmul.f32.gmra.mxu0 %v4804
        %v4916 = vpop.f32.mrf.mxu0
        %v4917 = vadd.f32 0.0, %v4916
        %4918 = vmatmul.f32.gmra.mxu0 %v4807
        %v4919 = vpop.f32.mrf.mxu0
        %v4920 = vadd.f32 0.0, %v4919
        %4921 = vmatmul.f32.gmra.mxu0 %v4810
        %v4922 = vpop.f32.mrf.mxu0
        %v4923 = vadd.f32 0.0, %v4922
        %4924 = vmatmul.f32.gmra.mxu0 %v4813
        %v4925 = vpop.f32.mrf.mxu0
        %v4926 = vadd.f32 0.0, %v4925
        %4927 = vmatmul.f32.gmra.mxu0 %v4816
        %v4928 = vpop.f32.mrf.mxu0
        %v4929 = vadd.f32 0.0, %v4928
        %4930 = vmatmul.f32.gmra.mxu0 %v4819
        %v4931 = vpop.f32.mrf.mxu0
        %v4932 = vadd.f32 0.0, %v4931
        %4933 = vmatmul.f32.gmra.mxu0 %v4822
        %v4934 = vpop.f32.mrf.mxu0
        %v4935 = vadd.f32 0.0, %v4934
        %4936 = vmatmul.f32.gmra.mxu0 %v4825
        %v4937 = vpop.f32.mrf.mxu0
        %v4938 = vadd.f32 0.0, %v4937
        %4939 = vmatmul.f32.gmra.mxu0 %v4828
        %v4940 = vpop.f32.mrf.mxu0
        %v4941 = vadd.f32 0.0, %v4940
        %4942 = vmatmul.f32.gmra.mxu0 %v4831
        %v4943 = vpop.f32.mrf.mxu0
        %v4944 = vadd.f32 0.0, %v4943
        %4945 = vmatmul.f32.gmra.mxu0 %v4834
        %v4946 = vpop.f32.mrf.mxu0
        %v4947 = vadd.f32 0.0, %v4946
        %4948 = vmatmul.f32.gmra.mxu0 %v4837
        %v4949 = vpop.f32.mrf.mxu0
        %v4950 = vadd.f32 0.0, %v4949
        %4951 = vmatmul.f32.gmra.mxu0 %v4840
        %v4952 = vpop.f32.mrf.mxu0
        %v4953 = vadd.f32 0.0, %v4952
        %4954 = vmatmul.f32.gmra.mxu0 %v4843
        %v4955 = vpop.f32.mrf.mxu0
        %v4956 = vadd.f32 0.0, %v4955
        %4957 = vdwg.mxu0
        %v4958 = vadd.f32 %v4676, %v4863
        %v4959 = vadd.f32 %v4677, %v4866
        %v4960 = vadd.f32 %v4678, %v4869
        %v4961 = vadd.f32 %v4679, %v4872
        %v4962 = vadd.f32 %v4680, %v4875
        %v4963 = vadd.f32 %v4681, %v4878
        %v4964 = vadd.f32 %v4682, %v4881
        %v4965 = vadd.f32 %v4683, %v4884
        %v4966 = vadd.f32 %v4684, %v4887
        %v4967 = vadd.f32 %v4685, %v4890
        %v4968 = vadd.f32 %v4686, %v4893
        %v4969 = vadd.f32 %v4687, %v4896
        %v4970 = vadd.f32 %v4688, %v4899
        %v4971 = vadd.f32 %v4689, %v4902
        %v4972 = vadd.f32 %v4690, %v4905
        %v4973 = vadd.f32 %v4691, %v4908
        %v4974 = vadd.f32 %v4692, %v4911
        %v4975 = vadd.f32 %v4693, %v4914
        %v4976 = vadd.f32 %v4694, %v4917
        %v4977 = vadd.f32 %v4695, %v4920
        %v4978 = vadd.f32 %v4696, %v4923
        %v4979 = vadd.f32 %v4697, %v4926
        %v4980 = vadd.f32 %v4698, %v4929
        %v4981 = vadd.f32 %v4699, %v4932
        %v4982 = vadd.f32 %v4700, %v4935
        %v4983 = vadd.f32 %v4701, %v4938
        %v4984 = vadd.f32 %v4702, %v4941
        %v4985 = vadd.f32 %v4703, %v4944
        %v4986 = vadd.f32 %v4704, %v4947
        %v4987 = vadd.f32 %v4705, %v4950
        %v4988 = vadd.f32 %v4706, %v4953
        %v4989 = vadd.f32 %v4707, %v4956
        %v4990 = vld [vmem:[%s1994 + $0x1] sm:$0xff]
        %v4991 = vld [vmem:[%s1994 + $0x9] sm:$0xff]
        %v4992 = vld [vmem:[%s1994 + $0x19] sm:$0xff]
        %v4993 = vld [vmem:[%s1994 + $0x21] sm:$0xff]
        %v4994 = vld [vmem:[%s1994 + $0x31] sm:$0xff]
        %v4995 = vld [vmem:[%s1994 + $0x39] sm:$0xff]
        %v4996 = vld [vmem:[%s1994 + $0x49] sm:$0xff]
        %v4997 = vld [vmem:[%s1994 + $0x51] sm:$0xff]
        %v4998 = vld [vmem:[%s1994 + $0x61] sm:$0xff]
        %v4999 = vld [vmem:[%s1994 + $0x69] sm:$0xff]
        %v5000 = vld [vmem:[%s1994 + $0x79] sm:$0xff]
        %v5001 = vld [vmem:[%s1994 + $0x81] sm:$0xff]
        %v5002 = vld [vmem:[%s1994 + $0x91] sm:$0xff]
        %v5003 = vld [vmem:[%s1994 + $0x99] sm:$0xff]
        %v5004 = vld [vmem:[%s1994 + $0xa9] sm:$0xff]
        %v5005 = vld [vmem:[%s1994 + $0xb1] sm:$0xff]
        %v5006 = vld [vmem:[%s1994 + $0xc1] sm:$0xff]
        %v5007 = vld [vmem:[%s1994 + $0xc9] sm:$0xff]
        %v5008 = vld [vmem:[%s1994 + $0xd9] sm:$0xff]
        %v5009 = vld [vmem:[%s1994 + $0xe1] sm:$0xff]
        %v5010 = vld [vmem:[%s1994 + $0xf1] sm:$0xff]
        %v5011 = vld [vmem:[%s1994 + $0xf9] sm:$0xff]
        %v5012 = vld [vmem:[%s1994 + $0x109] sm:$0xff]
        %v5013 = vld [vmem:[%s1994 + $0x111] sm:$0xff]
        %v5014 = vld [vmem:[%s1994 + $0x121] sm:$0xff]
        %v5015 = vld [vmem:[%s1994 + $0x129] sm:$0xff]
        %v5016 = vld [vmem:[%s1994 + $0x139] sm:$0xff]
        %v5017 = vld [vmem:[%s1994 + $0x141] sm:$0xff]
        %v5018 = vld [vmem:[%s1994 + $0x151] sm:$0xff]
        %v5019 = vld [vmem:[%s1994 + $0x159] sm:$0xff]
        %v5020 = vld [vmem:[%s1994 + $0x169] sm:$0xff]
        %v5021 = vld [vmem:[%s1994 + $0x171] sm:$0xff]
        %s5022 = scalar_lea.vmem %s3, 448
        %v5023 = vld [vmem:[%s5022] sm:$0xff]
        %v5024 = vld [vmem:[%s5022 + $0x8] sm:$0xff]
        %v5025 = vld [vmem:[%s5022 + $0x10] sm:$0xff]
        %v5026 = vld [vmem:[%s5022 + $0x18] sm:$0xff]
        %v5027 = vld [vmem:[%s5022 + $0x20] sm:$0xff]
        %v5028 = vld [vmem:[%s5022 + $0x28] sm:$0xff]
        %v5029 = vld [vmem:[%s5022 + $0x30] sm:$0xff]
        %v5030 = vld [vmem:[%s5022 + $0x38] sm:$0xff]
        %v5032 = vsel %vm256, %v4990, 0
        %v5035 = vsel %vm256, %v4991, 0
        %v5038 = vsel %vm256, %v4992, 0
        %v5041 = vsel %vm256, %v4993, 0
        %v5044 = vsel %vm256, %v4994, 0
        %v5047 = vsel %vm256, %v4995, 0
        %v5050 = vsel %vm256, %v4996, 0
        %v5053 = vsel %vm256, %v4997, 0
        %v5056 = vsel %vm256, %v4998, 0
        %v5059 = vsel %vm256, %v4999, 0
        %v5062 = vsel %vm256, %v5000, 0
        %v5065 = vsel %vm256, %v5001, 0
        %v5068 = vsel %vm256, %v5002, 0
        %v5071 = vsel %vm256, %v5003, 0
        %v5074 = vsel %vm256, %v5004, 0
        %v5077 = vsel %vm256, %v5005, 0
        %v5080 = vsel %vm256, %v5006, 0
        %v5083 = vsel %vm256, %v5007, 0
        %v5086 = vsel %vm256, %v5008, 0
        %v5089 = vsel %vm256, %v5009, 0
        %v5092 = vsel %vm256, %v5010, 0
        %v5095 = vsel %vm256, %v5011, 0
        %v5098 = vsel %vm256, %v5012, 0
        %v5101 = vsel %vm256, %v5013, 0
        %v5104 = vsel %vm256, %v5014, 0
        %v5107 = vsel %vm256, %v5015, 0
        %v5110 = vsel %vm256, %v5016, 0
        %v5113 = vsel %vm256, %v5017, 0
        %v5116 = vsel %vm256, %v5018, 0
        %v5119 = vsel %vm256, %v5019, 0
        %v5122 = vsel %vm256, %v5020, 0
        %v5125 = vsel %vm256, %v5021, 0
        %5127 = vmatpush.msra.mxu0 0.0
        %5128 = vmatpush.msra.mxu0 0.0
        %5129 = vmatpush.msra.mxu0 0.0
        %5130 = vmatpush.msra.mxu0 0.0
        %5131 = vmatpush.msra.mxu0 0.0
        %5132 = vmatpush.msra.mxu0 0.0
        %5133 = vmatpush.msra.mxu0 0.0
        %5134 = vmatpush.msra.mxu0 0.0
        %5135 = vmatpush.msra.mxu0 %v5030
        %5136 = vmatpush.msra.mxu0 %v5029
        %5137 = vmatpush.msra.mxu0 %v5028
        %5138 = vmatpush.msra.mxu0 %v5027
        %5139 = vmatpush.msra.mxu0 %v5026
        %5140 = vmatpush.msra.mxu0 %v5025
        %5141 = vmatpush.msra.mxu0 %v5024
        %5142 = vmatpush.msra.mxu0 %v5023
        %5143 = vmatmul.f32.gmra.mxu0 %v5032
        %v5144 = vpop.f32.mrf.mxu0
        %v5145 = vadd.f32 0.0, %v5144
        %5146 = vmatmul.f32.gmra.mxu0 %v5035
        %v5147 = vpop.f32.mrf.mxu0
        %v5148 = vadd.f32 0.0, %v5147
        %5149 = vmatmul.f32.gmra.mxu0 %v5038
        %v5150 = vpop.f32.mrf.mxu0
        %v5151 = vadd.f32 0.0, %v5150
        %5152 = vmatmul.f32.gmra.mxu0 %v5041
        %v5153 = vpop.f32.mrf.mxu0
        %v5154 = vadd.f32 0.0, %v5153
        %5155 = vmatmul.f32.gmra.mxu0 %v5044
        %v5156 = vpop.f32.mrf.mxu0
        %v5157 = vadd.f32 0.0, %v5156
        %5158 = vmatmul.f32.gmra.mxu0 %v5047
        %v5159 = vpop.f32.mrf.mxu0
        %v5160 = vadd.f32 0.0, %v5159
        %5161 = vmatmul.f32.gmra.mxu0 %v5050
        %v5162 = vpop.f32.mrf.mxu0
        %v5163 = vadd.f32 0.0, %v5162
        %5164 = vmatmul.f32.gmra.mxu0 %v5053
        %v5165 = vpop.f32.mrf.mxu0
        %v5166 = vadd.f32 0.0, %v5165
        %5167 = vmatmul.f32.gmra.mxu0 %v5056
        %v5168 = vpop.f32.mrf.mxu0
        %v5169 = vadd.f32 0.0, %v5168
        %5170 = vmatmul.f32.gmra.mxu0 %v5059
        %v5171 = vpop.f32.mrf.mxu0
        %v5172 = vadd.f32 0.0, %v5171
        %5173 = vmatmul.f32.gmra.mxu0 %v5062
        %v5174 = vpop.f32.mrf.mxu0
        %v5175 = vadd.f32 0.0, %v5174
        %5176 = vmatmul.f32.gmra.mxu0 %v5065
        %v5177 = vpop.f32.mrf.mxu0
        %v5178 = vadd.f32 0.0, %v5177
        %5179 = vmatmul.f32.gmra.mxu0 %v5068
        %v5180 = vpop.f32.mrf.mxu0
        %v5181 = vadd.f32 0.0, %v5180
        %5182 = vmatmul.f32.gmra.mxu0 %v5071
        %v5183 = vpop.f32.mrf.mxu0
        %v5184 = vadd.f32 0.0, %v5183
        %5185 = vmatmul.f32.gmra.mxu0 %v5074
        %v5186 = vpop.f32.mrf.mxu0
        %v5187 = vadd.f32 0.0, %v5186
        %5188 = vmatmul.f32.gmra.mxu0 %v5077
        %v5189 = vpop.f32.mrf.mxu0
        %v5190 = vadd.f32 0.0, %v5189
        %5191 = vmatmul.f32.gmra.mxu0 %v5080
        %v5192 = vpop.f32.mrf.mxu0
        %v5193 = vadd.f32 0.0, %v5192
        %5194 = vmatmul.f32.gmra.mxu0 %v5083
        %v5195 = vpop.f32.mrf.mxu0
        %v5196 = vadd.f32 0.0, %v5195
        %5197 = vmatmul.f32.gmra.mxu0 %v5086
        %v5198 = vpop.f32.mrf.mxu0
        %v5199 = vadd.f32 0.0, %v5198
        %5200 = vmatmul.f32.gmra.mxu0 %v5089
        %v5201 = vpop.f32.mrf.mxu0
        %v5202 = vadd.f32 0.0, %v5201
        %5203 = vmatmul.f32.gmra.mxu0 %v5092
        %v5204 = vpop.f32.mrf.mxu0
        %v5205 = vadd.f32 0.0, %v5204
        %5206 = vmatmul.f32.gmra.mxu0 %v5095
        %v5207 = vpop.f32.mrf.mxu0
        %v5208 = vadd.f32 0.0, %v5207
        %5209 = vmatmul.f32.gmra.mxu0 %v5098
        %v5210 = vpop.f32.mrf.mxu0
        %v5211 = vadd.f32 0.0, %v5210
        %5212 = vmatmul.f32.gmra.mxu0 %v5101
        %v5213 = vpop.f32.mrf.mxu0
        %v5214 = vadd.f32 0.0, %v5213
        %5215 = vmatmul.f32.gmra.mxu0 %v5104
        %v5216 = vpop.f32.mrf.mxu0
        %v5217 = vadd.f32 0.0, %v5216
        %5218 = vmatmul.f32.gmra.mxu0 %v5107
        %v5219 = vpop.f32.mrf.mxu0
        %v5220 = vadd.f32 0.0, %v5219
        %5221 = vmatmul.f32.gmra.mxu0 %v5110
        %v5222 = vpop.f32.mrf.mxu0
        %v5223 = vadd.f32 0.0, %v5222
        %5224 = vmatmul.f32.gmra.mxu0 %v5113
        %v5225 = vpop.f32.mrf.mxu0
        %v5226 = vadd.f32 0.0, %v5225
        %5227 = vmatmul.f32.gmra.mxu0 %v5116
        %v5228 = vpop.f32.mrf.mxu0
        %v5229 = vadd.f32 0.0, %v5228
        %5230 = vmatmul.f32.gmra.mxu0 %v5119
        %v5231 = vpop.f32.mrf.mxu0
        %v5232 = vadd.f32 0.0, %v5231
        %5233 = vmatmul.f32.gmra.mxu0 %v5122
        %v5234 = vpop.f32.mrf.mxu0
        %v5235 = vadd.f32 0.0, %v5234
        %5236 = vmatmul.f32.gmra.mxu0 %v5125
        %v5237 = vpop.f32.mrf.mxu0
        %v5238 = vadd.f32 0.0, %v5237
        %5239 = vdwg.mxu0
        %v5240 = vadd.f32 %v4958, %v5145
        %v5241 = vadd.f32 %v4959, %v5148
        %v5242 = vadd.f32 %v4960, %v5151
        %v5243 = vadd.f32 %v4961, %v5154
        %v5244 = vadd.f32 %v4962, %v5157
        %v5245 = vadd.f32 %v4963, %v5160
        %v5246 = vadd.f32 %v4964, %v5163
        %v5247 = vadd.f32 %v4965, %v5166
        %v5248 = vadd.f32 %v4966, %v5169
        %v5249 = vadd.f32 %v4967, %v5172
        %v5250 = vadd.f32 %v4968, %v5175
        %v5251 = vadd.f32 %v4969, %v5178
        %v5252 = vadd.f32 %v4970, %v5181
        %v5253 = vadd.f32 %v4971, %v5184
        %v5254 = vadd.f32 %v4972, %v5187
        %v5255 = vadd.f32 %v4973, %v5190
        %v5256 = vadd.f32 %v4974, %v5193
        %v5257 = vadd.f32 %v4975, %v5196
        %v5258 = vadd.f32 %v4976, %v5199
        %v5259 = vadd.f32 %v4977, %v5202
        %v5260 = vadd.f32 %v4978, %v5205
        %v5261 = vadd.f32 %v4979, %v5208
        %v5262 = vadd.f32 %v4980, %v5211
        %v5263 = vadd.f32 %v4981, %v5214
        %v5264 = vadd.f32 %v4982, %v5217
        %v5265 = vadd.f32 %v4983, %v5220
        %v5266 = vadd.f32 %v4984, %v5223
        %v5267 = vadd.f32 %v4985, %v5226
        %v5268 = vadd.f32 %v4986, %v5229
        %v5269 = vadd.f32 %v4987, %v5232
        %v5270 = vadd.f32 %v4988, %v5235
        %v5271 = vadd.f32 %v4989, %v5238
        %v5272 = vld [vmem:[%s1994 + $0x2] sm:$0xff]
        %v5273 = vld [vmem:[%s1994 + $0xa] sm:$0xff]
        %v5274 = vld [vmem:[%s1994 + $0x1a] sm:$0xff]
        %v5275 = vld [vmem:[%s1994 + $0x22] sm:$0xff]
        %v5276 = vld [vmem:[%s1994 + $0x32] sm:$0xff]
        %v5277 = vld [vmem:[%s1994 + $0x3a] sm:$0xff]
        %v5278 = vld [vmem:[%s1994 + $0x4a] sm:$0xff]
        %v5279 = vld [vmem:[%s1994 + $0x52] sm:$0xff]
        %v5280 = vld [vmem:[%s1994 + $0x62] sm:$0xff]
        %v5281 = vld [vmem:[%s1994 + $0x6a] sm:$0xff]
        %v5282 = vld [vmem:[%s1994 + $0x7a] sm:$0xff]
        %v5283 = vld [vmem:[%s1994 + $0x82] sm:$0xff]
        %v5284 = vld [vmem:[%s1994 + $0x92] sm:$0xff]
        %v5285 = vld [vmem:[%s1994 + $0x9a] sm:$0xff]
        %v5286 = vld [vmem:[%s1994 + $0xaa] sm:$0xff]
        %v5287 = vld [vmem:[%s1994 + $0xb2] sm:$0xff]
        %v5288 = vld [vmem:[%s1994 + $0xc2] sm:$0xff]
        %v5289 = vld [vmem:[%s1994 + $0xca] sm:$0xff]
        %v5290 = vld [vmem:[%s1994 + $0xda] sm:$0xff]
        %v5291 = vld [vmem:[%s1994 + $0xe2] sm:$0xff]
        %v5292 = vld [vmem:[%s1994 + $0xf2] sm:$0xff]
        %v5293 = vld [vmem:[%s1994 + $0xfa] sm:$0xff]
        %v5294 = vld [vmem:[%s1994 + $0x10a] sm:$0xff]
        %v5295 = vld [vmem:[%s1994 + $0x112] sm:$0xff]
        %v5296 = vld [vmem:[%s1994 + $0x122] sm:$0xff]
        %v5297 = vld [vmem:[%s1994 + $0x12a] sm:$0xff]
        %v5298 = vld [vmem:[%s1994 + $0x13a] sm:$0xff]
        %v5299 = vld [vmem:[%s1994 + $0x142] sm:$0xff]
        %v5300 = vld [vmem:[%s1994 + $0x152] sm:$0xff]
        %v5301 = vld [vmem:[%s1994 + $0x15a] sm:$0xff]
        %v5302 = vld [vmem:[%s1994 + $0x16a] sm:$0xff]
        %v5303 = vld [vmem:[%s1994 + $0x172] sm:$0xff]
        %s5304 = scalar_lea.vmem %s3, 512
        %v5305 = vld [vmem:[%s5304] sm:$0xff]
        %v5306 = vld [vmem:[%s5304 + $0x8] sm:$0xff]
        %v5307 = vld [vmem:[%s5304 + $0x10] sm:$0xff]
        %v5308 = vld [vmem:[%s5304 + $0x18] sm:$0xff]
        %v5309 = vld [vmem:[%s5304 + $0x20] sm:$0xff]
        %v5310 = vld [vmem:[%s5304 + $0x28] sm:$0xff]
        %v5311 = vld [vmem:[%s5304 + $0x30] sm:$0xff]
        %v5312 = vld [vmem:[%s5304 + $0x38] sm:$0xff]
        %v5314 = vsel %vm256, %v5272, 0
        %v5317 = vsel %vm256, %v5273, 0
        %v5320 = vsel %vm256, %v5274, 0
        %v5323 = vsel %vm256, %v5275, 0
        %v5326 = vsel %vm256, %v5276, 0
        %v5329 = vsel %vm256, %v5277, 0
        %v5332 = vsel %vm256, %v5278, 0
        %v5335 = vsel %vm256, %v5279, 0
        %v5338 = vsel %vm256, %v5280, 0
        %v5341 = vsel %vm256, %v5281, 0
        %v5344 = vsel %vm256, %v5282, 0
        %v5347 = vsel %vm256, %v5283, 0
        %v5350 = vsel %vm256, %v5284, 0
        %v5353 = vsel %vm256, %v5285, 0
        %v5356 = vsel %vm256, %v5286, 0
        %v5359 = vsel %vm256, %v5287, 0
        %v5362 = vsel %vm256, %v5288, 0
        %v5365 = vsel %vm256, %v5289, 0
        %v5368 = vsel %vm256, %v5290, 0
        %v5371 = vsel %vm256, %v5291, 0
        %v5374 = vsel %vm256, %v5292, 0
        %v5377 = vsel %vm256, %v5293, 0
        %v5380 = vsel %vm256, %v5294, 0
        %v5383 = vsel %vm256, %v5295, 0
        %v5386 = vsel %vm256, %v5296, 0
        %v5389 = vsel %vm256, %v5297, 0
        %v5392 = vsel %vm256, %v5298, 0
        %v5395 = vsel %vm256, %v5299, 0
        %v5398 = vsel %vm256, %v5300, 0
        %v5401 = vsel %vm256, %v5301, 0
        %v5404 = vsel %vm256, %v5302, 0
        %v5407 = vsel %vm256, %v5303, 0
        %5409 = vmatpush.msra.mxu0 0.0
        %5410 = vmatpush.msra.mxu0 0.0
        %5411 = vmatpush.msra.mxu0 0.0
        %5412 = vmatpush.msra.mxu0 0.0
        %5413 = vmatpush.msra.mxu0 0.0
        %5414 = vmatpush.msra.mxu0 0.0
        %5415 = vmatpush.msra.mxu0 0.0
        %5416 = vmatpush.msra.mxu0 0.0
        %5417 = vmatpush.msra.mxu0 %v5312
        %5418 = vmatpush.msra.mxu0 %v5311
        %5419 = vmatpush.msra.mxu0 %v5310
        %5420 = vmatpush.msra.mxu0 %v5309
        %5421 = vmatpush.msra.mxu0 %v5308
        %5422 = vmatpush.msra.mxu0 %v5307
        %5423 = vmatpush.msra.mxu0 %v5306
        %5424 = vmatpush.msra.mxu0 %v5305
        %5425 = vmatmul.f32.gmra.mxu0 %v5314
        %v5426 = vpop.f32.mrf.mxu0
        %v5427 = vadd.f32 0.0, %v5426
        %5428 = vmatmul.f32.gmra.mxu0 %v5317
        %v5429 = vpop.f32.mrf.mxu0
        %v5430 = vadd.f32 0.0, %v5429
        %5431 = vmatmul.f32.gmra.mxu0 %v5320
        %v5432 = vpop.f32.mrf.mxu0
        %v5433 = vadd.f32 0.0, %v5432
        %5434 = vmatmul.f32.gmra.mxu0 %v5323
        %v5435 = vpop.f32.mrf.mxu0
        %v5436 = vadd.f32 0.0, %v5435
        %5437 = vmatmul.f32.gmra.mxu0 %v5326
        %v5438 = vpop.f32.mrf.mxu0
        %v5439 = vadd.f32 0.0, %v5438
        %5440 = vmatmul.f32.gmra.mxu0 %v5329
        %v5441 = vpop.f32.mrf.mxu0
        %v5442 = vadd.f32 0.0, %v5441
        %5443 = vmatmul.f32.gmra.mxu0 %v5332
        %v5444 = vpop.f32.mrf.mxu0
        %v5445 = vadd.f32 0.0, %v5444
        %5446 = vmatmul.f32.gmra.mxu0 %v5335
        %v5447 = vpop.f32.mrf.mxu0
        %v5448 = vadd.f32 0.0, %v5447
        %5449 = vmatmul.f32.gmra.mxu0 %v5338
        %v5450 = vpop.f32.mrf.mxu0
        %v5451 = vadd.f32 0.0, %v5450
        %5452 = vmatmul.f32.gmra.mxu0 %v5341
        %v5453 = vpop.f32.mrf.mxu0
        %v5454 = vadd.f32 0.0, %v5453
        %5455 = vmatmul.f32.gmra.mxu0 %v5344
        %v5456 = vpop.f32.mrf.mxu0
        %v5457 = vadd.f32 0.0, %v5456
        %5458 = vmatmul.f32.gmra.mxu0 %v5347
        %v5459 = vpop.f32.mrf.mxu0
        %v5460 = vadd.f32 0.0, %v5459
        %5461 = vmatmul.f32.gmra.mxu0 %v5350
        %v5462 = vpop.f32.mrf.mxu0
        %v5463 = vadd.f32 0.0, %v5462
        %5464 = vmatmul.f32.gmra.mxu0 %v5353
        %v5465 = vpop.f32.mrf.mxu0
        %v5466 = vadd.f32 0.0, %v5465
        %5467 = vmatmul.f32.gmra.mxu0 %v5356
        %v5468 = vpop.f32.mrf.mxu0
        %v5469 = vadd.f32 0.0, %v5468
        %5470 = vmatmul.f32.gmra.mxu0 %v5359
        %v5471 = vpop.f32.mrf.mxu0
        %v5472 = vadd.f32 0.0, %v5471
        %5473 = vmatmul.f32.gmra.mxu0 %v5362
        %v5474 = vpop.f32.mrf.mxu0
        %v5475 = vadd.f32 0.0, %v5474
        %5476 = vmatmul.f32.gmra.mxu0 %v5365
        %v5477 = vpop.f32.mrf.mxu0
        %v5478 = vadd.f32 0.0, %v5477
        %5479 = vmatmul.f32.gmra.mxu0 %v5368
        %v5480 = vpop.f32.mrf.mxu0
        %v5481 = vadd.f32 0.0, %v5480
        %5482 = vmatmul.f32.gmra.mxu0 %v5371
        %v5483 = vpop.f32.mrf.mxu0
        %v5484 = vadd.f32 0.0, %v5483
        %5485 = vmatmul.f32.gmra.mxu0 %v5374
        %v5486 = vpop.f32.mrf.mxu0
        %v5487 = vadd.f32 0.0, %v5486
        %5488 = vmatmul.f32.gmra.mxu0 %v5377
        %v5489 = vpop.f32.mrf.mxu0
        %v5490 = vadd.f32 0.0, %v5489
        %5491 = vmatmul.f32.gmra.mxu0 %v5380
        %v5492 = vpop.f32.mrf.mxu0
        %v5493 = vadd.f32 0.0, %v5492
        %5494 = vmatmul.f32.gmra.mxu0 %v5383
        %v5495 = vpop.f32.mrf.mxu0
        %v5496 = vadd.f32 0.0, %v5495
        %5497 = vmatmul.f32.gmra.mxu0 %v5386
        %v5498 = vpop.f32.mrf.mxu0
        %v5499 = vadd.f32 0.0, %v5498
        %5500 = vmatmul.f32.gmra.mxu0 %v5389
        %v5501 = vpop.f32.mrf.mxu0
        %v5502 = vadd.f32 0.0, %v5501
        %5503 = vmatmul.f32.gmra.mxu0 %v5392
        %v5504 = vpop.f32.mrf.mxu0
        %v5505 = vadd.f32 0.0, %v5504
        %5506 = vmatmul.f32.gmra.mxu0 %v5395
        %v5507 = vpop.f32.mrf.mxu0
        %v5508 = vadd.f32 0.0, %v5507
        %5509 = vmatmul.f32.gmra.mxu0 %v5398
        %v5510 = vpop.f32.mrf.mxu0
        %v5511 = vadd.f32 0.0, %v5510
        %5512 = vmatmul.f32.gmra.mxu0 %v5401
        %v5513 = vpop.f32.mrf.mxu0
        %v5514 = vadd.f32 0.0, %v5513
        %5515 = vmatmul.f32.gmra.mxu0 %v5404
        %v5516 = vpop.f32.mrf.mxu0
        %v5517 = vadd.f32 0.0, %v5516
        %5518 = vmatmul.f32.gmra.mxu0 %v5407
        %v5519 = vpop.f32.mrf.mxu0
        %v5520 = vadd.f32 0.0, %v5519
        %5521 = vdwg.mxu0
        %v5522 = vadd.f32 %v5240, %v5427
        %v5523 = vadd.f32 %v5241, %v5430
        %v5524 = vadd.f32 %v5242, %v5433
        %v5525 = vadd.f32 %v5243, %v5436
        %v5526 = vadd.f32 %v5244, %v5439
        %v5527 = vadd.f32 %v5245, %v5442
        %v5528 = vadd.f32 %v5246, %v5445
        %v5529 = vadd.f32 %v5247, %v5448
        %v5530 = vadd.f32 %v5248, %v5451
        %v5531 = vadd.f32 %v5249, %v5454
        %v5532 = vadd.f32 %v5250, %v5457
        %v5533 = vadd.f32 %v5251, %v5460
        %v5534 = vadd.f32 %v5252, %v5463
        %v5535 = vadd.f32 %v5253, %v5466
        %v5536 = vadd.f32 %v5254, %v5469
        %v5537 = vadd.f32 %v5255, %v5472
        %v5538 = vadd.f32 %v5256, %v5475
        %v5539 = vadd.f32 %v5257, %v5478
        %v5540 = vadd.f32 %v5258, %v5481
        %v5541 = vadd.f32 %v5259, %v5484
        %v5542 = vadd.f32 %v5260, %v5487
        %v5543 = vadd.f32 %v5261, %v5490
        %v5544 = vadd.f32 %v5262, %v5493
        %v5545 = vadd.f32 %v5263, %v5496
        %v5546 = vadd.f32 %v5264, %v5499
        %v5547 = vadd.f32 %v5265, %v5502
        %v5548 = vadd.f32 %v5266, %v5505
        %v5549 = vadd.f32 %v5267, %v5508
        %v5550 = vadd.f32 %v5268, %v5511
        %v5551 = vadd.f32 %v5269, %v5514
        %v5552 = vadd.f32 %v5270, %v5517
        %v5553 = vadd.f32 %v5271, %v5520
        %v5554 = vld [vmem:[%s4] sm:$0x1]
        %v5556 = vperm.slane %v5554, 0
        %v5558 = vadd.f32 %v5522, %v5556
        %v5559 = vadd.f32 %v5523, %v5556
        %v5560 = vadd.f32 %v5524, %v5556
        %v5561 = vadd.f32 %v5525, %v5556
        %v5562 = vadd.f32 %v5526, %v5556
        %v5563 = vadd.f32 %v5527, %v5556
        %v5564 = vadd.f32 %v5528, %v5556
        %v5565 = vadd.f32 %v5529, %v5556
        %v5566 = vadd.f32 %v5530, %v5556
        %v5567 = vadd.f32 %v5531, %v5556
        %v5568 = vadd.f32 %v5532, %v5556
        %v5569 = vadd.f32 %v5533, %v5556
        %v5570 = vadd.f32 %v5534, %v5556
        %v5571 = vadd.f32 %v5535, %v5556
        %v5572 = vadd.f32 %v5536, %v5556
        %v5573 = vadd.f32 %v5537, %v5556
        %v5574 = vadd.f32 %v5538, %v5556
        %v5575 = vadd.f32 %v5539, %v5556
        %v5576 = vadd.f32 %v5540, %v5556
        %v5577 = vadd.f32 %v5541, %v5556
        %v5578 = vadd.f32 %v5542, %v5556
        %v5579 = vadd.f32 %v5543, %v5556
        %v5580 = vadd.f32 %v5544, %v5556
        %v5581 = vadd.f32 %v5545, %v5556
        %v5582 = vadd.f32 %v5546, %v5556
        %v5583 = vadd.f32 %v5547, %v5556
        %v5584 = vadd.f32 %v5548, %v5556
        %v5585 = vadd.f32 %v5549, %v5556
        %v5586 = vadd.f32 %v5550, %v5556
        %v5587 = vadd.f32 %v5551, %v5556
        %v5588 = vadd.f32 %v5552, %v5556
        %v5589 = vadd.f32 %v5553, %v5556
        %v5590 = vadd.f32 %v5558, %v223
        %v5591 = vadd.f32 %v5559, %v224
        %v5592 = vadd.f32 %v5560, %v225
        %v5593 = vadd.f32 %v5561, %v226
        %v5594 = vadd.f32 %v5562, %v227
        %v5595 = vadd.f32 %v5563, %v228
        %v5596 = vadd.f32 %v5564, %v229
        %v5597 = vadd.f32 %v5565, %v230
        %v5598 = vadd.f32 %v5566, %v231
        %v5599 = vadd.f32 %v5567, %v232
        %v5600 = vadd.f32 %v5568, %v233
        %v5601 = vadd.f32 %v5569, %v234
        %v5602 = vadd.f32 %v5570, %v235
        %v5603 = vadd.f32 %v5571, %v236
        %v5604 = vadd.f32 %v5572, %v237
        %v5605 = vadd.f32 %v5573, %v238
        %v5606 = vadd.f32 %v5574, %v239
        %v5607 = vadd.f32 %v5575, %v240
        %v5608 = vadd.f32 %v5576, %v241
        %v5609 = vadd.f32 %v5577, %v242
        %v5610 = vadd.f32 %v5578, %v243
        %v5611 = vadd.f32 %v5579, %v244
        %v5612 = vadd.f32 %v5580, %v245
        %v5613 = vadd.f32 %v5581, %v246
        %v5614 = vadd.f32 %v5582, %v247
        %v5615 = vadd.f32 %v5583, %v248
        %v5616 = vadd.f32 %v5584, %v249
        %v5617 = vadd.f32 %v5585, %v250
        %v5618 = vadd.f32 %v5586, %v251
        %v5619 = vadd.f32 %v5587, %v252
        %v5620 = vadd.f32 %v5588, %v253
        %v5621 = vadd.f32 %v5589, %v254
        %vm5622 = vcmp.ge.f32.partialorder %v5590, 0.0
        %vm5623 = vcmp.ge.f32.partialorder %v5591, 0.0
        %vm5624 = vcmp.ge.f32.partialorder %v5592, 0.0
        %vm5625 = vcmp.ge.f32.partialorder %v5593, 0.0
        %vm5626 = vcmp.ge.f32.partialorder %v5594, 0.0
        %vm5627 = vcmp.ge.f32.partialorder %v5595, 0.0
        %vm5628 = vcmp.ge.f32.partialorder %v5596, 0.0
        %vm5629 = vcmp.ge.f32.partialorder %v5597, 0.0
        %vm5630 = vcmp.ge.f32.partialorder %v5598, 0.0
        %vm5631 = vcmp.ge.f32.partialorder %v5599, 0.0
        %vm5632 = vcmp.ge.f32.partialorder %v5600, 0.0
        %vm5633 = vcmp.ge.f32.partialorder %v5601, 0.0
        %vm5634 = vcmp.ge.f32.partialorder %v5602, 0.0
        %vm5635 = vcmp.ge.f32.partialorder %v5603, 0.0
        %vm5636 = vcmp.ge.f32.partialorder %v5604, 0.0
        %vm5637 = vcmp.ge.f32.partialorder %v5605, 0.0
        %vm5638 = vcmp.ge.f32.partialorder %v5606, 0.0
        %vm5639 = vcmp.ge.f32.partialorder %v5607, 0.0
        %vm5640 = vcmp.ge.f32.partialorder %v5608, 0.0
        %vm5641 = vcmp.ge.f32.partialorder %v5609, 0.0
        %vm5642 = vcmp.ge.f32.partialorder %v5610, 0.0
        %vm5643 = vcmp.ge.f32.partialorder %v5611, 0.0
        %vm5644 = vcmp.ge.f32.partialorder %v5612, 0.0
        %vm5645 = vcmp.ge.f32.partialorder %v5613, 0.0
        %vm5646 = vcmp.ge.f32.partialorder %v5614, 0.0
        %vm5647 = vcmp.ge.f32.partialorder %v5615, 0.0
        %vm5648 = vcmp.ge.f32.partialorder %v5616, 0.0
        %vm5649 = vcmp.ge.f32.partialorder %v5617, 0.0
        %vm5650 = vcmp.ge.f32.partialorder %v5618, 0.0
        %vm5651 = vcmp.ge.f32.partialorder %v5619, 0.0
        %vm5652 = vcmp.ge.f32.partialorder %v5620, 0.0
        %vm5653 = vcmp.ge.f32.partialorder %v5621, 0.0
        %v5654 = vmul.f32 %v5590, 0.2
        %v5655 = vmul.f32 %v5591, 0.2
        %v5656 = vmul.f32 %v5592, 0.2
        %v5657 = vmul.f32 %v5593, 0.2
        %v5658 = vmul.f32 %v5594, 0.2
        %v5659 = vmul.f32 %v5595, 0.2
        %v5660 = vmul.f32 %v5596, 0.2
        %v5661 = vmul.f32 %v5597, 0.2
        %v5662 = vmul.f32 %v5598, 0.2
        %v5663 = vmul.f32 %v5599, 0.2
        %v5664 = vmul.f32 %v5600, 0.2
        %v5665 = vmul.f32 %v5601, 0.2
        %v5666 = vmul.f32 %v5602, 0.2
        %v5667 = vmul.f32 %v5603, 0.2
        %v5668 = vmul.f32 %v5604, 0.2
        %v5669 = vmul.f32 %v5605, 0.2
        %v5670 = vmul.f32 %v5606, 0.2
        %v5671 = vmul.f32 %v5607, 0.2
        %v5672 = vmul.f32 %v5608, 0.2
        %v5673 = vmul.f32 %v5609, 0.2
        %v5674 = vmul.f32 %v5610, 0.2
        %v5675 = vmul.f32 %v5611, 0.2
        %v5676 = vmul.f32 %v5612, 0.2
        %v5677 = vmul.f32 %v5613, 0.2
        %v5678 = vmul.f32 %v5614, 0.2
        %v5679 = vmul.f32 %v5615, 0.2
        %v5680 = vmul.f32 %v5616, 0.2
        %v5681 = vmul.f32 %v5617, 0.2
        %v5682 = vmul.f32 %v5618, 0.2
        %v5683 = vmul.f32 %v5619, 0.2
        %v5684 = vmul.f32 %v5620, 0.2
        %v5685 = vmul.f32 %v5621, 0.2
        %v5686 = vsel %vm5622, %v5590, %v5654
        %v5687 = vsel %vm5623, %v5591, %v5655
        %v5688 = vsel %vm5624, %v5592, %v5656
        %v5689 = vsel %vm5625, %v5593, %v5657
        %v5690 = vsel %vm5626, %v5594, %v5658
        %v5691 = vsel %vm5627, %v5595, %v5659
        %v5692 = vsel %vm5628, %v5596, %v5660
        %v5693 = vsel %vm5629, %v5597, %v5661
        %v5694 = vsel %vm5630, %v5598, %v5662
        %v5695 = vsel %vm5631, %v5599, %v5663
        %v5696 = vsel %vm5632, %v5600, %v5664
        %v5697 = vsel %vm5633, %v5601, %v5665
        %v5698 = vsel %vm5634, %v5602, %v5666
        %v5699 = vsel %vm5635, %v5603, %v5667
        %v5700 = vsel %vm5636, %v5604, %v5668
        %v5701 = vsel %vm5637, %v5605, %v5669
        %v5702 = vsel %vm5638, %v5606, %v5670
        %v5703 = vsel %vm5639, %v5607, %v5671
        %v5704 = vsel %vm5640, %v5608, %v5672
        %v5705 = vsel %vm5641, %v5609, %v5673
        %v5706 = vsel %vm5642, %v5610, %v5674
        %v5707 = vsel %vm5643, %v5611, %v5675
        %v5708 = vsel %vm5644, %v5612, %v5676
        %v5709 = vsel %vm5645, %v5613, %v5677
        %v5710 = vsel %vm5646, %v5614, %v5678
        %v5711 = vsel %vm5647, %v5615, %v5679
        %v5712 = vsel %vm5648, %v5616, %v5680
        %v5713 = vsel %vm5649, %v5617, %v5681
        %v5714 = vsel %vm5650, %v5618, %v5682
        %v5715 = vsel %vm5651, %v5619, %v5683
        %v5716 = vsel %vm5652, %v5620, %v5684
        %v5717 = vsel %vm5653, %v5621, %v5685
        %5718 = vst.msk [vmem:[%s217] sm:$0xff] %vm256, %v5686
        %5719 = vst.msk [vmem:[%s217 + $0x8] sm:$0xff] %vm256, %v5687
        %5720 = vst.msk [vmem:[%s217 + $0x10] sm:$0xff] %vm256, %v5688
        %5721 = vst.msk [vmem:[%s217 + $0x18] sm:$0xff] %vm256, %v5689
        %5722 = vst.msk [vmem:[%s217 + $0x20] sm:$0xff] %vm256, %v5690
        %5723 = vst.msk [vmem:[%s217 + $0x28] sm:$0xff] %vm256, %v5691
        %5724 = vst.msk [vmem:[%s217 + $0x30] sm:$0xff] %vm256, %v5692
        %5725 = vst.msk [vmem:[%s217 + $0x38] sm:$0xff] %vm256, %v5693
        %5726 = vst.msk [vmem:[%s217 + $0x40] sm:$0xff] %vm256, %v5694
        %5727 = vst.msk [vmem:[%s217 + $0x48] sm:$0xff] %vm256, %v5695
        %5728 = vst.msk [vmem:[%s217 + $0x50] sm:$0xff] %vm256, %v5696
        %5729 = vst.msk [vmem:[%s217 + $0x58] sm:$0xff] %vm256, %v5697
        %5730 = vst.msk [vmem:[%s217 + $0x60] sm:$0xff] %vm256, %v5698
        %5731 = vst.msk [vmem:[%s217 + $0x68] sm:$0xff] %vm256, %v5699
        %5732 = vst.msk [vmem:[%s217 + $0x70] sm:$0xff] %vm256, %v5700
        %5733 = vst.msk [vmem:[%s217 + $0x78] sm:$0xff] %vm256, %v5701
        %5734 = vst.msk [vmem:[%s217 + $0x80] sm:$0xff] %vm256, %v5702
        %5735 = vst.msk [vmem:[%s217 + $0x88] sm:$0xff] %vm256, %v5703
        %5736 = vst.msk [vmem:[%s217 + $0x90] sm:$0xff] %vm256, %v5704
        %5737 = vst.msk [vmem:[%s217 + $0x98] sm:$0xff] %vm256, %v5705
        %5738 = vst.msk [vmem:[%s217 + $0xa0] sm:$0xff] %vm256, %v5706
        %5739 = vst.msk [vmem:[%s217 + $0xa8] sm:$0xff] %vm256, %v5707
        %5740 = vst.msk [vmem:[%s217 + $0xb0] sm:$0xff] %vm256, %v5708
        %5741 = vst.msk [vmem:[%s217 + $0xb8] sm:$0xff] %vm256, %v5709
        %5742 = vst.msk [vmem:[%s217 + $0xc0] sm:$0xff] %vm256, %v5710
        %5743 = vst.msk [vmem:[%s217 + $0xc8] sm:$0xff] %vm256, %v5711
        %5744 = vst.msk [vmem:[%s217 + $0xd0] sm:$0xff] %vm256, %v5712
        %5745 = vst.msk [vmem:[%s217 + $0xd8] sm:$0xff] %vm256, %v5713
        %5746 = vst.msk [vmem:[%s217 + $0xe0] sm:$0xff] %vm256, %v5714
        %5747 = vst.msk [vmem:[%s217 + $0xe8] sm:$0xff] %vm256, %v5715
        %5748 = vst.msk [vmem:[%s217 + $0xf0] sm:$0xff] %vm256, %v5716
        %5749 = vst.msk [vmem:[%s217 + $0xf8] sm:$0xff] %vm256, %v5717
        %s5750 = sand.u32 %s137, 1
        %s5751 = scalar_lea.sflag [#allocation4], %s5750
        %s5752 = sand.u32 %s137, 1
        %s5753 = smul.addr %s5752, 256
        %s5754 = scalar_lea.vmem [#allocation3], %s5753
        // Predicated region
        $region41: #{resblock_forward.1} parent=39 // pred_check
          %p5755 = pneg %p147
        $region42: #{resblock_forward.1} parent=39 // pred_check_branch
          %5757 = sbr.rel (%p5755) target = $region44
        $region43: #{resblock_forward.1} parent=39 // pred_region
          %5759 = vsyncadd %s5751, 0
          %s5760 = smul.addr %s19, 32
          %s5761 = smul.addr %s5760, 8
          %s5762 = scalar_lea.hbm %s5, %s5761
          %s5763 = sshll.u32 %s5754, 4
          %s5764 = int_to_ptr.vmem [resolvable:$true] %s5763
          %s5765 = sshll.u32 %s5762, 4
          %s5766 = int_to_ptr.hbm [resolvable:$true] %s5765
          %5771 = dma.vmem_to_hbm [thread:$0]  %s5764, 4096, %s5766, %s5751, 128, 128, 8
        $region44: #{resblock_forward.1} parent=39 // pred_fallthru
          _
      $region40: #{resblock_forward.1} parent=5 // pred_fallthru
        _
      %p5772 = scmp.le.s32.totalorder 2, %s14
      // Predicated region
      $region45: #{resblock_forward.1} parent=5 // pred_check
        %p5773 = pneg %p5772
      $region46: #{resblock_forward.1} parent=5 // pred_check_branch
        %5775 = sbr.rel (%p5773) target = $region48
      $region47: #{resblock_forward.1} parent=5 // pred_region
        %s5776 = ssub.s32 %s14, 2
        // Predicated region
        $region49: #{resblock_forward.1} parent=47 // pred_check
          %p5777 = pneg %p153
        $region50: #{resblock_forward.1} parent=47 // pred_check_branch
          %5779 = sbr.rel (%p5777) target = $region52
        $region51: #{resblock_forward.1} parent=47 // pred_region
          %s5780 = sand.u32 %s138, 1
          %s5781 = scalar_lea.sflag [#allocation4], %s5780
          %s5782 = sand.u32 %s138, 1
          %s5783 = smul.addr %s5782, 256
          %s5784 = scalar_lea.vmem [#allocation3], %s5783
          %5786 = dma.done %s5781, 4096
        $region52: #{resblock_forward.1} parent=47 // pred_fallthru
          _
      $region48: #{resblock_forward.1} parent=5 // pred_fallthru
        _
    $region6: #{resblock_forward.1} parent=1 // loop_footer
      %s18 = sadd.s32 1, %s14
    $region7: #{resblock_forward.1} parent=1 // loop_footer_branch
      %13 = sbr.rel target = $region3
    $region8: #{resblock_forward.1} parent=1 // loop_exit
      _
    %5787 = vsyncpa [#allocation4], 1
    %s5788 = scalar_lea.sflag [#allocation4], 1
    %5789 = vsyncpa %s5788, 1

</llo_original>
